<compile_context>
chip_gen: v6e
topology: v6e:2x2x1
jax: 0.10.0
libtpu: 0.0.40
codegen_flags: <defaults>
</compile_context>

<pallas_src>
import functools

import jax
import jax.numpy as jnp
from jax import lax
from jax.experimental import pallas as pl
from jax.experimental.pallas import tpu as pltpu

NEG_SLOPE = 0.01            # nn.LeakyReLU() default negative_slope
CH = 32                     # feature channels (model default ch=32)
UP_PAD = 128                # up-conv out channels padded 108 -> 128 (lane-dense)


def _round_up(x, m):
    return (x + m - 1) // m * m


# ------------------------------ Pallas kernel -------------------------------

def _conv_flat(src_ref, w_ref, b_ref, *, m, row_stride, k):
    """k x k conv over a flat, row-major padded activation buffer.

    src_ref : (rows, Cin) bf16 flat buffer, row stride = row_stride (= wd+2).
    w_ref   : (k, k*Cin, Nout) bf16; K index = kx*Cin + c for weight row ky.
    Tap (ky, kx) of output row o reads src row o + ky*row_stride + kx, so tap
    loads are pure sublane-offset slices (no relayout copies).  The kx taps
    are concatenated along channels so the conv is k wide-K MXU dots instead
    of k*k skinny ones.  f32 accumulation; bias added once at the end.
    """
    acc = None
    for ky in range(k):
        base = ky * row_stride
        wide = jnp.concatenate(
            [src_ref[pl.ds(base + kx, m), :] for kx in range(k)], axis=-1)
        d = jnp.dot(wide, w_ref[ky], preferred_element_type=jnp.float32)
        acc = d if acc is None else acc + d
    return acc + b_ref[...]


def _store_reflect(dst_ref, z, *, hd, wd):
    """Write a stage output z (f32, (hd*(wd+2), C); last two columns of each
    row are garbage) into the flat padded bf16 scratch, building the 1-pixel
    PyTorch-'reflect' border directly from the in-register value.  Only valid
    columns of z are ever selected, so garbage never contaminates the buffer;
    there is no scratch read-after-write and no strided store."""
    W2 = wd + 2
    m = hd * W2
    col = lax.broadcasted_iota(jnp.int32, (m, 1), 0) % W2
    z_m1 = pltpu.roll(z, 1, 0)        # z[t-1] -> interior columns 1..wd
    z_p1 = pltpu.roll(z, m - 1, 0)    # z[t+1] -> left border  (col 0)
    z_m3 = pltpu.roll(z, 3, 0)        # z[t-3] -> right border (col wd+1)
    zc = jnp.where(col == 0, z_p1,
                   jnp.where(col == W2 - 1, z_m3, z_m1)).astype(dst_ref.dtype)
    dst_ref[pl.ds(W2, m), :] = zc                               # rows 1..hd
    dst_ref[pl.ds(0, W2), :] = zc[W2:2 * W2]                    # top    <- row 2
    dst_ref[pl.ds((hd + 1) * W2, W2), :] = zc[(hd - 2) * W2:(hd - 1) * W2]


def _fused_kernel(xs_ref, wds_ref, bds_ref, w1_ref, b1_ref, w2_ref, b2_ref,
                  wup_ref, bup_ref, o_ref, hp_ref, r1p_ref, yp_ref,
                  *, hd, wd):
    W2 = wd + 2
    m = hd * W2
    used = (hd + 2) * W2
    tail = hp_ref.shape[0] - used
    if tail > 0:   # deterministic values for the (garbage-only) tail rows
        zeros = jnp.zeros((tail, hp_ref.shape[1]), hp_ref.dtype)
        hp_ref[pl.ds(used, tail), :] = zeros
        r1p_ref[pl.ds(used, tail), :] = zeros
        yp_ref[pl.ds(used, tail), :] = zeros

    # ---- ds: Conv2d(cin, CH, 3, stride=2, pad=1, reflect), no activation.
    # Stride-2 3x3 conv == 2x2 stride-1 conv over the space-to-depth input.
    h = _conv_flat(xs_ref, wds_ref, bds_ref, m=m, row_stride=W2, k=2)
    _store_reflect(hp_ref, h, hd=hd, wd=wd)

    # ---- resblock conv1 + LeakyReLU ----------------------------------------
    a = _conv_flat(hp_ref, w1_ref, b1_ref, m=m, row_stride=W2, k=3)
    _store_reflect(r1p_ref, jnp.maximum(a, NEG_SLOPE * a), hd=hd, wd=wd)

    # ---- resblock conv2 + LeakyReLU, then the (double) skip ----------------
    a = _conv_flat(r1p_ref, w2_ref, b2_ref, m=m, row_stride=W2, k=3)
    # resblock: mid = r2 + h ; bicubic_pp: y = mid + h  =>  y = r2 + 2*h (f32)
    y = jnp.maximum(a, NEG_SLOPE * a) + 2.0 * h
    _store_reflect(yp_ref, y, hd=hd, wd=wd)

    # ---- up conv: one full-width, lane-dense (128ch) f32 store to HBM ------
    o_ref[...] = _conv_flat(yp_ref, wup_ref, bup_ref, m=m, row_stride=W2, k=3)


# --------------------------- wrapper / layout glue ---------------------------

def _w3x3_wide(w_oihw, out_perm=None, n_pad=None):
    """(Cout, Cin, 3, 3) -> (3, 3*Cin, Cout[perm, padded]) bf16; K index is
    kx*Cin + c for weight row ky (matches _conv_flat's channel concat)."""
    cout, cin = w_oihw.shape[0], w_oihw.shape[1]
    w = jnp.transpose(w_oihw, (2, 3, 1, 0)).reshape(3, 3 * cin, cout)
    if out_perm is not None:
        w = w[:, :, out_perm]
    if n_pad is not None and n_pad > cout:
        w = jnp.pad(w, ((0, 0), (0, 0), (0, n_pad - cout)))
    return w.astype(jnp.bfloat16)


def _wds_wide(w_oihw):
    """Stride-2 3x3 weights -> equivalent 2x2-tap weights over the
    space-to-depth input: (2, 2*4*Cin, Cout) bf16, K index
    dx*(4*Cin) + (py*2+px)*Cin + c, weight row = dy."""
    cout, cin = w_oihw.shape[0], w_oihw.shape[1]
    w_hwio = jnp.transpose(w_oihw, (2, 3, 1, 0))             # (3, 3, Cin, Cout)
    wexp = jnp.zeros((2, 2, 2, 2, cin, cout), w_hwio.dtype)  # dy, dx, py, px, c, o
    for dy in range(2):
        for dx in range(2):
            for py in range(2):
                for px in range(2):
                    ky, kx = 2 * dy + py, 2 * dx + px
                    if ky < 3 and kx < 3:
                        wexp = wexp.at[dy, dx, py, px].set(w_hwio[ky, kx])
    return wexp.reshape(2, 8 * cin, cout).astype(jnp.bfloat16)


def _vmem_limit_bytes():
    cap = 64 * 1024 * 1024                 # conservative fallback (v7x physical)
    try:
        cap = int(pltpu.get_tpu_info().vmem_capacity_bytes)
    except Exception:
        pass
    return min(cap * 3 // 4, 96 * 1024 * 1024)


def bicubic_pp_forward(params, x_nchw, *, scale=3):
    B, cin, H, W = x_nchw.shape
    assert H % 2 == 0 and W % 2 == 0, "even spatial dims expected (stride-2 ds)"
    hd, wd = H // 2, W // 2
    assert hd >= 2 and wd >= 2, "reflect padding needs >=4-pixel input dims"
    W2 = wd + 2
    r = 2 * scale
    n_up = r * r * cin                               # 108 for the defaults
    mfull = hd * W2                                  # conv rows (full padded width)
    mp = _round_up((hd + 2) * W2 + 2, 8)             # flat padded-scratch rows
    mxs = _round_up((hd + 1) * W2 + 1, 8)            # flat ds-input rows

    # Layout glue (HBM-side, once, no compute): NCHW->NHWC, reflect pad,
    # space-to-depth, then flatten into rows of stride wd+2 so the in-kernel
    # taps are pure row offsets (same stride as the activation scratch).
    x = jnp.transpose(x_nchw, (0, 2, 3, 1)).astype(jnp.float32)
    xp = jnp.pad(x, ((0, 0), (1, 1), (1, 1), (0, 0)), mode='reflect')
    xs = xp.reshape(B, hd + 1, 2, wd + 1, 2, cin)
    xs = jnp.transpose(xs, (0, 1, 3, 2, 4, 5)).reshape(B, hd + 1, wd + 1, 4 * cin)
    xs = jnp.pad(xs, ((0, 0), (0, 0), (0, 1), (0, 0)))          # junk column
    xs = xs.reshape(B, (hd + 1) * W2, 4 * cin)
    xs = jnp.pad(xs, ((0, 0), (0, mxs - (hd + 1) * W2), (0, 0)))
    xs = xs.astype(jnp.bfloat16)

    # Wide-K bf16 weights; up-conv output channels permuted (C,ry,rx)->(ry,rx,C)
    # so the epilogue is an NHWC depth-to-space (no 108-channel transpose).
    perm = jnp.arange(n_up).reshape(cin, r, r).transpose(1, 2, 0).reshape(-1)
    wds = _wds_wide(params['ds_w'])
    wr1 = _w3x3_wide(params['rb1_w'])
    wr2 = _w3x3_wide(params['rb2_w'])
    wup = _w3x3_wide(params['up_w'], out_perm=perm, n_pad=UP_PAD)
    bds = params['ds_b'].reshape(1, CH).astype(jnp.float32)
    b1 = params['rb1_b'].reshape(1, CH).astype(jnp.float32)
    b2 = params['rb2_b'].reshape(1, CH).astype(jnp.float32)
    bup = jnp.pad(params['up_b'][perm], (0, UP_PAD - n_up)).reshape(1, UP_PAD)
    bup = bup.astype(jnp.float32)

    def wspec(shape):
        return pl.BlockSpec(shape, lambda b, _n=len(shape): (0,) * _n)

    flops = 2 * B * mfull * (16 * cin * CH + 2 * 9 * CH * CH + 9 * CH * UP_PAD)
    bytes_accessed = int(2 * xs.size + 4 * B * mfull * UP_PAD
                         + 2 * (wds.size + wr1.size + wr2.size + wup.size)
                         + 4 * (bds.size + b1.size + b2.size + bup.size))

    # TODO(synk): for large images add a halo'd row-tile grid axis (3 extra
    # input rows of halo per chained 3x3 stage) so scratch stays bounded and
    # both v7x TensorCores are busy at B=1; whole-image-per-step is fine here.
    z = pl.pallas_call(
        functools.partial(_fused_kernel, hd=hd, wd=wd),
        out_shape=jax.ShapeDtypeStruct((B, mfull, UP_PAD), jnp.float32),
        grid=(B,),
        in_specs=[
            pl.BlockSpec((None, mxs, 4 * cin), lambda b: (b, 0, 0)),
            wspec(wds.shape), wspec(bds.shape),
            wspec(wr1.shape), wspec(b1.shape),
            wspec(wr2.shape), wspec(b2.shape),
            wspec(wup.shape), wspec(bup.shape),
        ],
        out_specs=pl.BlockSpec((None, mfull, UP_PAD), lambda b: (b, 0, 0)),
        scratch_shapes=[pltpu.VMEM((mp, CH), jnp.bfloat16) for _ in range(3)],
        compiler_params=pltpu.CompilerParams(
            dimension_semantics=("parallel",),          # 2 TCs on v7x
            vmem_limit_bytes=_vmem_limit_bytes()),
        cost_estimate=pl.CostEstimate(flops=flops, transcendentals=0,
                                      bytes_accessed=bytes_accessed),
    )(xs, wds, bds, wr1, b1, wr2, b2, wup, bup)

    # Drop the channel pad + the 2 garbage columns, NHWC depth-to-space
    # (channels already in (ry, rx, c) order), then NCHW on 3 channels only.
    z = z[:, :, :n_up].reshape(B, hd, W2, n_up)[:, :, :wd, :]
    z = z.reshape(B, hd, wd, r, r, cin)
    z = jnp.transpose(z, (0, 1, 3, 2, 4, 5)).reshape(B, hd * r, wd * r, cin)
    return jnp.transpose(z, (0, 3, 1, 2))


# --------------------------------- params -----------------------------------

def init_params(key, *, scale=3, ch=CH, ch_in=3):
    ks = jax.random.split(key, 8)

    def conv_p(kw, kb, cout, cin):
        w = jax.random.normal(kw, (cout, cin, 3, 3), jnp.float32) \
            * (1.0 / (3.0 * float(cin) ** 0.5))
        b = jax.random.normal(kb, (cout,), jnp.float32) * 0.01
        return w, b

    p = {}
    p['ds_w'], p['ds_b'] = conv_p(ks[0], ks[1], ch, ch_in)     # ds conv (s=2)
    p['rb1_w'], p['rb1_b'] = conv_p(ks[2], ks[3], ch, ch)      # resblock conv1
    p['rb2_w'], p['rb2_b'] = conv_p(ks[4], ks[5], ch, ch)      # resblock conv2
    cout = scale * scale * 4 * ch_in                           # 108 (defaults)
    p['up_w'], p['up_b'] = conv_p(ks[6], ks[7], cout, ch)      # final conv
    return p


if __name__ == "__main__":
    key = jax.random.PRNGKey(0)
    pkey, xkey = jax.random.split(key)
    params = init_params(pkey, scale=3, ch=CH, ch_in=3)
    x = jax.random.normal(xkey, (2, 3, 16, 16), jnp.float32)   # NCHW input

    fwd = jax.jit(functools.partial(bicubic_pp_forward, scale=3))
    out = fwd(params, x)
    jax.block_until_ready(out)

    assert out.shape == (2, 3, 48, 48), out.shape
    assert out.dtype == jnp.float32
    print("KERNEL_OK")
</pallas_src>

<mosaic_0001>
module attributes {stable_mosaic.version = 11 : i64} {
  func.func @_fused_kernel(%arg0: i32, %arg1: memref<1x96x12xbf16, #tpu.memory_space<vmem>>, %arg2: memref<2x24x32xbf16, #tpu.memory_space<vmem>>, %arg3: memref<1x32xf32, #tpu.memory_space<vmem>>, %arg4: memref<3x96x32xbf16, #tpu.memory_space<vmem>>, %arg5: memref<1x32xf32, #tpu.memory_space<vmem>>, %arg6: memref<3x96x32xbf16, #tpu.memory_space<vmem>>, %arg7: memref<1x32xf32, #tpu.memory_space<vmem>>, %arg8: memref<3x96x128xbf16, #tpu.memory_space<vmem>>, %arg9: memref<1x128xf32, #tpu.memory_space<vmem>>, %arg10: memref<1x80x128xf32, #tpu.memory_space<vmem>>, %arg11: memref<104x32xbf16, #tpu.memory_space<vmem>>, %arg12: memref<104x32xbf16, #tpu.memory_space<vmem>>, %arg13: memref<104x32xbf16, #tpu.memory_space<vmem>>) attributes {dimension_semantics = [#tpu.dimension_semantics<parallel>], iteration_bounds = array<i64: 2>, scalar_prefetch = 0 : i64, scratch_operands = 3 : i64, tpu.core_type = #tpu.core_type<tc>, window_params = [{transform_indices = @transform_0, window_bounds = array<i64: 1, 96, 12>}, {pipeline_mode = #tpu.pipeline_mode<synchronous>, transform_indices = @transform_1, window_bounds = array<i64: 2, 24, 32>}, {pipeline_mode = #tpu.pipeline_mode<synchronous>, transform_indices = @transform_2, window_bounds = array<i64: 1, 32>}, {pipeline_mode = #tpu.pipeline_mode<synchronous>, transform_indices = @transform_3, window_bounds = array<i64: 3, 96, 32>}, {pipeline_mode = #tpu.pipeline_mode<synchronous>, transform_indices = @transform_4, window_bounds = array<i64: 1, 32>}, {pipeline_mode = #tpu.pipeline_mode<synchronous>, transform_indices = @transform_5, window_bounds = array<i64: 3, 96, 32>}, {pipeline_mode = #tpu.pipeline_mode<synchronous>, transform_indices = @transform_6, window_bounds = array<i64: 1, 32>}, {pipeline_mode = #tpu.pipeline_mode<synchronous>, transform_indices = @transform_7, window_bounds = array<i64: 3, 96, 128>}, {pipeline_mode = #tpu.pipeline_mode<synchronous>, transform_indices = @transform_8, window_bounds = array<i64: 1, 128>}, {transform_indices = @transform_9, window_bounds = array<i64: 1, 80, 128>}]} {
    %cst = arith.constant 0.000000e+00 : bf16
    %0 = vector.broadcast %cst : bf16 to vector<4x32xbf16>
    %c100 = arith.constant 100 : index
    %c0 = arith.constant 0 : index
    %1 = vector.load %arg11[%c100, %c0] : memref<104x32xbf16, #tpu.memory_space<vmem>>, vector<4x32xbf16>
    tpu.vector_store %arg11[%c100, %c0], %0 {strides = array<i32>} : memref<104x32xbf16, #tpu.memory_space<vmem>>, vector<4x32xbf16>,
    %c100_0 = arith.constant 100 : index
    %c0_1 = arith.constant 0 : index
    %2 = vector.load %arg12[%c100_0, %c0_1] : memref<104x32xbf16, #tpu.memory_space<vmem>>, vector<4x32xbf16>
    tpu.vector_store %arg12[%c100_0, %c0_1], %0 {strides = array<i32>} : memref<104x32xbf16, #tpu.memory_space<vmem>>, vector<4x32xbf16>,
    %c100_2 = arith.constant 100 : index
    %c0_3 = arith.constant 0 : index
    %3 = vector.load %arg13[%c100_2, %c0_3] : memref<104x32xbf16, #tpu.memory_space<vmem>>, vector<4x32xbf16>
    tpu.vector_store %arg13[%c100_2, %c0_3], %0 {strides = array<i32>} : memref<104x32xbf16, #tpu.memory_space<vmem>>, vector<4x32xbf16>,
    %c0_4 = arith.constant 0 : index
    %c0_5 = arith.constant 0 : index
    %c0_6 = arith.constant 0 : index
    %4 = vector.load %arg1[%c0_4, %c0_5, %c0_6] : memref<1x96x12xbf16, #tpu.memory_space<vmem>>, vector<1x80x12xbf16>
    %5 = vector.shape_cast %4 : vector<1x80x12xbf16> to vector<80x12xbf16>
    %c0_7 = arith.constant 0 : index
    %c1 = arith.constant 1 : index
    %c0_8 = arith.constant 0 : index
    %6 = vector.load %arg1[%c0_7, %c1, %c0_8] : memref<1x96x12xbf16, #tpu.memory_space<vmem>>, vector<1x80x12xbf16>
    %7 = vector.shape_cast %6 : vector<1x80x12xbf16> to vector<80x12xbf16>
    %8 = tpu.concatenate %5, %7 in 1 : vector<80x12xbf16>, vector<80x12xbf16> -> vector<80x24xbf16>
    %c0_9 = arith.constant 0 : index
    %c0_10 = arith.constant 0 : index
    %c0_11 = arith.constant 0 : index
    %9 = vector.load %arg2[%c0_9, %c0_10, %c0_11] : memref<2x24x32xbf16, #tpu.memory_space<vmem>>, vector<1x24x32xbf16>
    %10 = vector.shape_cast %9 : vector<1x24x32xbf16> to vector<24x32xbf16>
    %cst_12 = arith.constant dense<0.000000e+00> : vector<80x32xf32>
    %11 = tpu.matmul %8, %10, %cst_12 {dimension_numbers = #tpu.dot_dimension_numbers<[1], [0], [0], [1], [0, 0, 1, 1], [], []>} : vector<80x24xbf16>, vector<24x32xbf16>, vector<80x32xf32> -> vector<80x32xf32>
    %c0_13 = arith.constant 0 : index
    %c10 = arith.constant 10 : index
    %c0_14 = arith.constant 0 : index
    %12 = vector.load %arg1[%c0_13, %c10, %c0_14] : memref<1x96x12xbf16, #tpu.memory_space<vmem>>, vector<1x80x12xbf16>
    %13 = vector.shape_cast %12 : vector<1x80x12xbf16> to vector<80x12xbf16>
    %c0_15 = arith.constant 0 : index
    %c11 = arith.constant 11 : index
    %c0_16 = arith.constant 0 : index
    %14 = vector.load %arg1[%c0_15, %c11, %c0_16] : memref<1x96x12xbf16, #tpu.memory_space<vmem>>, vector<1x80x12xbf16>
    %15 = vector.shape_cast %14 : vector<1x80x12xbf16> to vector<80x12xbf16>
    %16 = tpu.concatenate %13, %15 in 1 : vector<80x12xbf16>, vector<80x12xbf16> -> vector<80x24xbf16>
    %c1_17 = arith.constant 1 : index
    %c0_18 = arith.constant 0 : index
    %c0_19 = arith.constant 0 : index
    %17 = vector.load %arg2[%c1_17, %c0_18, %c0_19] : memref<2x24x32xbf16, #tpu.memory_space<vmem>>, vector<1x24x32xbf16>
    %18 = vector.shape_cast %17 : vector<1x24x32xbf16> to vector<24x32xbf16>
    %cst_20 = arith.constant dense<0.000000e+00> : vector<80x32xf32>
    %19 = tpu.matmul %16, %18, %cst_20 {dimension_numbers = #tpu.dot_dimension_numbers<[1], [0], [0], [1], [0, 0, 1, 1], [], []>} : vector<80x24xbf16>, vector<24x32xbf16>, vector<80x32xf32> -> vector<80x32xf32>
    %20 = arith.addf %11, %19 : vector<80x32xf32>
    %c0_21 = arith.constant 0 : index
    %c0_22 = arith.constant 0 : index
    %21 = vector.load %arg3[%c0_21, %c0_22] : memref<1x32xf32, #tpu.memory_space<vmem>>, vector<1x32xf32>
    %22 = vector.broadcast %21 : vector<1x32xf32> to vector<80x32xf32>
    %23 = arith.addf %20, %22 : vector<80x32xf32>
    %24 = tpu.iota {dimensions = array<i32: 0>} : vector<80x1xi32>
    %c10_i32 = arith.constant 10 : i32
    %c0_i32 = arith.constant 0 : i32
    %25 = arith.cmpi eq, %c10_i32, %c0_i32 : i32
    %c1_i32 = arith.constant 1 : i32
    %26 = arith.select %25, %c1_i32, %c10_i32 : i32
    %27 = vector.broadcast %26 : i32 to vector<80x1xi32>
    %28 = arith.remsi %24, %27 : vector<80x1xi32>
    %c0_i32_23 = arith.constant 0 : i32
    %29 = vector.broadcast %c0_i32_23 : i32 to vector<80x1xi32>
    %30 = arith.cmpi ne, %28, %29 : vector<80x1xi32>
    %c0_i32_24 = arith.constant 0 : i32
    %31 = vector.broadcast %c0_i32_24 : i32 to vector<80x1xi32>
    %32 = arith.cmpi slt, %28, %31 : vector<80x1xi32>
    %c0_i32_25 = arith.constant 0 : i32
    %33 = arith.cmpi slt, %26, %c0_i32_25 : i32
    %34 = vector.broadcast %33 : i1 to vector<80x1xi1>
    %35 = vector.broadcast %34 : vector<80x1xi1> to vector<80x1xi1>
    %36 = arith.xori %32, %35 : vector<80x1xi1>
    %37 = arith.andi %36, %30 : vector<80x1xi1>
    %38 = vector.broadcast %26 : i32 to vector<80x1xi32>
    %39 = arith.addi %28, %38 : vector<80x1xi32>
    %40 = arith.select %37, %39, %28 : vector<80x1xi1>, vector<80x1xi32>
    %c1_i32_26 = arith.constant 1 : i32
    %41 = tpu.dynamic_rotate %23 by %c1_i32_26 dim 0 : vector<80x32xf32>, i32 -> vector<80x32xf32>
    %c79_i32 = arith.constant 79 : i32
    %42 = tpu.dynamic_rotate %23 by %c79_i32 dim 0 : vector<80x32xf32>, i32 -> vector<80x32xf32>
    %c3_i32 = arith.constant 3 : i32
    %43 = tpu.dynamic_rotate %23 by %c3_i32 dim 0 : vector<80x32xf32>, i32 -> vector<80x32xf32>
    %c0_i32_27 = arith.constant 0 : i32
    %44 = vector.broadcast %c0_i32_27 : i32 to vector<80x1xi32>
    %45 = arith.cmpi eq, %40, %44 : vector<80x1xi32>
    %c9_i32 = arith.constant 9 : i32
    %46 = vector.broadcast %c9_i32 : i32 to vector<80x1xi32>
    %47 = arith.cmpi eq, %40, %46 : vector<80x1xi32>
    %48 = vector.shape_cast %47 : vector<80x1xi1> to vector<80x1xi1>
    %49 = vector.broadcast %48 : vector<80x1xi1> to vector<80x32xi1>
    %50 = arith.select %49, %43, %41 : vector<80x32xi1>, vector<80x32xf32>
    %51 = vector.shape_cast %45 : vector<80x1xi1> to vector<80x1xi1>
    %52 = vector.broadcast %51 : vector<80x1xi1> to vector<80x32xi1>
    %53 = arith.select %52, %42, %50 : vector<80x32xi1>, vector<80x32xf32>
    %54 = arith.truncf %53 : vector<80x32xf32> to vector<80x32xbf16>
    %c10_28 = arith.constant 10 : index
    %c0_29 = arith.constant 0 : index
    %55 = vector.load %arg11[%c10_28, %c0_29] : memref<104x32xbf16, #tpu.memory_space<vmem>>, vector<80x32xbf16>
    tpu.vector_store %arg11[%c10_28, %c0_29], %54 {strides = array<i32>} : memref<104x32xbf16, #tpu.memory_space<vmem>>, vector<80x32xbf16>,
    %56 = vector.extract_strided_slice %54 {offsets = [10, 0], sizes = [10, 32], strides = [1, 1]} : vector<80x32xbf16> to vector<10x32xbf16>
    %c0_30 = arith.constant 0 : index
    %c0_31 = arith.constant 0 : index
    %57 = vector.load %arg11[%c0_30, %c0_31] : memref<104x32xbf16, #tpu.memory_space<vmem>>, vector<10x32xbf16>
    tpu.vector_store %arg11[%c0_30, %c0_31], %56 {strides = array<i32>} : memref<104x32xbf16, #tpu.memory_space<vmem>>, vector<10x32xbf16>,
    %58 = vector.extract_strided_slice %54 {offsets = [60, 0], sizes = [10, 32], strides = [1, 1]} : vector<80x32xbf16> to vector<10x32xbf16>
    %c90 = arith.constant 90 : index
    %c0_32 = arith.constant 0 : index
    %59 = vector.load %arg11[%c90, %c0_32] : memref<104x32xbf16, #tpu.memory_space<vmem>>, vector<10x32xbf16>
    tpu.vector_store %arg11[%c90, %c0_32], %58 {strides = array<i32>} : memref<104x32xbf16, #tpu.memory_space<vmem>>, vector<10x32xbf16>,
    %c0_33 = arith.constant 0 : index
    %c0_34 = arith.constant 0 : index
    %60 = vector.load %arg11[%c0_33, %c0_34] : memref<104x32xbf16, #tpu.memory_space<vmem>>, vector<80x32xbf16>
    %c1_35 = arith.constant 1 : index
    %c0_36 = arith.constant 0 : index
    %61 = vector.load %arg11[%c1_35, %c0_36] : memref<104x32xbf16, #tpu.memory_space<vmem>>, vector<80x32xbf16>
    %c2 = arith.constant 2 : index
    %c0_37 = arith.constant 0 : index
    %62 = vector.load %arg11[%c2, %c0_37] : memref<104x32xbf16, #tpu.memory_space<vmem>>, vector<80x32xbf16>
    %63 = tpu.concatenate %60, %61, %62 in 1 : vector<80x32xbf16>, vector<80x32xbf16>, vector<80x32xbf16> -> vector<80x96xbf16>
    %c0_38 = arith.constant 0 : index
    %c0_39 = arith.constant 0 : index
    %c0_40 = arith.constant 0 : index
    %64 = vector.load %arg4[%c0_38, %c0_39, %c0_40] : memref<3x96x32xbf16, #tpu.memory_space<vmem>>, vector<1x96x32xbf16>
    %65 = vector.shape_cast %64 : vector<1x96x32xbf16> to vector<96x32xbf16>
    %cst_41 = arith.constant dense<0.000000e+00> : vector<80x32xf32>
    %66 = tpu.matmul %63, %65, %cst_41 {dimension_numbers = #tpu.dot_dimension_numbers<[1], [0], [0], [1], [0, 0, 1, 1], [], []>} : vector<80x96xbf16>, vector<96x32xbf16>, vector<80x32xf32> -> vector<80x32xf32>
    %c10_42 = arith.constant 10 : index
    %c0_43 = arith.constant 0 : index
    %67 = vector.load %arg11[%c10_42, %c0_43] : memref<104x32xbf16, #tpu.memory_space<vmem>>, vector<80x32xbf16>
    %c11_44 = arith.constant 11 : index
    %c0_45 = arith.constant 0 : index
    %68 = vector.load %arg11[%c11_44, %c0_45] : memref<104x32xbf16, #tpu.memory_space<vmem>>, vector<80x32xbf16>
    %c12 = arith.constant 12 : index
    %c0_46 = arith.constant 0 : index
    %69 = vector.load %arg11[%c12, %c0_46] : memref<104x32xbf16, #tpu.memory_space<vmem>>, vector<80x32xbf16>
    %70 = tpu.concatenate %67, %68, %69 in 1 : vector<80x32xbf16>, vector<80x32xbf16>, vector<80x32xbf16> -> vector<80x96xbf16>
    %c1_47 = arith.constant 1 : index
    %c0_48 = arith.constant 0 : index
    %c0_49 = arith.constant 0 : index
    %71 = vector.load %arg4[%c1_47, %c0_48, %c0_49] : memref<3x96x32xbf16, #tpu.memory_space<vmem>>, vector<1x96x32xbf16>
    %72 = vector.shape_cast %71 : vector<1x96x32xbf16> to vector<96x32xbf16>
    %cst_50 = arith.constant dense<0.000000e+00> : vector<80x32xf32>
    %73 = tpu.matmul %70, %72, %cst_50 {dimension_numbers = #tpu.dot_dimension_numbers<[1], [0], [0], [1], [0, 0, 1, 1], [], []>} : vector<80x96xbf16>, vector<96x32xbf16>, vector<80x32xf32> -> vector<80x32xf32>
    %74 = arith.addf %66, %73 : vector<80x32xf32>
    %c20 = arith.constant 20 : index
    %c0_51 = arith.constant 0 : index
    %75 = vector.load %arg11[%c20, %c0_51] : memref<104x32xbf16, #tpu.memory_space<vmem>>, vector<80x32xbf16>
    %c21 = arith.constant 21 : index
    %c0_52 = arith.constant 0 : index
    %76 = vector.load %arg11[%c21, %c0_52] : memref<104x32xbf16, #tpu.memory_space<vmem>>, vector<80x32xbf16>
    %c22 = arith.constant 22 : index
    %c0_53 = arith.constant 0 : index
    %77 = vector.load %arg11[%c22, %c0_53] : memref<104x32xbf16, #tpu.memory_space<vmem>>, vector<80x32xbf16>
    %78 = tpu.concatenate %75, %76, %77 in 1 : vector<80x32xbf16>, vector<80x32xbf16>, vector<80x32xbf16> -> vector<80x96xbf16>
    %c2_54 = arith.constant 2 : index
    %c0_55 = arith.constant 0 : index
    %c0_56 = arith.constant 0 : index
    %79 = vector.load %arg4[%c2_54, %c0_55, %c0_56] : memref<3x96x32xbf16, #tpu.memory_space<vmem>>, vector<1x96x32xbf16>
    %80 = vector.shape_cast %79 : vector<1x96x32xbf16> to vector<96x32xbf16>
    %cst_57 = arith.constant dense<0.000000e+00> : vector<80x32xf32>
    %81 = tpu.matmul %78, %80, %cst_57 {dimension_numbers = #tpu.dot_dimension_numbers<[1], [0], [0], [1], [0, 0, 1, 1], [], []>} : vector<80x96xbf16>, vector<96x32xbf16>, vector<80x32xf32> -> vector<80x32xf32>
    %82 = arith.addf %74, %81 : vector<80x32xf32>
    %c0_58 = arith.constant 0 : index
    %c0_59 = arith.constant 0 : index
    %83 = vector.load %arg5[%c0_58, %c0_59] : memref<1x32xf32, #tpu.memory_space<vmem>>, vector<1x32xf32>
    %84 = vector.broadcast %83 : vector<1x32xf32> to vector<80x32xf32>
    %85 = arith.addf %82, %84 : vector<80x32xf32>
    %cst_60 = arith.constant 0.00999999977 : f32
    %86 = vector.broadcast %cst_60 : f32 to vector<80x32xf32>
    %87 = arith.mulf %86, %85 : vector<80x32xf32>
    %88 = arith.maximumf %85, %87 : vector<80x32xf32>
    %89 = tpu.iota {dimensions = array<i32: 0>} : vector<80x1xi32>
    %c10_i32_61 = arith.constant 10 : i32
    %c0_i32_62 = arith.constant 0 : i32
    %90 = arith.cmpi eq, %c10_i32_61, %c0_i32_62 : i32
    %c1_i32_63 = arith.constant 1 : i32
    %91 = arith.select %90, %c1_i32_63, %c10_i32_61 : i32
    %92 = vector.broadcast %91 : i32 to vector<80x1xi32>
    %93 = arith.remsi %89, %92 : vector<80x1xi32>
    %c0_i32_64 = arith.constant 0 : i32
    %94 = vector.broadcast %c0_i32_64 : i32 to vector<80x1xi32>
    %95 = arith.cmpi ne, %93, %94 : vector<80x1xi32>
    %c0_i32_65 = arith.constant 0 : i32
    %96 = vector.broadcast %c0_i32_65 : i32 to vector<80x1xi32>
    %97 = arith.cmpi slt, %93, %96 : vector<80x1xi32>
    %c0_i32_66 = arith.constant 0 : i32
    %98 = arith.cmpi slt, %91, %c0_i32_66 : i32
    %99 = vector.broadcast %98 : i1 to vector<80x1xi1>
    %100 = vector.broadcast %99 : vector<80x1xi1> to vector<80x1xi1>
    %101 = arith.xori %97, %100 : vector<80x1xi1>
    %102 = arith.andi %101, %95 : vector<80x1xi1>
    %103 = vector.broadcast %91 : i32 to vector<80x1xi32>
    %104 = arith.addi %93, %103 : vector<80x1xi32>
    %105 = arith.select %102, %104, %93 : vector<80x1xi1>, vector<80x1xi32>
    %c1_i32_67 = arith.constant 1 : i32
    %106 = tpu.dynamic_rotate %88 by %c1_i32_67 dim 0 : vector<80x32xf32>, i32 -> vector<80x32xf32>
    %c79_i32_68 = arith.constant 79 : i32
    %107 = tpu.dynamic_rotate %88 by %c79_i32_68 dim 0 : vector<80x32xf32>, i32 -> vector<80x32xf32>
    %c3_i32_69 = arith.constant 3 : i32
    %108 = tpu.dynamic_rotate %88 by %c3_i32_69 dim 0 : vector<80x32xf32>, i32 -> vector<80x32xf32>
    %c0_i32_70 = arith.constant 0 : i32
    %109 = vector.broadcast %c0_i32_70 : i32 to vector<80x1xi32>
    %110 = arith.cmpi eq, %105, %109 : vector<80x1xi32>
    %c9_i32_71 = arith.constant 9 : i32
    %111 = vector.broadcast %c9_i32_71 : i32 to vector<80x1xi32>
    %112 = arith.cmpi eq, %105, %111 : vector<80x1xi32>
    %113 = vector.shape_cast %112 : vector<80x1xi1> to vector<80x1xi1>
    %114 = vector.broadcast %113 : vector<80x1xi1> to vector<80x32xi1>
    %115 = arith.select %114, %108, %106 : vector<80x32xi1>, vector<80x32xf32>
    %116 = vector.shape_cast %110 : vector<80x1xi1> to vector<80x1xi1>
    %117 = vector.broadcast %116 : vector<80x1xi1> to vector<80x32xi1>
    %118 = arith.select %117, %107, %115 : vector<80x32xi1>, vector<80x32xf32>
    %119 = arith.truncf %118 : vector<80x32xf32> to vector<80x32xbf16>
    %c10_72 = arith.constant 10 : index
    %c0_73 = arith.constant 0 : index
    %120 = vector.load %arg12[%c10_72, %c0_73] : memref<104x32xbf16, #tpu.memory_space<vmem>>, vector<80x32xbf16>
    tpu.vector_store %arg12[%c10_72, %c0_73], %119 {strides = array<i32>} : memref<104x32xbf16, #tpu.memory_space<vmem>>, vector<80x32xbf16>,
    %121 = vector.extract_strided_slice %119 {offsets = [10, 0], sizes = [10, 32], strides = [1, 1]} : vector<80x32xbf16> to vector<10x32xbf16>
    %c0_74 = arith.constant 0 : index
    %c0_75 = arith.constant 0 : index
    %122 = vector.load %arg12[%c0_74, %c0_75] : memref<104x32xbf16, #tpu.memory_space<vmem>>, vector<10x32xbf16>
    tpu.vector_store %arg12[%c0_74, %c0_75], %121 {strides = array<i32>} : memref<104x32xbf16, #tpu.memory_space<vmem>>, vector<10x32xbf16>,
    %123 = vector.extract_strided_slice %119 {offsets = [60, 0], sizes = [10, 32], strides = [1, 1]} : vector<80x32xbf16> to vector<10x32xbf16>
    %c90_76 = arith.constant 90 : index
    %c0_77 = arith.constant 0 : index
    %124 = vector.load %arg12[%c90_76, %c0_77] : memref<104x32xbf16, #tpu.memory_space<vmem>>, vector<10x32xbf16>
    tpu.vector_store %arg12[%c90_76, %c0_77], %123 {strides = array<i32>} : memref<104x32xbf16, #tpu.memory_space<vmem>>, vector<10x32xbf16>,
    %c0_78 = arith.constant 0 : index
    %c0_79 = arith.constant 0 : index
    %125 = vector.load %arg12[%c0_78, %c0_79] : memref<104x32xbf16, #tpu.memory_space<vmem>>, vector<80x32xbf16>
    %c1_80 = arith.constant 1 : index
    %c0_81 = arith.constant 0 : index
    %126 = vector.load %arg12[%c1_80, %c0_81] : memref<104x32xbf16, #tpu.memory_space<vmem>>, vector<80x32xbf16>
    %c2_82 = arith.constant 2 : index
    %c0_83 = arith.constant 0 : index
    %127 = vector.load %arg12[%c2_82, %c0_83] : memref<104x32xbf16, #tpu.memory_space<vmem>>, vector<80x32xbf16>
    %128 = tpu.concatenate %125, %126, %127 in 1 : vector<80x32xbf16>, vector<80x32xbf16>, vector<80x32xbf16> -> vector<80x96xbf16>
    %c0_84 = arith.constant 0 : index
    %c0_85 = arith.constant 0 : index
    %c0_86 = arith.constant 0 : index
    %129 = vector.load %arg6[%c0_84, %c0_85, %c0_86] : memref<3x96x32xbf16, #tpu.memory_space<vmem>>, vector<1x96x32xbf16>
    %130 = vector.shape_cast %129 : vector<1x96x32xbf16> to vector<96x32xbf16>
    %cst_87 = arith.constant dense<0.000000e+00> : vector<80x32xf32>
    %131 = tpu.matmul %128, %130, %cst_87 {dimension_numbers = #tpu.dot_dimension_numbers<[1], [0], [0], [1], [0, 0, 1, 1], [], []>} : vector<80x96xbf16>, vector<96x32xbf16>, vector<80x32xf32> -> vector<80x32xf32>
    %c10_88 = arith.constant 10 : index
    %c0_89 = arith.constant 0 : index
    %132 = vector.load %arg12[%c10_88, %c0_89] : memref<104x32xbf16, #tpu.memory_space<vmem>>, vector<80x32xbf16>
    %c11_90 = arith.constant 11 : index
    %c0_91 = arith.constant 0 : index
    %133 = vector.load %arg12[%c11_90, %c0_91] : memref<104x32xbf16, #tpu.memory_space<vmem>>, vector<80x32xbf16>
    %c12_92 = arith.constant 12 : index
    %c0_93 = arith.constant 0 : index
    %134 = vector.load %arg12[%c12_92, %c0_93] : memref<104x32xbf16, #tpu.memory_space<vmem>>, vector<80x32xbf16>
    %135 = tpu.concatenate %132, %133, %134 in 1 : vector<80x32xbf16>, vector<80x32xbf16>, vector<80x32xbf16> -> vector<80x96xbf16>
    %c1_94 = arith.constant 1 : index
    %c0_95 = arith.constant 0 : index
    %c0_96 = arith.constant 0 : index
    %136 = vector.load %arg6[%c1_94, %c0_95, %c0_96] : memref<3x96x32xbf16, #tpu.memory_space<vmem>>, vector<1x96x32xbf16>
    %137 = vector.shape_cast %136 : vector<1x96x32xbf16> to vector<96x32xbf16>
    %cst_97 = arith.constant dense<0.000000e+00> : vector<80x32xf32>
    %138 = tpu.matmul %135, %137, %cst_97 {dimension_numbers = #tpu.dot_dimension_numbers<[1], [0], [0], [1], [0, 0, 1, 1], [], []>} : vector<80x96xbf16>, vector<96x32xbf16>, vector<80x32xf32> -> vector<80x32xf32>
    %139 = arith.addf %131, %138 : vector<80x32xf32>
    %c20_98 = arith.constant 20 : index
    %c0_99 = arith.constant 0 : index
    %140 = vector.load %arg12[%c20_98, %c0_99] : memref<104x32xbf16, #tpu.memory_space<vmem>>, vector<80x32xbf16>
    %c21_100 = arith.constant 21 : index
    %c0_101 = arith.constant 0 : index
    %141 = vector.load %arg12[%c21_100, %c0_101] : memref<104x32xbf16, #tpu.memory_space<vmem>>, vector<80x32xbf16>
    %c22_102 = arith.constant 22 : index
    %c0_103 = arith.constant 0 : index
    %142 = vector.load %arg12[%c22_102, %c0_103] : memref<104x32xbf16, #tpu.memory_space<vmem>>, vector<80x32xbf16>
    %143 = tpu.concatenate %140, %141, %142 in 1 : vector<80x32xbf16>, vector<80x32xbf16>, vector<80x32xbf16> -> vector<80x96xbf16>
    %c2_104 = arith.constant 2 : index
    %c0_105 = arith.constant 0 : index
    %c0_106 = arith.constant 0 : index
    %144 = vector.load %arg6[%c2_104, %c0_105, %c0_106] : memref<3x96x32xbf16, #tpu.memory_space<vmem>>, vector<1x96x32xbf16>
    %145 = vector.shape_cast %144 : vector<1x96x32xbf16> to vector<96x32xbf16>
    %cst_107 = arith.constant dense<0.000000e+00> : vector<80x32xf32>
    %146 = tpu.matmul %143, %145, %cst_107 {dimension_numbers = #tpu.dot_dimension_numbers<[1], [0], [0], [1], [0, 0, 1, 1], [], []>} : vector<80x96xbf16>, vector<96x32xbf16>, vector<80x32xf32> -> vector<80x32xf32>
    %147 = arith.addf %139, %146 : vector<80x32xf32>
    %c0_108 = arith.constant 0 : index
    %c0_109 = arith.constant 0 : index
    %148 = vector.load %arg7[%c0_108, %c0_109] : memref<1x32xf32, #tpu.memory_space<vmem>>, vector<1x32xf32>
    %149 = vector.broadcast %148 : vector<1x32xf32> to vector<80x32xf32>
    %150 = arith.addf %147, %149 : vector<80x32xf32>
    %cst_110 = arith.constant 0.00999999977 : f32
    %151 = vector.broadcast %cst_110 : f32 to vector<80x32xf32>
    %152 = arith.mulf %151, %150 : vector<80x32xf32>
    %153 = arith.maximumf %150, %152 : vector<80x32xf32>
    %cst_111 = arith.constant 2.000000e+00 : f32
    %154 = vector.broadcast %cst_111 : f32 to vector<80x32xf32>
    %155 = arith.mulf %154, %23 : vector<80x32xf32>
    %156 = arith.addf %153, %155 : vector<80x32xf32>
    %157 = tpu.iota {dimensions = array<i32: 0>} : vector<80x1xi32>
    %c10_i32_112 = arith.constant 10 : i32
    %c0_i32_113 = arith.constant 0 : i32
    %158 = arith.cmpi eq, %c10_i32_112, %c0_i32_113 : i32
    %c1_i32_114 = arith.constant 1 : i32
    %159 = arith.select %158, %c1_i32_114, %c10_i32_112 : i32
    %160 = vector.broadcast %159 : i32 to vector<80x1xi32>
    %161 = arith.remsi %157, %160 : vector<80x1xi32>
    %c0_i32_115 = arith.constant 0 : i32
    %162 = vector.broadcast %c0_i32_115 : i32 to vector<80x1xi32>
    %163 = arith.cmpi ne, %161, %162 : vector<80x1xi32>
    %c0_i32_116 = arith.constant 0 : i32
    %164 = vector.broadcast %c0_i32_116 : i32 to vector<80x1xi32>
    %165 = arith.cmpi slt, %161, %164 : vector<80x1xi32>
    %c0_i32_117 = arith.constant 0 : i32
    %166 = arith.cmpi slt, %159, %c0_i32_117 : i32
    %167 = vector.broadcast %166 : i1 to vector<80x1xi1>
    %168 = vector.broadcast %167 : vector<80x1xi1> to vector<80x1xi1>
    %169 = arith.xori %165, %168 : vector<80x1xi1>
    %170 = arith.andi %169, %163 : vector<80x1xi1>
    %171 = vector.broadcast %159 : i32 to vector<80x1xi32>
    %172 = arith.addi %161, %171 : vector<80x1xi32>
    %173 = arith.select %170, %172, %161 : vector<80x1xi1>, vector<80x1xi32>
    %c1_i32_118 = arith.constant 1 : i32
    %174 = tpu.dynamic_rotate %156 by %c1_i32_118 dim 0 : vector<80x32xf32>, i32 -> vector<80x32xf32>
    %c79_i32_119 = arith.constant 79 : i32
    %175 = tpu.dynamic_rotate %156 by %c79_i32_119 dim 0 : vector<80x32xf32>, i32 -> vector<80x32xf32>
    %c3_i32_120 = arith.constant 3 : i32
    %176 = tpu.dynamic_rotate %156 by %c3_i32_120 dim 0 : vector<80x32xf32>, i32 -> vector<80x32xf32>
    %c0_i32_121 = arith.constant 0 : i32
    %177 = vector.broadcast %c0_i32_121 : i32 to vector<80x1xi32>
    %178 = arith.cmpi eq, %173, %177 : vector<80x1xi32>
    %c9_i32_122 = arith.constant 9 : i32
    %179 = vector.broadcast %c9_i32_122 : i32 to vector<80x1xi32>
    %180 = arith.cmpi eq, %173, %179 : vector<80x1xi32>
    %181 = vector.shape_cast %180 : vector<80x1xi1> to vector<80x1xi1>
    %182 = vector.broadcast %181 : vector<80x1xi1> to vector<80x32xi1>
    %183 = arith.select %182, %176, %174 : vector<80x32xi1>, vector<80x32xf32>
    %184 = vector.shape_cast %178 : vector<80x1xi1> to vector<80x1xi1>
    %185 = vector.broadcast %184 : vector<80x1xi1> to vector<80x32xi1>
    %186 = arith.select %185, %175, %183 : vector<80x32xi1>, vector<80x32xf32>
    %187 = arith.truncf %186 : vector<80x32xf32> to vector<80x32xbf16>
    %c10_123 = arith.constant 10 : index
    %c0_124 = arith.constant 0 : index
    %188 = vector.load %arg13[%c10_123, %c0_124] : memref<104x32xbf16, #tpu.memory_space<vmem>>, vector<80x32xbf16>
    tpu.vector_store %arg13[%c10_123, %c0_124], %187 {strides = array<i32>} : memref<104x32xbf16, #tpu.memory_space<vmem>>, vector<80x32xbf16>,
    %189 = vector.extract_strided_slice %187 {offsets = [10, 0], sizes = [10, 32], strides = [1, 1]} : vector<80x32xbf16> to vector<10x32xbf16>
    %c0_125 = arith.constant 0 : index
    %c0_126 = arith.constant 0 : index
    %190 = vector.load %arg13[%c0_125, %c0_126] : memref<104x32xbf16, #tpu.memory_space<vmem>>, vector<10x32xbf16>
    tpu.vector_store %arg13[%c0_125, %c0_126], %189 {strides = array<i32>} : memref<104x32xbf16, #tpu.memory_space<vmem>>, vector<10x32xbf16>,
    %191 = vector.extract_strided_slice %187 {offsets = [60, 0], sizes = [10, 32], strides = [1, 1]} : vector<80x32xbf16> to vector<10x32xbf16>
    %c90_127 = arith.constant 90 : index
    %c0_128 = arith.constant 0 : index
    %192 = vector.load %arg13[%c90_127, %c0_128] : memref<104x32xbf16, #tpu.memory_space<vmem>>, vector<10x32xbf16>
    tpu.vector_store %arg13[%c90_127, %c0_128], %191 {strides = array<i32>} : memref<104x32xbf16, #tpu.memory_space<vmem>>, vector<10x32xbf16>,
    %c0_129 = arith.constant 0 : index
    %c0_130 = arith.constant 0 : index
    %193 = vector.load %arg13[%c0_129, %c0_130] : memref<104x32xbf16, #tpu.memory_space<vmem>>, vector<80x32xbf16>
    %c1_131 = arith.constant 1 : index
    %c0_132 = arith.constant 0 : index
    %194 = vector.load %arg13[%c1_131, %c0_132] : memref<104x32xbf16, #tpu.memory_space<vmem>>, vector<80x32xbf16>
    %c2_133 = arith.constant 2 : index
    %c0_134 = arith.constant 0 : index
    %195 = vector.load %arg13[%c2_133, %c0_134] : memref<104x32xbf16, #tpu.memory_space<vmem>>, vector<80x32xbf16>
    %196 = tpu.concatenate %193, %194, %195 in 1 : vector<80x32xbf16>, vector<80x32xbf16>, vector<80x32xbf16> -> vector<80x96xbf16>
    %c0_135 = arith.constant 0 : index
    %c0_136 = arith.constant 0 : index
    %c0_137 = arith.constant 0 : index
    %197 = vector.load %arg8[%c0_135, %c0_136, %c0_137] : memref<3x96x128xbf16, #tpu.memory_space<vmem>>, vector<1x96x128xbf16>
    %198 = vector.shape_cast %197 : vector<1x96x128xbf16> to vector<96x128xbf16>
    %cst_138 = arith.constant dense<0.000000e+00> : vector<80x128xf32>
    %199 = tpu.matmul %196, %198, %cst_138 {dimension_numbers = #tpu.dot_dimension_numbers<[1], [0], [0], [1], [0, 0, 1, 1], [], []>} : vector<80x96xbf16>, vector<96x128xbf16>, vector<80x128xf32> -> vector<80x128xf32>
    %c10_139 = arith.constant 10 : index
    %c0_140 = arith.constant 0 : index
    %200 = vector.load %arg13[%c10_139, %c0_140] : memref<104x32xbf16, #tpu.memory_space<vmem>>, vector<80x32xbf16>
    %c11_141 = arith.constant 11 : index
    %c0_142 = arith.constant 0 : index
    %201 = vector.load %arg13[%c11_141, %c0_142] : memref<104x32xbf16, #tpu.memory_space<vmem>>, vector<80x32xbf16>
    %c12_143 = arith.constant 12 : index
    %c0_144 = arith.constant 0 : index
    %202 = vector.load %arg13[%c12_143, %c0_144] : memref<104x32xbf16, #tpu.memory_space<vmem>>, vector<80x32xbf16>
    %203 = tpu.concatenate %200, %201, %202 in 1 : vector<80x32xbf16>, vector<80x32xbf16>, vector<80x32xbf16> -> vector<80x96xbf16>
    %c1_145 = arith.constant 1 : index
    %c0_146 = arith.constant 0 : index
    %c0_147 = arith.constant 0 : index
    %204 = vector.load %arg8[%c1_145, %c0_146, %c0_147] : memref<3x96x128xbf16, #tpu.memory_space<vmem>>, vector<1x96x128xbf16>
    %205 = vector.shape_cast %204 : vector<1x96x128xbf16> to vector<96x128xbf16>
    %cst_148 = arith.constant dense<0.000000e+00> : vector<80x128xf32>
    %206 = tpu.matmul %203, %205, %cst_148 {dimension_numbers = #tpu.dot_dimension_numbers<[1], [0], [0], [1], [0, 0, 1, 1], [], []>} : vector<80x96xbf16>, vector<96x128xbf16>, vector<80x128xf32> -> vector<80x128xf32>
    %207 = arith.addf %199, %206 : vector<80x128xf32>
    %c20_149 = arith.constant 20 : index
    %c0_150 = arith.constant 0 : index
    %208 = vector.load %arg13[%c20_149, %c0_150] : memref<104x32xbf16, #tpu.memory_space<vmem>>, vector<80x32xbf16>
    %c21_151 = arith.constant 21 : index
    %c0_152 = arith.constant 0 : index
    %209 = vector.load %arg13[%c21_151, %c0_152] : memref<104x32xbf16, #tpu.memory_space<vmem>>, vector<80x32xbf16>
    %c22_153 = arith.constant 22 : index
    %c0_154 = arith.constant 0 : index
    %210 = vector.load %arg13[%c22_153, %c0_154] : memref<104x32xbf16, #tpu.memory_space<vmem>>, vector<80x32xbf16>
    %211 = tpu.concatenate %208, %209, %210 in 1 : vector<80x32xbf16>, vector<80x32xbf16>, vector<80x32xbf16> -> vector<80x96xbf16>
    %c2_155 = arith.constant 2 : index
    %c0_156 = arith.constant 0 : index
    %c0_157 = arith.constant 0 : index
    %212 = vector.load %arg8[%c2_155, %c0_156, %c0_157] : memref<3x96x128xbf16, #tpu.memory_space<vmem>>, vector<1x96x128xbf16>
    %213 = vector.shape_cast %212 : vector<1x96x128xbf16> to vector<96x128xbf16>
    %cst_158 = arith.constant dense<0.000000e+00> : vector<80x128xf32>
    %214 = tpu.matmul %211, %213, %cst_158 {dimension_numbers = #tpu.dot_dimension_numbers<[1], [0], [0], [1], [0, 0, 1, 1], [], []>} : vector<80x96xbf16>, vector<96x128xbf16>, vector<80x128xf32> -> vector<80x128xf32>
    %215 = arith.addf %207, %214 : vector<80x128xf32>
    %c0_159 = arith.constant 0 : index
    %c0_160 = arith.constant 0 : index
    %216 = vector.load %arg9[%c0_159, %c0_160] : memref<1x128xf32, #tpu.memory_space<vmem>>, vector<1x128xf32>
    %217 = vector.broadcast %216 : vector<1x128xf32> to vector<80x128xf32>
    %218 = arith.addf %215, %217 : vector<80x128xf32>
    %c0_161 = arith.constant 0 : index
    %c0_162 = arith.constant 0 : index
    %c0_163 = arith.constant 0 : index
    %219 = vector.load %arg10[%c0_161, %c0_162, %c0_163] : memref<1x80x128xf32, #tpu.memory_space<vmem>>, vector<1x80x128xf32>
    %220 = vector.shape_cast %219 : vector<1x80x128xf32> to vector<80x128xf32>
    %221 = vector.shape_cast %218 : vector<80x128xf32> to vector<1x80x128xf32>
    tpu.vector_store %arg10[%c0_161, %c0_162, %c0_163], %221 {strides = array<i32>} : memref<1x80x128xf32, #tpu.memory_space<vmem>>, vector<1x80x128xf32>,
    return
  }
  func.func @transform_0(%arg0: i32) -> (i32, i32, i32) {
    %c0_i32 = arith.constant 0 : i32
    %c0_i32_0 = arith.constant 0 : i32
    %c0_i32_1 = arith.constant 0 : i32
    return %arg0, %c0_i32, %c0_i32_0 : i32, i32, i32
  }
  func.func @transform_1(%arg0: i32) -> (i32, i32, i32) {
    %c0_i32 = arith.constant 0 : i32
    %c0_i32_0 = arith.constant 0 : i32
    %c0_i32_1 = arith.constant 0 : i32
    %c0_i32_2 = arith.constant 0 : i32
    return %c0_i32, %c0_i32_0, %c0_i32_1 : i32, i32, i32
  }
  func.func @transform_2(%arg0: i32) -> (i32, i32) {
    %c0_i32 = arith.constant 0 : i32
    %c0_i32_0 = arith.constant 0 : i32
    %c0_i32_1 = arith.constant 0 : i32
    return %c0_i32, %c0_i32_0 : i32, i32
  }
  func.func @transform_3(%arg0: i32) -> (i32, i32, i32) {
    %c0_i32 = arith.constant 0 : i32
    %c0_i32_0 = arith.constant 0 : i32
    %c0_i32_1 = arith.constant 0 : i32
    %c0_i32_2 = arith.constant 0 : i32
    return %c0_i32, %c0_i32_0, %c0_i32_1 : i32, i32, i32
  }
  func.func @transform_4(%arg0: i32) -> (i32, i32) {
    %c0_i32 = arith.constant 0 : i32
    %c0_i32_0 = arith.constant 0 : i32
    %c0_i32_1 = arith.constant 0 : i32
    return %c0_i32, %c0_i32_0 : i32, i32
  }
  func.func @transform_5(%arg0: i32) -> (i32, i32, i32) {
    %c0_i32 = arith.constant 0 : i32
    %c0_i32_0 = arith.constant 0 : i32
    %c0_i32_1 = arith.constant 0 : i32
    %c0_i32_2 = arith.constant 0 : i32
    return %c0_i32, %c0_i32_0, %c0_i32_1 : i32, i32, i32
  }
  func.func @transform_6(%arg0: i32) -> (i32, i32) {
    %c0_i32 = arith.constant 0 : i32
    %c0_i32_0 = arith.constant 0 : i32
    %c0_i32_1 = arith.constant 0 : i32
    return %c0_i32, %c0_i32_0 : i32, i32
  }
  func.func @transform_7(%arg0: i32) -> (i32, i32, i32) {
    %c0_i32 = arith.constant 0 : i32
    %c0_i32_0 = arith.constant 0 : i32
    %c0_i32_1 = arith.constant 0 : i32
    %c0_i32_2 = arith.constant 0 : i32
    return %c0_i32, %c0_i32_0, %c0_i32_1 : i32, i32, i32
  }
  func.func @transform_8(%arg0: i32) -> (i32, i32) {
    %c0_i32 = arith.constant 0 : i32
    %c0_i32_0 = arith.constant 0 : i32
    %c0_i32_1 = arith.constant 0 : i32
    return %c0_i32, %c0_i32_0 : i32, i32
  }
  func.func @transform_9(%arg0: i32) -> (i32, i32, i32) {
    %c0_i32 = arith.constant 0 : i32
    %c0_i32_0 = arith.constant 0 : i32
    %c0_i32_1 = arith.constant 0 : i32
    return %arg0, %c0_i32, %c0_i32_0 : i32, i32, i32
  }
}

</mosaic_0001>

<llo_original>
// kernel: bicubic_pp_forward.1
$region0: #{bicubic_pp_forward.1}
  #allocation0 [shape = 'u32[]', space=smem, size = 0x4, offset = 0x4, fixed_abs, tag = 'smem constant byte address 0x4 - core index']
  #allocation1 [shape = 'u32[144,128]{1,0:T(1,128)}', space=vmem, size = 0x12000, scoped, tag = 'internal scratch']
  #allocation2 [shape = 'bf16[104,32]{1,0:T(8,128)(2,1)}', space=vmem, size = 0x6800, scoped, tag = 'scratch operand']
  #allocation3 [shape = 'bf16[104,32]{1,0:T(8,128)(2,1)}', space=vmem, size = 0x6800, scoped, tag = 'scratch operand']
  #allocation4 [shape = 'bf16[104,32]{1,0:T(8,128)(2,1)}', space=vmem, size = 0x6800, scoped, tag = 'scratch operand']
  %s0 = inlined_call_operand.vmem [shape: bf16[2,96,12], index: 0, kind: input, shape index: {}]
  %s1 = inlined_call_operand.vmem [shape: bf16[2,24,32], index: 1, kind: input, shape index: {}]
  %s2 = inlined_call_operand.vmem [shape: f32[1,32], index: 2, kind: input, shape index: {}]
  %s3 = inlined_call_operand.vmem [shape: bf16[3,96,32], index: 3, kind: input, shape index: {}]
  %s4 = inlined_call_operand.vmem [shape: f32[1,32], index: 4, kind: input, shape index: {}]
  %s5 = inlined_call_operand.vmem [shape: bf16[3,96,32], index: 5, kind: input, shape index: {}]
  %s6 = inlined_call_operand.vmem [shape: f32[1,32], index: 6, kind: input, shape index: {}]
  %s7 = inlined_call_operand.vmem [shape: bf16[3,96,128], index: 7, kind: input, shape index: {}]
  %s8 = inlined_call_operand.vmem [shape: f32[1,128], index: 8, kind: input, shape index: {}]
  %s9 = inlined_call_operand.vmem [shape: f32[2,80,128], index: 9, kind: output, shape index: {}]
  %s10 = sld [smem:[#allocation0]]
  $region69: #{bicubic_pp_forward.1} parent=0
    _
  %s12 = ssub.s32 1, %s10
  %s13 = scalar_select 0, %s12, %s10
  loop: start=0, step=1, limit=4
  $region2: #{bicubic_pp_forward.1} parent=0 // loop_pre_header
    _
  $region3: #{bicubic_pp_forward.1} parent=0 // loop_header
    %s15 = sphi 0, %s19
    %p16 = scmp.ge.s32.totalorder %s15, 4
    %s25 = sphi 0, %s27
    %s28 = sphi 0, %s25
    %s29 = sphi 0, %s28
    %s45 = sphi 0, %s29
    %s49 = sphi 0, %s49
    %s51 = sphi 0, %s49
    %s52 = sphi 0, %s51
    %s66 = sphi 0, %s52
    %s70 = sphi 0, %s70
    %s72 = sphi 0, %s70
    %s73 = sphi 0, %s72
    %s87 = sphi 0, %s73
    %s91 = sphi 0, %s91
    %s93 = sphi 0, %s91
    %s94 = sphi 0, %s93
    %s108 = sphi 0, %s94
    %s112 = sphi 0, %s112
    %s114 = sphi 0, %s112
    %s115 = sphi 0, %s114
    %s129 = sphi 0, %s115
    %s133 = sphi 0, %s133
    %s135 = sphi 0, %s133
    %s136 = sphi 0, %s135
    %s150 = sphi 0, %s136
    %s154 = sphi 0, %s154
    %s156 = sphi 0, %s154
    %s157 = sphi 0, %s156
    %s171 = sphi 0, %s157
    %s175 = sphi 0, %s175
    %s177 = sphi 0, %s175
    %s178 = sphi 0, %s177
    %s192 = sphi 0, %s178
    %s196 = sphi 0, %s196
    %s198 = sphi 0, %s196
    %s199 = sphi 0, %s198
    %s213 = sphi 0, %s199
    %s219 = sphi 0, %s221
    %s222 = sphi 0, %s219
    %s223 = sphi 0, %s222
    %s239 = sphi 0, %s223
  $region4: #{bicubic_pp_forward.1} parent=0 // loop_header_branch
    %18 = sbr.rel (%p16) target = $region8
  $region5: #{bicubic_pp_forward.1} parent=0 // loop_body
    %s20 = ssub.s32 %s15, 1
    %s21 = ssub.s32 %s15, 2
    %s22 = sadd.s32 %s15, 1
    %s23 = ssub.s32 %s15, %s22
    %p24 = scmp.eq.s32.totalorder %s23, 0
    %s26 = sadd.s32 %s25, 1
    %s27 = scalar_select %p24, %s25, %s26
    %p30 = pneg %p24
    %p31 = scmp.eq.s32.totalorder %s15, 1
    %p32 = por %p30, %p31
    %p33 = scmp.ne.s32.totalorder %s25, %s28
    %p34 = scmp.eq.s32.totalorder %s15, 0
    %p35 = por %p33, %p34
    %p36 = scmp.ne.s32.totalorder %s25, %s28
    %p37 = scmp.eq.s32.totalorder %s20, 1
    %p38 = por %p36, %p37
    %p39 = scmp.ne.s32.totalorder %s28, %s29
    %p40 = scmp.eq.s32.totalorder %s20, 0
    %p41 = por %p39, %p40
    %p42 = scmp.ne.s32.totalorder %s28, %s29
    %p43 = scmp.eq.s32.totalorder %s21, 1
    %p44 = por %p42, %p43
    %p46 = scmp.ne.s32.totalorder %s29, %s45
    %p47 = scmp.eq.s32.totalorder %s21, 0
    %p48 = por %p46, %p47
    %s50 = sadd.s32 %s49, 1
    %p53 = scmp.eq.s32.totalorder %s15, 1
    %p54 = scmp.ne.s32.totalorder %s49, %s51
    %p55 = scmp.eq.s32.totalorder %s15, 0
    %p56 = por %p54, %p55
    %p57 = scmp.ne.s32.totalorder %s49, %s51
    %p58 = scmp.eq.s32.totalorder %s20, 1
    %p59 = por %p57, %p58
    %p60 = scmp.ne.s32.totalorder %s51, %s52
    %p61 = scmp.eq.s32.totalorder %s20, 0
    %p62 = por %p60, %p61
    %p63 = scmp.ne.s32.totalorder %s51, %s52
    %p64 = scmp.eq.s32.totalorder %s21, 1
    %p65 = por %p63, %p64
    %p67 = scmp.ne.s32.totalorder %s52, %s66
    %p68 = scmp.eq.s32.totalorder %s21, 0
    %p69 = por %p67, %p68
    %s71 = sadd.s32 %s70, 1
    %p74 = scmp.eq.s32.totalorder %s15, 1
    %p75 = scmp.ne.s32.totalorder %s70, %s72
    %p76 = scmp.eq.s32.totalorder %s15, 0
    %p77 = por %p75, %p76
    %p78 = scmp.ne.s32.totalorder %s70, %s72
    %p79 = scmp.eq.s32.totalorder %s20, 1
    %p80 = por %p78, %p79
    %p81 = scmp.ne.s32.totalorder %s72, %s73
    %p82 = scmp.eq.s32.totalorder %s20, 0
    %p83 = por %p81, %p82
    %p84 = scmp.ne.s32.totalorder %s72, %s73
    %p85 = scmp.eq.s32.totalorder %s21, 1
    %p86 = por %p84, %p85
    %p88 = scmp.ne.s32.totalorder %s73, %s87
    %p89 = scmp.eq.s32.totalorder %s21, 0
    %p90 = por %p88, %p89
    %s92 = sadd.s32 %s91, 1
    %p95 = scmp.eq.s32.totalorder %s15, 1
    %p96 = scmp.ne.s32.totalorder %s91, %s93
    %p97 = scmp.eq.s32.totalorder %s15, 0
    %p98 = por %p96, %p97
    %p99 = scmp.ne.s32.totalorder %s91, %s93
    %p100 = scmp.eq.s32.totalorder %s20, 1
    %p101 = por %p99, %p100
    %p102 = scmp.ne.s32.totalorder %s93, %s94
    %p103 = scmp.eq.s32.totalorder %s20, 0
    %p104 = por %p102, %p103
    %p105 = scmp.ne.s32.totalorder %s93, %s94
    %p106 = scmp.eq.s32.totalorder %s21, 1
    %p107 = por %p105, %p106
    %p109 = scmp.ne.s32.totalorder %s94, %s108
    %p110 = scmp.eq.s32.totalorder %s21, 0
    %p111 = por %p109, %p110
    %s113 = sadd.s32 %s112, 1
    %p116 = scmp.eq.s32.totalorder %s15, 1
    %p117 = scmp.ne.s32.totalorder %s112, %s114
    %p118 = scmp.eq.s32.totalorder %s15, 0
    %p119 = por %p117, %p118
    %p120 = scmp.ne.s32.totalorder %s112, %s114
    %p121 = scmp.eq.s32.totalorder %s20, 1
    %p122 = por %p120, %p121
    %p123 = scmp.ne.s32.totalorder %s114, %s115
    %p124 = scmp.eq.s32.totalorder %s20, 0
    %p125 = por %p123, %p124
    %p126 = scmp.ne.s32.totalorder %s114, %s115
    %p127 = scmp.eq.s32.totalorder %s21, 1
    %p128 = por %p126, %p127
    %p130 = scmp.ne.s32.totalorder %s115, %s129
    %p131 = scmp.eq.s32.totalorder %s21, 0
    %p132 = por %p130, %p131
    %s134 = sadd.s32 %s133, 1
    %p137 = scmp.eq.s32.totalorder %s15, 1
    %p138 = scmp.ne.s32.totalorder %s133, %s135
    %p139 = scmp.eq.s32.totalorder %s15, 0
    %p140 = por %p138, %p139
    %p141 = scmp.ne.s32.totalorder %s133, %s135
    %p142 = scmp.eq.s32.totalorder %s20, 1
    %p143 = por %p141, %p142
    %p144 = scmp.ne.s32.totalorder %s135, %s136
    %p145 = scmp.eq.s32.totalorder %s20, 0
    %p146 = por %p144, %p145
    %p147 = scmp.ne.s32.totalorder %s135, %s136
    %p148 = scmp.eq.s32.totalorder %s21, 1
    %p149 = por %p147, %p148
    %p151 = scmp.ne.s32.totalorder %s136, %s150
    %p152 = scmp.eq.s32.totalorder %s21, 0
    %p153 = por %p151, %p152
    %s155 = sadd.s32 %s154, 1
    %p158 = scmp.eq.s32.totalorder %s15, 1
    %p159 = scmp.ne.s32.totalorder %s154, %s156
    %p160 = scmp.eq.s32.totalorder %s15, 0
    %p161 = por %p159, %p160
    %p162 = scmp.ne.s32.totalorder %s154, %s156
    %p163 = scmp.eq.s32.totalorder %s20, 1
    %p164 = por %p162, %p163
    %p165 = scmp.ne.s32.totalorder %s156, %s157
    %p166 = scmp.eq.s32.totalorder %s20, 0
    %p167 = por %p165, %p166
    %p168 = scmp.ne.s32.totalorder %s156, %s157
    %p169 = scmp.eq.s32.totalorder %s21, 1
    %p170 = por %p168, %p169
    %p172 = scmp.ne.s32.totalorder %s157, %s171
    %p173 = scmp.eq.s32.totalorder %s21, 0
    %p174 = por %p172, %p173
    %s176 = sadd.s32 %s175, 1
    %p179 = scmp.eq.s32.totalorder %s15, 1
    %p180 = scmp.ne.s32.totalorder %s175, %s177
    %p181 = scmp.eq.s32.totalorder %s15, 0
    %p182 = por %p180, %p181
    %p183 = scmp.ne.s32.totalorder %s175, %s177
    %p184 = scmp.eq.s32.totalorder %s20, 1
    %p185 = por %p183, %p184
    %p186 = scmp.ne.s32.totalorder %s177, %s178
    %p187 = scmp.eq.s32.totalorder %s20, 0
    %p188 = por %p186, %p187
    %p189 = scmp.ne.s32.totalorder %s177, %s178
    %p190 = scmp.eq.s32.totalorder %s21, 1
    %p191 = por %p189, %p190
    %p193 = scmp.ne.s32.totalorder %s178, %s192
    %p194 = scmp.eq.s32.totalorder %s21, 0
    %p195 = por %p193, %p194
    %s197 = sadd.s32 %s196, 1
    %p200 = scmp.eq.s32.totalorder %s15, 1
    %p201 = scmp.ne.s32.totalorder %s196, %s198
    %p202 = scmp.eq.s32.totalorder %s15, 0
    %p203 = por %p201, %p202
    %p204 = scmp.ne.s32.totalorder %s196, %s198
    %p205 = scmp.eq.s32.totalorder %s20, 1
    %p206 = por %p204, %p205
    %p207 = scmp.ne.s32.totalorder %s198, %s199
    %p208 = scmp.eq.s32.totalorder %s20, 0
    %p209 = por %p207, %p208
    %p210 = scmp.ne.s32.totalorder %s198, %s199
    %p211 = scmp.eq.s32.totalorder %s21, 1
    %p212 = por %p210, %p211
    %p214 = scmp.ne.s32.totalorder %s199, %s213
    %p215 = scmp.eq.s32.totalorder %s21, 0
    %p216 = por %p214, %p215
    %s217 = ssub.s32 %s15, %s22
    %p218 = scmp.eq.s32.totalorder %s217, 0
    %s220 = sadd.s32 %s219, 1
    %s221 = scalar_select %p218, %s219, %s220
    %p224 = pneg %p218
    %p225 = scmp.eq.s32.totalorder %s15, 1
    %p226 = por %p224, %p225
    %p227 = scmp.ne.s32.totalorder %s219, %s222
    %p228 = scmp.eq.s32.totalorder %s15, 0
    %p229 = por %p227, %p228
    %p230 = scmp.ne.s32.totalorder %s219, %s222
    %p231 = scmp.eq.s32.totalorder %s20, 1
    %p232 = por %p230, %p231
    %p233 = scmp.ne.s32.totalorder %s222, %s223
    %p234 = scmp.eq.s32.totalorder %s20, 0
    %p235 = por %p233, %p234
    %p236 = scmp.ne.s32.totalorder %s222, %s223
    %p237 = scmp.eq.s32.totalorder %s21, 1
    %p238 = por %p236, %p237
    %p240 = scmp.ne.s32.totalorder %s223, %s239
    %p241 = scmp.eq.s32.totalorder %s21, 0
    %p242 = por %p240, %p241
    %p243 = scmp.le.s32.totalorder 1, %s15
    %p244 = scmp.lt.s32.totalorder %s15, 3
    %p245 = pnand %p243, %p244
    %p246 = pneg %p245
    // Predicated region
    $region9: #{bicubic_pp_forward.1} parent=5 // pred_check
      _
    $region10: #{bicubic_pp_forward.1} parent=5 // pred_check_branch
      %248 = sbr.rel (%p245) target = $region12
    $region11: #{bicubic_pp_forward.1} parent=5 // pred_region
      %s249 = ssub.s32 %s15, 1
      // Predicated region
      $region13: #{bicubic_pp_forward.1} parent=11 // pred_check
        %p250 = pneg %p62
      $region14: #{bicubic_pp_forward.1} parent=11 // pred_check_branch
        %252 = sbr.rel (%p250) target = $region16
      $region15: #{bicubic_pp_forward.1} parent=11 // pred_region
        _
      $region16: #{bicubic_pp_forward.1} parent=11 // pred_fallthru
        _
      // Predicated region
      $region17: #{bicubic_pp_forward.1} parent=11 // pred_check
        %p253 = pneg %p83
      $region18: #{bicubic_pp_forward.1} parent=11 // pred_check_branch
        %255 = sbr.rel (%p253) target = $region20
      $region19: #{bicubic_pp_forward.1} parent=11 // pred_region
        _
      $region20: #{bicubic_pp_forward.1} parent=11 // pred_fallthru
        _
      // Predicated region
      $region21: #{bicubic_pp_forward.1} parent=11 // pred_check
        %p256 = pneg %p104
      $region22: #{bicubic_pp_forward.1} parent=11 // pred_check_branch
        %258 = sbr.rel (%p256) target = $region24
      $region23: #{bicubic_pp_forward.1} parent=11 // pred_region
        _
      $region24: #{bicubic_pp_forward.1} parent=11 // pred_fallthru
        _
      // Predicated region
      $region25: #{bicubic_pp_forward.1} parent=11 // pred_check
        %p259 = pneg %p125
      $region26: #{bicubic_pp_forward.1} parent=11 // pred_check_branch
        %261 = sbr.rel (%p259) target = $region28
      $region27: #{bicubic_pp_forward.1} parent=11 // pred_region
        _
      $region28: #{bicubic_pp_forward.1} parent=11 // pred_fallthru
        _
      // Predicated region
      $region29: #{bicubic_pp_forward.1} parent=11 // pred_check
        %p262 = pneg %p146
      $region30: #{bicubic_pp_forward.1} parent=11 // pred_check_branch
        %264 = sbr.rel (%p262) target = $region32
      $region31: #{bicubic_pp_forward.1} parent=11 // pred_region
        _
      $region32: #{bicubic_pp_forward.1} parent=11 // pred_fallthru
        _
      // Predicated region
      $region33: #{bicubic_pp_forward.1} parent=11 // pred_check
        %p265 = pneg %p167
      $region34: #{bicubic_pp_forward.1} parent=11 // pred_check_branch
        %267 = sbr.rel (%p265) target = $region36
      $region35: #{bicubic_pp_forward.1} parent=11 // pred_region
        _
      $region36: #{bicubic_pp_forward.1} parent=11 // pred_fallthru
        _
      // Predicated region
      $region37: #{bicubic_pp_forward.1} parent=11 // pred_check
        %p268 = pneg %p188
      $region38: #{bicubic_pp_forward.1} parent=11 // pred_check_branch
        %270 = sbr.rel (%p268) target = $region40
      $region39: #{bicubic_pp_forward.1} parent=11 // pred_region
        _
      $region40: #{bicubic_pp_forward.1} parent=11 // pred_fallthru
        _
      // Predicated region
      $region41: #{bicubic_pp_forward.1} parent=11 // pred_check
        %p271 = pneg %p209
      $region42: #{bicubic_pp_forward.1} parent=11 // pred_check_branch
        %273 = sbr.rel (%p271) target = $region44
      $region43: #{bicubic_pp_forward.1} parent=11 // pred_region
        _
      $region44: #{bicubic_pp_forward.1} parent=11 // pred_fallthru
        _
    $region12: #{bicubic_pp_forward.1} parent=5 // pred_fallthru
      _
    %p274 = scmp.lt.s32.totalorder %s15, 2
    // Predicated region
    $region45: #{bicubic_pp_forward.1} parent=5 // pred_check
      %p275 = pneg %p274
    $region46: #{bicubic_pp_forward.1} parent=5 // pred_check_branch
      %277 = sbr.rel (%p275) target = $region48
    $region47: #{bicubic_pp_forward.1} parent=5 // pred_region
      // Predicated region
      $region49: #{bicubic_pp_forward.1} parent=47 // pred_check
        %p278 = pneg %p35
      $region50: #{bicubic_pp_forward.1} parent=47 // pred_check_branch
        %280 = sbr.rel (%p278) target = $region52
      $region51: #{bicubic_pp_forward.1} parent=47 // pred_region
        %p281 = scmp.lt.s32.totalorder %s15, 1
        %s282 = scalar_select %p281, %s15, 1
        %s283 = smul.addr %s282, 12
        %s284 = smul.addr %s283, 4
        %s285 = scalar_lea.vmem %s0, %s284
      $region52: #{bicubic_pp_forward.1} parent=47 // pred_fallthru
        _
    $region48: #{bicubic_pp_forward.1} parent=5 // pred_fallthru
      _
    %p286 = scmp.le.s32.totalorder 1, %s15
    %p287 = scmp.lt.s32.totalorder %s15, 3
    %p288 = pnand %p286, %p287
    %p289 = pneg %p288
    // Predicated region
    $region53: #{bicubic_pp_forward.1} parent=5 // pred_check
      _
    $region54: #{bicubic_pp_forward.1} parent=5 // pred_check_branch
      %291 = sbr.rel (%p288) target = $region56
    $region55: #{bicubic_pp_forward.1} parent=5 // pred_region
      %s292 = ssub.s32 %s15, 1
      %p293 = scmp.lt.s32.totalorder %s20, 1
      %s294 = scalar_select %p293, %s20, 1
      %s295 = smul.addr %s294, 12
      %s296 = smul.addr %s295, 4
      %s297 = scalar_lea.vmem %s0, %s296
      %p298 = pneg %p41
      %p299 = pneg %p38
      %p300 = pneg %p62
      %p301 = pneg %p59
      %p302 = pneg %p83
      %p303 = pneg %p80
      %p304 = pneg %p104
      %p305 = pneg %p101
      %p306 = pneg %p125
      %p307 = pneg %p122
      %p308 = pneg %p146
      %p309 = pneg %p143
      %p310 = pneg %p167
      %p311 = pneg %p164
      %p312 = pneg %p188
      %p313 = pneg %p185
      %p314 = pneg %p209
      %p315 = pneg %p206
      %p316 = pneg %p235
      %p317 = pneg %p232
      %p318 = scmp.lt.s32.totalorder %s20, 1
      %s319 = scalar_select %p318, %s20, 1
      %s320 = smul.addr %s319, 10
      %s321 = smul.addr %s320, 8
      %s322 = scalar_lea.vmem %s9, %s321
      %p323 = scmp.lt.s32.totalorder %s20, 1
      %s324 = scalar_select %p323, %s20, 1
      %s325 = smul.addr %s324, 12
      %s326 = smul.addr %s325, 4
      %s327 = scalar_lea.vmem %s0, %s326
      %p328 = scmp.lt.s32.totalorder %s20, 1
      %s329 = scalar_select %p328, %s20, 1
      %s330 = smul.addr %s329, 10
      %s331 = smul.addr %s330, 8
      %s332 = scalar_lea.vmem %s9, %s331
      %vm334 = vcmask 257026
      %335 = vst.msk [vmem:[#allocation2 + $0x30] sm:$0xc] %vm334, 0
      %336 = vst.msk [vmem:[#allocation3 + $0x30] sm:$0xc] %vm334, 0
      %337 = vst.msk [vmem:[#allocation4 + $0x30] sm:$0xc] %vm334, 0
      %v338 = vld [vmem:[%s327] sm:$0xf]
      %v339 = vld [vmem:[%s327 + $0x4] sm:$0xf]
      %v340 = vld [vmem:[%s327 + $0x8] sm:$0xf]
      %v341 = vld [vmem:[%s327 + $0xc] sm:$0xf]
      %v342 = vld [vmem:[%s327 + $0x10] sm:$0xf]
      %v343 = vld [vmem:[%s327 + $0x14] sm:$0xf]
      %v344 = vld [vmem:[%s327 + $0x18] sm:$0xf]
      %v345 = vld [vmem:[%s327 + $0x1c] sm:$0xf]
      %v346 = vld [vmem:[%s327 + $0x20] sm:$0xf]
      %v347 = vld [vmem:[%s327 + $0x24] sm:$0xf]
      %v348 = vld [vmem:[%s327 + $0x28] sm:$0x1]
      %v359 = vunpack.c.l.b16 %v338
      %v360 = vunpack.c.l.b16 %v339
      %v361 = vunpack.c.l.b16 %v340
      %v362 = vunpack.c.l.b16 %v341
      %v363 = vunpack.c.l.b16 %v342
      %v364 = vunpack.c.l.b16 %v343
      %v365 = vunpack.c.l.b16 %v344
      %v366 = vunpack.c.l.b16 %v345
      %v367 = vunpack.c.l.b16 %v346
      %v368 = vunpack.c.l.b16 %v347
      %v369 = vpack.c.b16 %v360, %v359
      %v370 = vpack.c.b16 %v362, %v361
      %v371 = vpack.c.b16 %v364, %v363
      %v372 = vpack.c.b16 %v366, %v365
      %v373 = vpack.c.b16 %v368, %v367
      %v375 = vunpack.c.l.b16 %v348
      %v376 = vpack.c.b16 %v375, %v375
      %vm377 = vsmask.f32 7424
      %v379 = vshrl.u32 %v369, 16
      %v381 = vshll.u32 %v369, 16
      %v383 = vrot.slane %v381, 1
      %v384 = vor.u32 %v379, %v383
      %v386 = vshll.u32 %v370, 16
      %v388 = vrot.slane %v386, 1
      %v389 = vsel %vm377, %v384, %v388
      %v390 = vshrl.u32 %v370, 16
      %v392 = vor.u32 %v390, %v388
      %v394 = vshll.u32 %v371, 16
      %v396 = vrot.slane %v394, 1
      %v397 = vsel %vm377, %v392, %v396
      %v398 = vshrl.u32 %v371, 16
      %v400 = vor.u32 %v398, %v396
      %v402 = vshll.u32 %v372, 16
      %v404 = vrot.slane %v402, 1
      %v405 = vsel %vm377, %v400, %v404
      %v406 = vshrl.u32 %v372, 16
      %v408 = vor.u32 %v406, %v404
      %v410 = vshll.u32 %v373, 16
      %v412 = vrot.slane %v410, 1
      %v413 = vsel %vm377, %v408, %v412
      %v414 = vshrl.u32 %v373, 16
      %v416 = vor.u32 %v414, %v412
      %v418 = vshll.u32 %v376, 16
      %v420 = vrot.slane %v418, 1
      %v421 = vsel %vm377, %v416, %v420
      %422 = vrot.lane.b32.xlu0 %v389, 12
      %v423 = vpop.permute.xlu0 %422
      %424 = vrot.lane.b32.xlu0 %v397, 12
      %v425 = vpop.permute.xlu0 %424
      %426 = vrot.lane.b32.xlu0 %v405, 12
      %v427 = vpop.permute.xlu0 %426
      %428 = vrot.lane.b32.xlu0 %v413, 12
      %v429 = vpop.permute.xlu0 %428
      %430 = vrot.lane.b32.xlu0 %v421, 12
      %v431 = vpop.permute.xlu0 %430
      %vm432 = vcmask 97280
      %v434 = vsel %vm432, %v369, %v423
      %v436 = vsel %vm432, %v370, %v425
      %v438 = vsel %vm432, %v371, %v427
      %v440 = vsel %vm432, %v372, %v429
      %v442 = vsel %vm432, %v373, %v431
      %v443 = vld [vmem:[%s1] sm:$0xf]
      %v444 = vld [vmem:[%s1 + $0x4] sm:$0xf]
      %v445 = vld [vmem:[%s1 + $0x8] sm:$0xf]
      %v446 = vld [vmem:[%s327 + $0x4] sm:$0xe]
      %v447 = vld [vmem:[%s327 + $0x28] sm:$0xf]
      %v448 = vld [vmem:[%s327 + $0x2c] sm:$0x1]
      %v449 = vld [vmem:[%s327 + $0x2c] sm:$0x3]
      %v453 = vunpack.c.l.b16 %v446
      %v454 = vunpack.c.l.b16 %v447
      %v455 = vunpack.c.l.b16 %v448
      %v456 = vpack.c.b16 %v361, %v453
      %v457 = vpack.c.b16 %v363, %v362
      %v458 = vpack.c.b16 %v365, %v364
      %v459 = vpack.c.b16 %v367, %v366
      %v460 = vpack.c.b16 %v454, %v368
      %v461 = vpack.c.b16 %v455, %v455
      %v463 = vunpack.c.l.b16 %v449
      %v464 = vpack.c.b16 %v463, %v463
      %v466 = vshrl.u32 %v456, 16
      %v468 = vshll.u32 %v456, 16
      %v470 = vrot.slane %v468, 1
      %v471 = vor.u32 %v466, %v470
      %v473 = vshll.u32 %v457, 16
      %v475 = vrot.slane %v473, 1
      %v476 = vsel %vm377, %v471, %v475
      %v477 = vshrl.u32 %v457, 16
      %v479 = vor.u32 %v477, %v475
      %v481 = vshll.u32 %v458, 16
      %v483 = vrot.slane %v481, 1
      %v484 = vsel %vm377, %v479, %v483
      %v485 = vshrl.u32 %v458, 16
      %v487 = vor.u32 %v485, %v483
      %v489 = vshll.u32 %v459, 16
      %v491 = vrot.slane %v489, 1
      %v492 = vsel %vm377, %v487, %v491
      %v493 = vshrl.u32 %v459, 16
      %v495 = vor.u32 %v493, %v491
      %v497 = vshll.u32 %v460, 16
      %v499 = vrot.slane %v497, 1
      %v500 = vsel %vm377, %v495, %v499
      %v501 = vshrl.u32 %v460, 16
      %v503 = vor.u32 %v501, %v499
      %v505 = vshll.u32 %v464, 16
      %v507 = vrot.slane %v505, 1
      %v508 = vsel %vm377, %v503, %v507
      %v509 = vshrl.u32 %v464, 16
      %v511 = vor.u32 %v509, %v507
      %512 = vrot.lane.b32.xlu0 %v476, 12
      %v513 = vpop.permute.xlu0 %512
      %514 = vrot.lane.b32.xlu0 %v484, 12
      %v515 = vpop.permute.xlu0 %514
      %516 = vrot.lane.b32.xlu0 %v492, 12
      %v517 = vpop.permute.xlu0 %516
      %518 = vrot.lane.b32.xlu0 %v500, 12
      %v519 = vpop.permute.xlu0 %518
      %520 = vrot.lane.b32.xlu0 %v508, 12
      %v521 = vpop.permute.xlu0 %520
      %522 = vrot.lane.b32.xlu0 %v511, 12
      %v523 = vpop.permute.xlu0 %522
      %v525 = vsel %vm432, %v456, %v513
      %v527 = vsel %vm432, %v457, %v515
      %v529 = vsel %vm432, %v458, %v517
      %v531 = vsel %vm432, %v459, %v519
      %v533 = vsel %vm432, %v460, %v521
      %v536 = vsel %vm432, %v461, %v523
      %s537 = scalar_lea.vmem %s1, 12
      %v538 = vld [vmem:[%s537] sm:$0xf]
      %v539 = vld [vmem:[%s537 + $0x4] sm:$0xf]
      %v540 = vld [vmem:[%s537 + $0x8] sm:$0xf]
      %vm547 = vcmask 1046528
      %v548 = vrot.slane %v525, 1
      %v549 = vrot.slane %v527, 1
      %v550 = vsel %vm547, %v548, %v549
      %v551 = vrot.slane %v529, 1
      %v552 = vsel %vm547, %v549, %v551
      %v553 = vrot.slane %v531, 1
      %v554 = vsel %vm547, %v551, %v553
      %v555 = vrot.slane %v533, 1
      %v556 = vsel %vm547, %v553, %v555
      %v557 = vrot.slane %v536, 1
      %v558 = vsel %vm547, %v555, %v557
      %v562 = vunpack.c.l.b16 %v538
      %v563 = vunpack.c.l.b16 %v539
      %v564 = vunpack.c.l.b16 %v540
      %v565 = vpack.c.b16 %v563, %v562
      %v566 = vpack.c.b16 %v564, %v564
      %vm568 = vcmask 195584
      %v570 = vsel %vm568, %v550, 0
      %v573 = vsel %vm568, %v552, 0
      %v576 = vsel %vm568, %v554, 0
      %v579 = vsel %vm568, %v556, 0
      %v582 = vsel %vm568, %v558, 0
      %vm584 = vcmask 1043456
      %v586 = vsel %vm584, %v566, 0
      %588 = vmatprep.subr.bf16.mxu0 0
      %589 = vmatpush1.bf16.msra.mxu0 0
      %590 = vmatprep.subr.bf16.mxu0 0
      %591 = vmatpush1.bf16.msra.mxu0 0
      %592 = vmatprep.subr.bf16.mxu0 0
      %593 = vmatpush1.bf16.msra.mxu0 0
      %594 = vmatprep.subr.bf16.mxu0 0
      %595 = vmatpush1.bf16.msra.mxu0 0
      %596 = vmatprep.subr.bf16.mxu0 0
      %597 = vmatpush1.bf16.msra.mxu0 0
      %598 = vmatprep.subr.bf16.mxu0 0
      %599 = vmatpush1.bf16.msra.mxu0 0
      %600 = vmatprep.subr.bf16.mxu0 0
      %601 = vmatpush1.bf16.msra.mxu0 %v586
      %602 = vmatprep.subr.bf16.mxu0 0
      %603 = vmatpush1.bf16.msra.mxu0 %v565
      %604 = vmatprep.subr.bf16.mxu0 0
      %605 = vmatpush2.bf16.msra.mxu0 0
      %606 = vmatprep.subr.bf16.mxu0 0
      %607 = vmatpush2.bf16.msra.mxu0 0
      %608 = vmatprep.subr.bf16.mxu0 0
      %609 = vmatpush2.bf16.msra.mxu0 0
      %610 = vmatprep.subr.bf16.mxu0 0
      %611 = vmatpush2.bf16.msra.mxu0 0
      %612 = vmatprep.subr.bf16.mxu0 0
      %613 = vmatpush2.bf16.msra.mxu0 0
      %614 = vmatprep.subr.bf16.mxu0 0
      %615 = vmatpush2.bf16.msra.mxu0 0
      %616 = vmatprep.subr.bf16.mxu0 0
      %617 = vmatpush2.bf16.msra.mxu0 0
      %618 = vmatprep.subr.bf16.mxu0 0
      %619 = vmatpush2.bf16.msra.mxu0 0
      %620 = vmatprep.mubr.bf16.mxu0 0
      %621 = vmatmul.mubr.bf16.gmra.mxu0 %v570
      %v622 = vpop.f32.mrf.mxu0
      %v623 = vadd.f32 0.0, %v622
      %v624 = vpop.f32.mrf.mxu0
      %v625 = vpop.f32.mrf.mxu0
      %v626 = vadd.f32 0.0, %v625
      %v627 = vpop.f32.mrf.mxu0
      %628 = vmatprep.mubr.bf16.mxu0 0
      %629 = vmatmul.mubr.bf16.gmra.mxu0 %v573
      %v630 = vpop.f32.mrf.mxu0
      %v631 = vadd.f32 0.0, %v630
      %v632 = vpop.f32.mrf.mxu0
      %v633 = vpop.f32.mrf.mxu0
      %v634 = vadd.f32 0.0, %v633
      %v635 = vpop.f32.mrf.mxu0
      %636 = vmatprep.mubr.bf16.mxu0 0
      %637 = vmatmul.mubr.bf16.gmra.mxu0 %v576
      %v638 = vpop.f32.mrf.mxu0
      %v639 = vadd.f32 0.0, %v638
      %v640 = vpop.f32.mrf.mxu0
      %v641 = vpop.f32.mrf.mxu0
      %v642 = vadd.f32 0.0, %v641
      %v643 = vpop.f32.mrf.mxu0
      %644 = vmatprep.mubr.bf16.mxu0 0
      %645 = vmatmul.mubr.bf16.gmra.mxu0 %v579
      %v646 = vpop.f32.mrf.mxu0
      %v647 = vadd.f32 0.0, %v646
      %v648 = vpop.f32.mrf.mxu0
      %v649 = vpop.f32.mrf.mxu0
      %v650 = vadd.f32 0.0, %v649
      %v651 = vpop.f32.mrf.mxu0
      %652 = vmatprep.mubr.bf16.mxu0 0
      %653 = vmatmul.mubr.bf16.gmra.mxu0 %v582
      %v654 = vpop.f32.mrf.mxu0
      %v655 = vadd.f32 0.0, %v654
      %v656 = vpop.f32.mrf.mxu0
      %v657 = vpop.f32.mrf.mxu0
      %v658 = vadd.f32 0.0, %v657
      %v659 = vpop.f32.mrf.mxu0
      %660 = vdwg.mxu0
      %v664 = vunpack.c.l.b16 %v443
      %v665 = vunpack.c.l.b16 %v444
      %v666 = vunpack.c.l.b16 %v445
      %v667 = vpack.c.b16 %v665, %v664
      %v668 = vpack.c.b16 %v666, %v666
      %v670 = vsel %vm568, %v434, 0
      %v672 = vsel %vm568, %v436, 0
      %v674 = vsel %vm568, %v438, 0
      %v676 = vsel %vm568, %v440, 0
      %v678 = vsel %vm568, %v442, 0
      %v681 = vsel %vm584, %v668, 0
      %683 = vmatprep.subr.bf16.mxu0 0
      %684 = vmatpush1.bf16.msra.mxu0 0
      %685 = vmatprep.subr.bf16.mxu0 0
      %686 = vmatpush1.bf16.msra.mxu0 0
      %687 = vmatprep.subr.bf16.mxu0 0
      %688 = vmatpush1.bf16.msra.mxu0 0
      %689 = vmatprep.subr.bf16.mxu0 0
      %690 = vmatpush1.bf16.msra.mxu0 0
      %691 = vmatprep.subr.bf16.mxu0 0
      %692 = vmatpush1.bf16.msra.mxu0 0
      %693 = vmatprep.subr.bf16.mxu0 0
      %694 = vmatpush1.bf16.msra.mxu0 0
      %695 = vmatprep.subr.bf16.mxu0 0
      %696 = vmatpush1.bf16.msra.mxu0 %v681
      %697 = vmatprep.subr.bf16.mxu0 0
      %698 = vmatpush1.bf16.msra.mxu0 %v667
      %699 = vmatprep.subr.bf16.mxu0 0
      %700 = vmatpush2.bf16.msra.mxu0 0
      %701 = vmatprep.subr.bf16.mxu0 0
      %702 = vmatpush2.bf16.msra.mxu0 0
      %703 = vmatprep.subr.bf16.mxu0 0
      %704 = vmatpush2.bf16.msra.mxu0 0
      %705 = vmatprep.subr.bf16.mxu0 0
      %706 = vmatpush2.bf16.msra.mxu0 0
      %707 = vmatprep.subr.bf16.mxu0 0
      %708 = vmatpush2.bf16.msra.mxu0 0
      %709 = vmatprep.subr.bf16.mxu0 0
      %710 = vmatpush2.bf16.msra.mxu0 0
      %711 = vmatprep.subr.bf16.mxu0 0
      %712 = vmatpush2.bf16.msra.mxu0 0
      %713 = vmatprep.subr.bf16.mxu0 0
      %714 = vmatpush2.bf16.msra.mxu0 0
      %715 = vmatprep.mubr.bf16.mxu0 0
      %716 = vmatmul.mubr.bf16.gmra.mxu0 %v670
      %v717 = vpop.f32.mrf.mxu0
      %v718 = vadd.f32 %v623, %v717
      %v719 = vpop.f32.mrf.mxu0
      %v720 = vpop.f32.mrf.mxu0
      %v721 = vadd.f32 %v626, %v720
      %v722 = vpop.f32.mrf.mxu0
      %723 = vmatprep.mubr.bf16.mxu0 0
      %724 = vmatmul.mubr.bf16.gmra.mxu0 %v672
      %v725 = vpop.f32.mrf.mxu0
      %v726 = vadd.f32 %v631, %v725
      %v727 = vpop.f32.mrf.mxu0
      %v728 = vpop.f32.mrf.mxu0
      %v729 = vadd.f32 %v634, %v728
      %v730 = vpop.f32.mrf.mxu0
      %731 = vmatprep.mubr.bf16.mxu0 0
      %732 = vmatmul.mubr.bf16.gmra.mxu0 %v674
      %v733 = vpop.f32.mrf.mxu0
      %v734 = vadd.f32 %v639, %v733
      %v735 = vpop.f32.mrf.mxu0
      %v736 = vpop.f32.mrf.mxu0
      %v737 = vadd.f32 %v642, %v736
      %v738 = vpop.f32.mrf.mxu0
      %739 = vmatprep.mubr.bf16.mxu0 0
      %740 = vmatmul.mubr.bf16.gmra.mxu0 %v676
      %v741 = vpop.f32.mrf.mxu0
      %v742 = vadd.f32 %v647, %v741
      %v743 = vpop.f32.mrf.mxu0
      %v744 = vpop.f32.mrf.mxu0
      %v745 = vadd.f32 %v650, %v744
      %v746 = vpop.f32.mrf.mxu0
      %747 = vmatprep.mubr.bf16.mxu0 0
      %748 = vmatmul.mubr.bf16.gmra.mxu0 %v678
      %v749 = vpop.f32.mrf.mxu0
      %v750 = vadd.f32 %v655, %v749
      %v751 = vpop.f32.mrf.mxu0
      %v752 = vpop.f32.mrf.mxu0
      %v753 = vadd.f32 %v658, %v752
      %v754 = vpop.f32.mrf.mxu0
      %755 = vdwg.mxu0
      %v756 = vld [vmem:[%s2] sm:$0x1]
      %v758 = vlaneseq
      %v759 = vshrl.u32 %v758, 7
      %v760 = vsub.s32 0, %v759
      %v761 = vrot.slane %v756, %v760
      %v763 = vadd.f32 %v718, %v761
      %v764 = vadd.f32 %v721, %v761
      %v765 = vadd.f32 %v726, %v761
      %v766 = vadd.f32 %v729, %v761
      %v767 = vadd.f32 %v734, %v761
      %v768 = vadd.f32 %v737, %v761
      %v769 = vadd.f32 %v742, %v761
      %v770 = vadd.f32 %v745, %v761
      %v771 = vadd.f32 %v750, %v761
      %v772 = vadd.f32 %v753, %v761
      %v773 = vlaneseq
      %v774 = vshrl.u32 %v773, 7
      %v775 = vadd.s32 %v774, 8
      %v776 = vadd.s32 %v774, 16
      %v777 = vadd.s32 %v774, 24
      %v778 = vadd.s32 %v774, 32
      %v779 = vadd.s32 %v774, 40
      %v780 = vadd.s32 %v774, 48
      %v781 = vadd.s32 %v774, 56
      %v782 = vadd.s32 %v774, 64
      %v783 = vadd.s32 %v774, 72
      %vm784 = vcmp.lt.s32.totalorder %v774, 0
      %v785 = vsub.s32 0, %v774
      %v786 = vsel %vm784, %v785, %v774
      %v787 = vmul.u32.u64.compose %v786, 3435973837
      %v788 = vextract.low.u32 %v787
      %v789 = vextract.high.u32 %v787
      %v790 = vshrl.u32 %v789, 3
      %v791 = vmul.u32 %v790, 10
      %v792 = vsub.s32 %v786, %v791
      %v793 = vsub.s32 0, %v792
      %v794 = vsel %vm784, %v793, %v792
      %vm795 = vcmp.lt.s32.totalorder %v775, 0
      %v796 = vsub.s32 0, %v775
      %v797 = vsel %vm795, %v796, %v775
      %v798 = vmul.u32.u64.compose %v797, 3435973837
      %v799 = vextract.low.u32 %v798
      %v800 = vextract.high.u32 %v798
      %v801 = vshrl.u32 %v800, 3
      %v802 = vmul.u32 %v801, 10
      %v803 = vsub.s32 %v797, %v802
      %v804 = vsub.s32 0, %v803
      %v805 = vsel %vm795, %v804, %v803
      %vm806 = vcmp.lt.s32.totalorder %v776, 0
      %v807 = vsub.s32 0, %v776
      %v808 = vsel %vm806, %v807, %v776
      %v809 = vmul.u32.u64.compose %v808, 3435973837
      %v810 = vextract.low.u32 %v809
      %v811 = vextract.high.u32 %v809
      %v812 = vshrl.u32 %v811, 3
      %v813 = vmul.u32 %v812, 10
      %v814 = vsub.s32 %v808, %v813
      %v815 = vsub.s32 0, %v814
      %v816 = vsel %vm806, %v815, %v814
      %vm817 = vcmp.lt.s32.totalorder %v777, 0
      %v818 = vsub.s32 0, %v777
      %v819 = vsel %vm817, %v818, %v777
      %v820 = vmul.u32.u64.compose %v819, 3435973837
      %v821 = vextract.low.u32 %v820
      %v822 = vextract.high.u32 %v820
      %v823 = vshrl.u32 %v822, 3
      %v824 = vmul.u32 %v823, 10
      %v825 = vsub.s32 %v819, %v824
      %v826 = vsub.s32 0, %v825
      %v827 = vsel %vm817, %v826, %v825
      %vm828 = vcmp.lt.s32.totalorder %v778, 0
      %v829 = vsub.s32 0, %v778
      %v830 = vsel %vm828, %v829, %v778
      %v831 = vmul.u32.u64.compose %v830, 3435973837
      %v832 = vextract.low.u32 %v831
      %v833 = vextract.high.u32 %v831
      %v834 = vshrl.u32 %v833, 3
      %v835 = vmul.u32 %v834, 10
      %v836 = vsub.s32 %v830, %v835
      %v837 = vsub.s32 0, %v836
      %v838 = vsel %vm828, %v837, %v836
      %vm839 = vcmp.lt.s32.totalorder %v779, 0
      %v840 = vsub.s32 0, %v779
      %v841 = vsel %vm839, %v840, %v779
      %v842 = vmul.u32.u64.compose %v841, 3435973837
      %v843 = vextract.low.u32 %v842
      %v844 = vextract.high.u32 %v842
      %v845 = vshrl.u32 %v844, 3
      %v846 = vmul.u32 %v845, 10
      %v847 = vsub.s32 %v841, %v846
      %v848 = vsub.s32 0, %v847
      %v849 = vsel %vm839, %v848, %v847
      %vm850 = vcmp.lt.s32.totalorder %v780, 0
      %v851 = vsub.s32 0, %v780
      %v852 = vsel %vm850, %v851, %v780
      %v853 = vmul.u32.u64.compose %v852, 3435973837
      %v854 = vextract.low.u32 %v853
      %v855 = vextract.high.u32 %v853
      %v856 = vshrl.u32 %v855, 3
      %v857 = vmul.u32 %v856, 10
      %v858 = vsub.s32 %v852, %v857
      %v859 = vsub.s32 0, %v858
      %v860 = vsel %vm850, %v859, %v858
      %vm861 = vcmp.lt.s32.totalorder %v781, 0
      %v862 = vsub.s32 0, %v781
      %v863 = vsel %vm861, %v862, %v781
      %v864 = vmul.u32.u64.compose %v863, 3435973837
      %v865 = vextract.low.u32 %v864
      %v866 = vextract.high.u32 %v864
      %v867 = vshrl.u32 %v866, 3
      %v868 = vmul.u32 %v867, 10
      %v869 = vsub.s32 %v863, %v868
      %v870 = vsub.s32 0, %v869
      %v871 = vsel %vm861, %v870, %v869
      %vm872 = vcmp.lt.s32.totalorder %v782, 0
      %v873 = vsub.s32 0, %v782
      %v874 = vsel %vm872, %v873, %v782
      %v875 = vmul.u32.u64.compose %v874, 3435973837
      %v876 = vextract.low.u32 %v875
      %v877 = vextract.high.u32 %v875
      %v878 = vshrl.u32 %v877, 3
      %v879 = vmul.u32 %v878, 10
      %v880 = vsub.s32 %v874, %v879
      %v881 = vsub.s32 0, %v880
      %v882 = vsel %vm872, %v881, %v880
      %vm883 = vcmp.lt.s32.totalorder %v783, 0
      %v884 = vsub.s32 0, %v783
      %v885 = vsel %vm883, %v884, %v783
      %v886 = vmul.u32.u64.compose %v885, 3435973837
      %v887 = vextract.low.u32 %v886
      %v888 = vextract.high.u32 %v886
      %v889 = vshrl.u32 %v888, 3
      %v890 = vmul.u32 %v889, 10
      %v891 = vsub.s32 %v885, %v890
      %v892 = vsub.s32 0, %v891
      %v893 = vsel %vm883, %v892, %v891
      %vm894 = vcmp.ne.s32.totalorder %v794, 0
      %vm895 = vcmp.ne.s32.totalorder %v805, 0
      %vm896 = vcmp.ne.s32.totalorder %v816, 0
      %vm897 = vcmp.ne.s32.totalorder %v827, 0
      %vm898 = vcmp.ne.s32.totalorder %v838, 0
      %vm899 = vcmp.ne.s32.totalorder %v849, 0
      %vm900 = vcmp.ne.s32.totalorder %v860, 0
      %vm901 = vcmp.ne.s32.totalorder %v871, 0
      %vm902 = vcmp.ne.s32.totalorder %v882, 0
      %vm903 = vcmp.ne.s32.totalorder %v893, 0
      %vm904 = vcmp.lt.s32.totalorder %v794, 0
      %vm905 = vcmp.lt.s32.totalorder %v805, 0
      %vm906 = vcmp.lt.s32.totalorder %v816, 0
      %vm907 = vcmp.lt.s32.totalorder %v827, 0
      %vm908 = vcmp.lt.s32.totalorder %v838, 0
      %vm909 = vcmp.lt.s32.totalorder %v849, 0
      %vm910 = vcmp.lt.s32.totalorder %v860, 0
      %vm911 = vcmp.lt.s32.totalorder %v871, 0
      %vm912 = vcmp.lt.s32.totalorder %v882, 0
      %vm913 = vcmp.lt.s32.totalorder %v893, 0
      %vm914 = vmand %vm904, %vm894
      %vm915 = vmand %vm905, %vm895
      %vm916 = vmand %vm906, %vm896
      %vm917 = vmand %vm907, %vm897
      %vm918 = vmand %vm908, %vm898
      %vm919 = vmand %vm909, %vm899
      %vm920 = vmand %vm910, %vm900
      %vm921 = vmand %vm911, %vm901
      %vm922 = vmand %vm912, %vm902
      %vm923 = vmand %vm913, %vm903
      %v924 = vadd.s32 %v794, 10
      %v925 = vadd.s32 %v805, 10
      %v926 = vadd.s32 %v816, 10
      %v927 = vadd.s32 %v827, 10
      %v928 = vadd.s32 %v838, 10
      %v929 = vadd.s32 %v849, 10
      %v930 = vadd.s32 %v860, 10
      %v931 = vadd.s32 %v871, 10
      %v932 = vadd.s32 %v882, 10
      %v933 = vadd.s32 %v893, 10
      %v934 = vsel %vm914, %v924, %v794
      %v935 = vsel %vm915, %v925, %v805
      %v936 = vsel %vm916, %v926, %v816
      %v937 = vsel %vm917, %v927, %v827
      %v938 = vsel %vm918, %v928, %v838
      %v939 = vsel %vm919, %v929, %v849
      %v940 = vsel %vm920, %v930, %v860
      %v941 = vsel %vm921, %v931, %v871
      %v942 = vsel %vm922, %v932, %v882
      %v943 = vsel %vm923, %v933, %v893
      %v944 = vrot.slane %v763, 7
      %v945 = vrot.slane %v764, 7
      %v946 = vrot.slane %v765, 7
      %v947 = vrot.slane %v766, 7
      %v948 = vrot.slane %v767, 7
      %v949 = vrot.slane %v768, 7
      %v950 = vrot.slane %v769, 7
      %v951 = vrot.slane %v770, 7
      %v952 = vrot.slane %v771, 7
      %v953 = vrot.slane %v772, 7
      %vm954 = vcmp.lt.s32.totalorder %v774, 1
      %v955 = vsel %vm954, %v952, %v953
      %v956 = vsel %vm954, %v951, %v952
      %v957 = vsel %vm954, %v950, %v951
      %v958 = vsel %vm954, %v949, %v950
      %v959 = vsel %vm954, %v948, %v949
      %v960 = vsel %vm954, %v947, %v948
      %v961 = vsel %vm954, %v946, %v947
      %v962 = vsel %vm954, %v945, %v946
      %v963 = vsel %vm954, %v944, %v945
      %v964 = vsel %vm954, %v953, %v944
      %v965 = vrot.slane %v763, 1
      %v966 = vrot.slane %v764, 1
      %v967 = vrot.slane %v765, 1
      %v968 = vrot.slane %v766, 1
      %v969 = vrot.slane %v767, 1
      %v970 = vrot.slane %v768, 1
      %v971 = vrot.slane %v769, 1
      %v972 = vrot.slane %v770, 1
      %v973 = vrot.slane %v771, 1
      %v974 = vrot.slane %v772, 1
      %vm975 = vcmp.lt.s32.totalorder %v774, 7
      %v976 = vsel %vm975, %v973, %v974
      %v977 = vsel %vm975, %v972, %v973
      %v978 = vsel %vm975, %v971, %v972
      %v979 = vsel %vm975, %v970, %v971
      %v980 = vsel %vm975, %v969, %v970
      %v981 = vsel %vm975, %v968, %v969
      %v982 = vsel %vm975, %v967, %v968
      %v983 = vsel %vm975, %v966, %v967
      %v984 = vsel %vm975, %v965, %v966
      %v985 = vsel %vm975, %v974, %v965
      %v986 = vrot.slane %v763, 5
      %v987 = vrot.slane %v764, 5
      %v988 = vrot.slane %v765, 5
      %v989 = vrot.slane %v766, 5
      %v990 = vrot.slane %v767, 5
      %v991 = vrot.slane %v768, 5
      %v992 = vrot.slane %v769, 5
      %v993 = vrot.slane %v770, 5
      %v994 = vrot.slane %v771, 5
      %v995 = vrot.slane %v772, 5
      %vm996 = vcmp.lt.s32.totalorder %v774, 3
      %v997 = vsel %vm996, %v994, %v995
      %v998 = vsel %vm996, %v993, %v994
      %v999 = vsel %vm996, %v992, %v993
      %v1000 = vsel %vm996, %v991, %v992
      %v1001 = vsel %vm996, %v990, %v991
      %v1002 = vsel %vm996, %v989, %v990
      %v1003 = vsel %vm996, %v988, %v989
      %v1004 = vsel %vm996, %v987, %v988
      %v1005 = vsel %vm996, %v986, %v987
      %v1006 = vsel %vm996, %v995, %v986
      %vm1007 = vcmp.eq.s32.totalorder %v934, 0
      %vm1008 = vcmp.eq.s32.totalorder %v935, 0
      %vm1009 = vcmp.eq.s32.totalorder %v936, 0
      %vm1010 = vcmp.eq.s32.totalorder %v937, 0
      %vm1011 = vcmp.eq.s32.totalorder %v938, 0
      %vm1012 = vcmp.eq.s32.totalorder %v939, 0
      %vm1013 = vcmp.eq.s32.totalorder %v940, 0
      %vm1014 = vcmp.eq.s32.totalorder %v941, 0
      %vm1015 = vcmp.eq.s32.totalorder %v942, 0
      %vm1016 = vcmp.eq.s32.totalorder %v943, 0
      %vm1017 = vcmp.eq.s32.totalorder %v934, 9
      %vm1018 = vcmp.eq.s32.totalorder %v935, 9
      %vm1019 = vcmp.eq.s32.totalorder %v936, 9
      %vm1020 = vcmp.eq.s32.totalorder %v937, 9
      %vm1021 = vcmp.eq.s32.totalorder %v938, 9
      %vm1022 = vcmp.eq.s32.totalorder %v939, 9
      %vm1023 = vcmp.eq.s32.totalorder %v940, 9
      %vm1024 = vcmp.eq.s32.totalorder %v941, 9
      %vm1025 = vcmp.eq.s32.totalorder %v942, 9
      %vm1026 = vcmp.eq.s32.totalorder %v943, 9
      %v1027 = vsel %vm1017, 1, 0
      %v1028 = vsel %vm1018, 1, 0
      %v1029 = vsel %vm1019, 1, 0
      %v1030 = vsel %vm1020, 1, 0
      %v1031 = vsel %vm1021, 1, 0
      %v1032 = vsel %vm1022, 1, 0
      %v1033 = vsel %vm1023, 1, 0
      %v1034 = vsel %vm1024, 1, 0
      %v1035 = vsel %vm1025, 1, 0
      %v1036 = vsel %vm1026, 1, 0
      %vm1037 = vcmp.eq.s32.totalorder %v1027, 1
      %vm1038 = vcmp.eq.s32.totalorder %v1028, 1
      %vm1039 = vcmp.eq.s32.totalorder %v1029, 1
      %vm1040 = vcmp.eq.s32.totalorder %v1030, 1
      %vm1041 = vcmp.eq.s32.totalorder %v1031, 1
      %vm1042 = vcmp.eq.s32.totalorder %v1032, 1
      %vm1043 = vcmp.eq.s32.totalorder %v1033, 1
      %vm1044 = vcmp.eq.s32.totalorder %v1034, 1
      %vm1045 = vcmp.eq.s32.totalorder %v1035, 1
      %vm1046 = vcmp.eq.s32.totalorder %v1036, 1
      %v1047 = vsel %vm1037, %v1006, %v964
      %v1048 = vsel %vm1038, %v1005, %v963
      %v1049 = vsel %vm1039, %v1004, %v962
      %v1050 = vsel %vm1040, %v1003, %v961
      %v1051 = vsel %vm1041, %v1002, %v960
      %v1052 = vsel %vm1042, %v1001, %v959
      %v1053 = vsel %vm1043, %v1000, %v958
      %v1054 = vsel %vm1044, %v999, %v957
      %v1055 = vsel %vm1045, %v998, %v956
      %v1056 = vsel %vm1046, %v997, %v955
      %v1057 = vsel %vm1007, 1, 0
      %v1058 = vsel %vm1008, 1, 0
      %v1059 = vsel %vm1009, 1, 0
      %v1060 = vsel %vm1010, 1, 0
      %v1061 = vsel %vm1011, 1, 0
      %v1062 = vsel %vm1012, 1, 0
      %v1063 = vsel %vm1013, 1, 0
      %v1064 = vsel %vm1014, 1, 0
      %v1065 = vsel %vm1015, 1, 0
      %v1066 = vsel %vm1016, 1, 0
      %vm1067 = vcmp.eq.s32.totalorder %v1057, 1
      %vm1068 = vcmp.eq.s32.totalorder %v1058, 1
      %vm1069 = vcmp.eq.s32.totalorder %v1059, 1
      %vm1070 = vcmp.eq.s32.totalorder %v1060, 1
      %vm1071 = vcmp.eq.s32.totalorder %v1061, 1
      %vm1072 = vcmp.eq.s32.totalorder %v1062, 1
      %vm1073 = vcmp.eq.s32.totalorder %v1063, 1
      %vm1074 = vcmp.eq.s32.totalorder %v1064, 1
      %vm1075 = vcmp.eq.s32.totalorder %v1065, 1
      %vm1076 = vcmp.eq.s32.totalorder %v1066, 1
      %v1077 = vsel %vm1067, %v984, %v1047
      %v1078 = vsel %vm1068, %v983, %v1048
      %v1079 = vsel %vm1069, %v982, %v1049
      %v1080 = vsel %vm1070, %v981, %v1050
      %v1081 = vsel %vm1071, %v980, %v1051
      %v1082 = vsel %vm1072, %v979, %v1052
      %v1083 = vsel %vm1073, %v978, %v1053
      %v1084 = vsel %vm1074, %v977, %v1054
      %v1085 = vsel %vm1075, %v976, %v1055
      %v1086 = vsel %vm1076, %v985, %v1056
      %v1087 = vpack.c.bf16 %v1078, %v1077
      %v1088 = vpack.c.bf16 %v1080, %v1079
      %v1089 = vpack.c.bf16 %v1082, %v1081
      %v1090 = vpack.c.bf16 %v1084, %v1083
      %v1091 = vpack.c.bf16 %v1086, %v1085
      %v1097 = vunpack.c.l.b16 %v1087
      %v1098 = vunpack.c.h.b16 %v1087
      %v1099 = vunpack.c.l.b16 %v1088
      %v1100 = vunpack.c.h.b16 %v1088
      %v1101 = vunpack.c.l.b16 %v1089
      %v1102 = vunpack.c.h.b16 %v1089
      %v1103 = vunpack.c.l.b16 %v1090
      %v1104 = vunpack.c.h.b16 %v1090
      %v1105 = vunpack.c.l.b16 %v1091
      %v1106 = vunpack.c.h.b16 %v1091
      %v1107 = vpack.c.b16 %v1097, %v1097
      %v1108 = vpack.c.b16 %v1098, %v1098
      %v1109 = vpack.c.b16 %v1099, %v1099
      %v1110 = vpack.c.b16 %v1100, %v1100
      %v1111 = vpack.c.b16 %v1101, %v1101
      %v1112 = vpack.c.b16 %v1102, %v1102
      %v1113 = vpack.c.b16 %v1103, %v1103
      %v1114 = vpack.c.b16 %v1104, %v1104
      %v1115 = vpack.c.b16 %v1105, %v1105
      %v1116 = vpack.c.b16 %v1106, %v1106
      %vm1117 = vcmask 1040384
      %vm1118 = vcmask 1044484
      %vm1119 = vmor %vm1117, %vm1118
      %v1120 = vrot.slane %v1107, 7
      %v1121 = vrot.slane %v1120, 4
      %v1122 = vrot.slane %v1108, 7
      %v1123 = vsel %vm1119, %v1121, %v1122
      %v1124 = vrot.slane %v1122, 4
      %v1125 = vrot.slane %v1109, 7
      %v1126 = vsel %vm1119, %v1124, %v1125
      %v1127 = vrot.slane %v1125, 4
      %v1128 = vrot.slane %v1110, 7
      %v1129 = vsel %vm1119, %v1127, %v1128
      %v1130 = vrot.slane %v1128, 4
      %v1131 = vrot.slane %v1111, 7
      %v1132 = vsel %vm1119, %v1130, %v1131
      %v1133 = vrot.slane %v1131, 4
      %v1134 = vrot.slane %v1112, 7
      %v1135 = vsel %vm1119, %v1133, %v1134
      %v1136 = vrot.slane %v1134, 4
      %v1137 = vrot.slane %v1113, 7
      %v1138 = vsel %vm1119, %v1136, %v1137
      %v1139 = vrot.slane %v1137, 4
      %v1140 = vrot.slane %v1114, 7
      %v1141 = vsel %vm1119, %v1139, %v1140
      %v1142 = vrot.slane %v1140, 4
      %v1143 = vrot.slane %v1115, 7
      %v1144 = vsel %vm1119, %v1142, %v1143
      %v1145 = vrot.slane %v1143, 4
      %v1146 = vrot.slane %v1116, 7
      %v1147 = vsel %vm1119, %v1145, %v1146
      %v1148 = vrot.slane %v1146, 4
      %vm1160 = vcmask 257025
      %1161 = vst.msk [vmem:[#allocation2 + $0x4] sm:$0xe] %vm1160, %v1120
      %vm1162 = vcmask 257024
      %1163 = vst.msk [vmem:[#allocation2 + $0x8] sm:$0xf] %vm1162, %v1123
      %1164 = vst.msk [vmem:[#allocation2 + $0xc] sm:$0xf] %vm1162, %v1126
      %1165 = vst.msk [vmem:[#allocation2 + $0x10] sm:$0xf] %vm1162, %v1129
      %1166 = vst.msk [vmem:[#allocation2 + $0x14] sm:$0xf] %vm1162, %v1132
      %1167 = vst.msk [vmem:[#allocation2 + $0x18] sm:$0xf] %vm1162, %v1135
      %1168 = vst.msk [vmem:[#allocation2 + $0x1c] sm:$0xf] %vm1162, %v1138
      %1169 = vst.msk [vmem:[#allocation2 + $0x20] sm:$0xf] %vm1162, %v1141
      %1170 = vst.msk [vmem:[#allocation2 + $0x24] sm:$0xf] %vm1162, %v1144
      %1171 = vst.msk [vmem:[#allocation2 + $0x28] sm:$0xf] %vm1162, %v1147
      %vm1172 = vcmask 253952
      %1173 = vst.msk [vmem:[#allocation2 + $0x2c] sm:$0x1] %vm1172, %v1148
      %vm1174 = vcmask 1042432
      %vm1175 = vcmask 1046532
      %vm1176 = vmor %vm1174, %vm1175
      %v1177 = vrot.slane %v1108, 5
      %v1178 = vrot.slane %v1177, 4
      %v1179 = vrot.slane %v1109, 5
      %v1180 = vsel %vm1176, %v1178, %v1179
      %v1181 = vrot.slane %v1179, 4
      %1184 = vst.msk [vmem:[#allocation2] sm:$0xf] %vm1162, %v1180
      %1185 = vst.msk [vmem:[#allocation2 + $0x4] sm:$0x1] %vm1172, %v1181
      %v1186 = vrot.slane %v1114, 5
      %v1187 = vrot.slane %v1186, 4
      %v1188 = vrot.slane %v1115, 5
      %v1189 = vsel %vm1176, %v1187, %v1188
      %v1190 = vrot.slane %v1188, 4
      %1193 = vst.msk [vmem:[#allocation2 + $0x2c] sm:$0xe] %vm1160, %v1189
      %vm1194 = vcmask 254976
      %1195 = vst.msk [vmem:[#allocation2 + $0x30] sm:$0x3] %vm1194, %v1190
      %v1196 = vld [vmem:[#allocation2] sm:$0xf]
      %v1197 = vld [vmem:[#allocation2 + $0x4] sm:$0xf]
      %v1198 = vld [vmem:[#allocation2 + $0x8] sm:$0xf]
      %v1199 = vld [vmem:[#allocation2 + $0xc] sm:$0xf]
      %v1200 = vld [vmem:[#allocation2 + $0x10] sm:$0xf]
      %v1201 = vld [vmem:[#allocation2 + $0x14] sm:$0xf]
      %v1202 = vld [vmem:[#allocation2 + $0x18] sm:$0xf]
      %v1203 = vld [vmem:[#allocation2 + $0x1c] sm:$0xf]
      %v1204 = vld [vmem:[#allocation2 + $0x20] sm:$0xf]
      %v1205 = vld [vmem:[#allocation2 + $0x24] sm:$0xf]
      %v1206 = vld [vmem:[#allocation2 + $0x28] sm:$0x1]
      %v1207 = vld [vmem:[#allocation2] sm:$0xe]
      %v1218 = vunpack.c.l.b16 %v1196
      %v1219 = vunpack.c.l.b16 %v1197
      %v1220 = vunpack.c.l.b16 %v1198
      %v1221 = vunpack.c.l.b16 %v1199
      %v1222 = vunpack.c.l.b16 %v1200
      %v1223 = vunpack.c.l.b16 %v1201
      %v1224 = vunpack.c.l.b16 %v1202
      %v1225 = vunpack.c.l.b16 %v1203
      %v1226 = vunpack.c.l.b16 %v1204
      %v1227 = vunpack.c.l.b16 %v1205
      %v1228 = vpack.c.b16 %v1219, %v1218
      %v1229 = vpack.c.b16 %v1221, %v1220
      %v1230 = vpack.c.b16 %v1223, %v1222
      %v1231 = vpack.c.b16 %v1225, %v1224
      %v1232 = vpack.c.b16 %v1227, %v1226
      %v1234 = vunpack.c.l.b16 %v1206
      %v1235 = vpack.c.b16 %v1234, %v1234
      %v1237 = vshrl.u32 %v1228, 16
      %v1239 = vshll.u32 %v1228, 16
      %v1241 = vrot.slane %v1239, 1
      %v1242 = vor.u32 %v1237, %v1241
      %v1244 = vshll.u32 %v1229, 16
      %v1246 = vrot.slane %v1244, 1
      %v1247 = vsel %vm377, %v1242, %v1246
      %v1248 = vshrl.u32 %v1229, 16
      %v1250 = vor.u32 %v1248, %v1246
      %v1252 = vshll.u32 %v1230, 16
      %v1254 = vrot.slane %v1252, 1
      %v1255 = vsel %vm377, %v1250, %v1254
      %v1256 = vshrl.u32 %v1230, 16
      %v1258 = vor.u32 %v1256, %v1254
      %v1260 = vshll.u32 %v1231, 16
      %v1262 = vrot.slane %v1260, 1
      %v1263 = vsel %vm377, %v1258, %v1262
      %v1264 = vshrl.u32 %v1231, 16
      %v1266 = vor.u32 %v1264, %v1262
      %v1268 = vshll.u32 %v1232, 16
      %v1270 = vrot.slane %v1268, 1
      %v1271 = vsel %vm377, %v1266, %v1270
      %v1272 = vshrl.u32 %v1232, 16
      %v1274 = vor.u32 %v1272, %v1270
      %v1276 = vshll.u32 %v1235, 16
      %v1278 = vrot.slane %v1276, 1
      %v1279 = vsel %vm377, %v1274, %v1278
      %1280 = vrot.lane.b32.xlu0 %v1247, 32
      %v1281 = vpop.permute.xlu0 %1280
      %1282 = vrot.lane.b32.xlu0 %v1255, 32
      %v1283 = vpop.permute.xlu0 %1282
      %1284 = vrot.lane.b32.xlu0 %v1263, 32
      %v1285 = vpop.permute.xlu0 %1284
      %1286 = vrot.lane.b32.xlu0 %v1271, 32
      %v1287 = vpop.permute.xlu0 %1286
      %1288 = vrot.lane.b32.xlu0 %v1279, 32
      %v1289 = vpop.permute.xlu0 %1288
      %v1291 = vunpack.c.l.b16 %v1207
      %v1292 = vpack.c.b16 %v1219, %v1291
      %v1293 = vrot.slane %v1292, 1
      %v1294 = vrot.slane %v1229, 1
      %v1295 = vsel %vm547, %v1293, %v1294
      %v1296 = vrot.slane %v1230, 1
      %v1297 = vsel %vm547, %v1294, %v1296
      %v1298 = vrot.slane %v1231, 1
      %v1299 = vsel %vm547, %v1296, %v1298
      %v1300 = vrot.slane %v1232, 1
      %v1301 = vsel %vm547, %v1298, %v1300
      %v1302 = vrot.slane %v1235, 1
      %v1303 = vsel %vm547, %v1300, %v1302
      %1304 = vrot.lane.b32.xlu0 %v1295, 64
      %v1305 = vpop.permute.xlu0 %1304
      %1306 = vrot.lane.b32.xlu0 %v1297, 64
      %v1307 = vpop.permute.xlu0 %1306
      %1308 = vrot.lane.b32.xlu0 %v1299, 64
      %v1309 = vpop.permute.xlu0 %1308
      %1310 = vrot.lane.b32.xlu0 %v1301, 64
      %v1311 = vpop.permute.xlu0 %1310
      %1312 = vrot.lane.b32.xlu0 %v1303, 64
      %v1313 = vpop.permute.xlu0 %1312
      %vm1314 = vcmask 261120
      %v1316 = vsel %vm1314, %v1228, %v1281
      %v1318 = vsel %vm1314, %v1229, %v1283
      %v1320 = vsel %vm1314, %v1230, %v1285
      %v1322 = vsel %vm1314, %v1231, %v1287
      %v1324 = vsel %vm1314, %v1232, %v1289
      %vm1325 = vcmask 523264
      %v1327 = vsel %vm1325, %v1316, %v1305
      %v1329 = vsel %vm1325, %v1318, %v1307
      %v1331 = vsel %vm1325, %v1320, %v1309
      %v1333 = vsel %vm1325, %v1322, %v1311
      %v1335 = vsel %vm1325, %v1324, %v1313
      %v1336 = vld [vmem:[%s3] sm:$0xf]
      %v1337 = vld [vmem:[%s3 + $0x4] sm:$0xf]
      %v1338 = vld [vmem:[%s3 + $0x8] sm:$0xf]
      %v1339 = vld [vmem:[%s3 + $0xc] sm:$0xf]
      %v1340 = vld [vmem:[%s3 + $0x10] sm:$0xf]
      %v1341 = vld [vmem:[%s3 + $0x14] sm:$0xf]
      %v1342 = vld [vmem:[%s3 + $0x18] sm:$0xf]
      %v1343 = vld [vmem:[%s3 + $0x1c] sm:$0xf]
      %v1344 = vld [vmem:[%s3 + $0x20] sm:$0xf]
      %v1345 = vld [vmem:[%s3 + $0x24] sm:$0xf]
      %v1346 = vld [vmem:[%s3 + $0x28] sm:$0xf]
      %v1347 = vld [vmem:[%s3 + $0x2c] sm:$0xf]
      %v1348 = vld [vmem:[#allocation2 + $0x4] sm:$0xe]
      %v1349 = vld [vmem:[#allocation2 + $0x28] sm:$0xf]
      %v1350 = vld [vmem:[#allocation2 + $0x2c] sm:$0x1]
      %v1351 = vld [vmem:[#allocation2 + $0x2c] sm:$0x3]
      %v1352 = vld [vmem:[#allocation2 + $0x4] sm:$0xc]
      %v1356 = vunpack.c.l.b16 %v1348
      %v1357 = vunpack.c.l.b16 %v1349
      %v1358 = vunpack.c.l.b16 %v1350
      %v1359 = vpack.c.b16 %v1220, %v1356
      %v1360 = vpack.c.b16 %v1222, %v1221
      %v1361 = vpack.c.b16 %v1224, %v1223
      %v1362 = vpack.c.b16 %v1226, %v1225
      %v1363 = vpack.c.b16 %v1357, %v1227
      %v1364 = vpack.c.b16 %v1358, %v1358
      %v1366 = vunpack.c.l.b16 %v1351
      %v1367 = vpack.c.b16 %v1366, %v1366
      %v1369 = vshrl.u32 %v1359, 16
      %v1371 = vshll.u32 %v1359, 16
      %v1373 = vrot.slane %v1371, 1
      %v1374 = vor.u32 %v1369, %v1373
      %v1376 = vshll.u32 %v1360, 16
      %v1378 = vrot.slane %v1376, 1
      %v1379 = vsel %vm377, %v1374, %v1378
      %v1380 = vshrl.u32 %v1360, 16
      %v1382 = vor.u32 %v1380, %v1378
      %v1384 = vshll.u32 %v1361, 16
      %v1386 = vrot.slane %v1384, 1
      %v1387 = vsel %vm377, %v1382, %v1386
      %v1388 = vshrl.u32 %v1361, 16
      %v1390 = vor.u32 %v1388, %v1386
      %v1392 = vshll.u32 %v1362, 16
      %v1394 = vrot.slane %v1392, 1
      %v1395 = vsel %vm377, %v1390, %v1394
      %v1396 = vshrl.u32 %v1362, 16
      %v1398 = vor.u32 %v1396, %v1394
      %v1400 = vshll.u32 %v1363, 16
      %v1402 = vrot.slane %v1400, 1
      %v1403 = vsel %vm377, %v1398, %v1402
      %v1404 = vshrl.u32 %v1363, 16
      %v1406 = vor.u32 %v1404, %v1402
      %v1408 = vshll.u32 %v1367, 16
      %v1410 = vrot.slane %v1408, 1
      %v1411 = vsel %vm377, %v1406, %v1410
      %v1412 = vshrl.u32 %v1367, 16
      %v1414 = vor.u32 %v1412, %v1410
      %1415 = vrot.lane.b32.xlu0 %v1379, 32
      %v1416 = vpop.permute.xlu0 %1415
      %1417 = vrot.lane.b32.xlu0 %v1387, 32
      %v1418 = vpop.permute.xlu0 %1417
      %1419 = vrot.lane.b32.xlu0 %v1395, 32
      %v1420 = vpop.permute.xlu0 %1419
      %1421 = vrot.lane.b32.xlu0 %v1403, 32
      %v1422 = vpop.permute.xlu0 %1421
      %1423 = vrot.lane.b32.xlu0 %v1411, 32
      %v1424 = vpop.permute.xlu0 %1423
      %1425 = vrot.lane.b32.xlu0 %v1414, 32
      %v1426 = vpop.permute.xlu0 %1425
      %v1428 = vunpack.c.l.b16 %v1352
      %v1429 = vpack.c.b16 %v1220, %v1428
      %v1430 = vrot.slane %v1429, 1
      %v1431 = vrot.slane %v1360, 1
      %v1432 = vsel %vm547, %v1430, %v1431
      %v1433 = vrot.slane %v1361, 1
      %v1434 = vsel %vm547, %v1431, %v1433
      %v1435 = vrot.slane %v1362, 1
      %v1436 = vsel %vm547, %v1433, %v1435
      %v1437 = vrot.slane %v1363, 1
      %v1438 = vsel %vm547, %v1435, %v1437
      %v1439 = vrot.slane %v1367, 1
      %v1440 = vsel %vm547, %v1437, %v1439
      %1441 = vrot.lane.b32.xlu0 %v1432, 64
      %v1442 = vpop.permute.xlu0 %1441
      %1443 = vrot.lane.b32.xlu0 %v1434, 64
      %v1444 = vpop.permute.xlu0 %1443
      %1445 = vrot.lane.b32.xlu0 %v1436, 64
      %v1446 = vpop.permute.xlu0 %1445
      %1447 = vrot.lane.b32.xlu0 %v1438, 64
      %v1448 = vpop.permute.xlu0 %1447
      %1449 = vrot.lane.b32.xlu0 %v1440, 64
      %v1450 = vpop.permute.xlu0 %1449
      %1451 = vrot.lane.b32.xlu0 %v1439, 64
      %v1452 = vpop.permute.xlu0 %1451
      %v1454 = vsel %vm1314, %v1359, %v1416
      %v1456 = vsel %vm1314, %v1360, %v1418
      %v1458 = vsel %vm1314, %v1361, %v1420
      %v1460 = vsel %vm1314, %v1362, %v1422
      %v1462 = vsel %vm1314, %v1363, %v1424
      %v1465 = vsel %vm1314, %v1364, %v1426
      %v1467 = vsel %vm1325, %v1454, %v1442
      %v1469 = vsel %vm1325, %v1456, %v1444
      %v1471 = vsel %vm1325, %v1458, %v1446
      %v1473 = vsel %vm1325, %v1460, %v1448
      %v1475 = vsel %vm1325, %v1462, %v1450
      %v1477 = vsel %vm1325, %v1465, %v1452
      %s1478 = scalar_lea.vmem %s3, 48
      %v1479 = vld [vmem:[%s1478] sm:$0xf]
      %v1480 = vld [vmem:[%s1478 + $0x4] sm:$0xf]
      %v1481 = vld [vmem:[%s1478 + $0x8] sm:$0xf]
      %v1482 = vld [vmem:[%s1478 + $0xc] sm:$0xf]
      %v1483 = vld [vmem:[%s1478 + $0x10] sm:$0xf]
      %v1484 = vld [vmem:[%s1478 + $0x14] sm:$0xf]
      %v1485 = vld [vmem:[%s1478 + $0x18] sm:$0xf]
      %v1486 = vld [vmem:[%s1478 + $0x1c] sm:$0xf]
      %v1487 = vld [vmem:[%s1478 + $0x20] sm:$0xf]
      %v1488 = vld [vmem:[%s1478 + $0x24] sm:$0xf]
      %v1489 = vld [vmem:[%s1478 + $0x28] sm:$0xf]
      %v1490 = vld [vmem:[%s1478 + $0x2c] sm:$0xf]
      %v1497 = vrot.slane %v1467, 1
      %v1498 = vrot.slane %v1469, 1
      %v1499 = vsel %vm547, %v1497, %v1498
      %v1500 = vrot.slane %v1471, 1
      %v1501 = vsel %vm547, %v1498, %v1500
      %v1502 = vrot.slane %v1473, 1
      %v1503 = vsel %vm547, %v1500, %v1502
      %v1504 = vrot.slane %v1475, 1
      %v1505 = vsel %vm547, %v1502, %v1504
      %v1506 = vrot.slane %v1477, 1
      %v1507 = vsel %vm547, %v1504, %v1506
      %v1520 = vunpack.c.l.b16 %v1479
      %v1521 = vunpack.c.l.b16 %v1480
      %v1522 = vunpack.c.l.b16 %v1481
      %v1523 = vunpack.c.l.b16 %v1482
      %v1524 = vunpack.c.l.b16 %v1483
      %v1525 = vunpack.c.l.b16 %v1484
      %v1526 = vunpack.c.l.b16 %v1485
      %v1527 = vunpack.c.l.b16 %v1486
      %v1528 = vunpack.c.l.b16 %v1487
      %v1529 = vunpack.c.l.b16 %v1488
      %v1530 = vunpack.c.l.b16 %v1489
      %v1531 = vunpack.c.l.b16 %v1490
      %v1532 = vpack.c.b16 %v1521, %v1520
      %v1533 = vpack.c.b16 %v1523, %v1522
      %v1534 = vpack.c.b16 %v1525, %v1524
      %v1535 = vpack.c.b16 %v1527, %v1526
      %v1536 = vpack.c.b16 %v1529, %v1528
      %v1537 = vpack.c.b16 %v1531, %v1530
      %vm1544 = vcmask 785408
      %v1546 = vsel %vm1544, %v1499, 0
      %v1549 = vsel %vm1544, %v1501, 0
      %v1552 = vsel %vm1544, %v1503, 0
      %v1555 = vsel %vm1544, %v1505, 0
      %v1558 = vsel %vm1544, %v1507, 0
      %1560 = vmatprep.subr.bf16.mxu0 0
      %1561 = vmatpush1.bf16.msra.mxu0 0
      %1562 = vmatprep.subr.bf16.mxu0 0
      %1563 = vmatpush1.bf16.msra.mxu0 0
      %1564 = vmatprep.subr.bf16.mxu0 0
      %1565 = vmatpush1.bf16.msra.mxu0 %v1537
      %1566 = vmatprep.subr.bf16.mxu0 0
      %1567 = vmatpush1.bf16.msra.mxu0 %v1536
      %1568 = vmatprep.subr.bf16.mxu0 0
      %1569 = vmatpush1.bf16.msra.mxu0 %v1535
      %1570 = vmatprep.subr.bf16.mxu0 0
      %1571 = vmatpush1.bf16.msra.mxu0 %v1534
      %1572 = vmatprep.subr.bf16.mxu0 0
      %1573 = vmatpush1.bf16.msra.mxu0 %v1533
      %1574 = vmatprep.subr.bf16.mxu0 0
      %1575 = vmatpush1.bf16.msra.mxu0 %v1532
      %1576 = vmatprep.subr.bf16.mxu0 0
      %1577 = vmatpush2.bf16.msra.mxu0 0
      %1578 = vmatprep.subr.bf16.mxu0 0
      %1579 = vmatpush2.bf16.msra.mxu0 0
      %1580 = vmatprep.subr.bf16.mxu0 0
      %1581 = vmatpush2.bf16.msra.mxu0 0
      %1582 = vmatprep.subr.bf16.mxu0 0
      %1583 = vmatpush2.bf16.msra.mxu0 0
      %1584 = vmatprep.subr.bf16.mxu0 0
      %1585 = vmatpush2.bf16.msra.mxu0 0
      %1586 = vmatprep.subr.bf16.mxu0 0
      %1587 = vmatpush2.bf16.msra.mxu0 0
      %1588 = vmatprep.subr.bf16.mxu0 0
      %1589 = vmatpush2.bf16.msra.mxu0 0
      %1590 = vmatprep.subr.bf16.mxu0 0
      %1591 = vmatpush2.bf16.msra.mxu0 0
      %1592 = vmatprep.mubr.bf16.mxu0 0
      %1593 = vmatmul.mubr.bf16.gmra.mxu0 %v1546
      %v1594 = vpop.f32.mrf.mxu0
      %v1595 = vadd.f32 0.0, %v1594
      %v1596 = vpop.f32.mrf.mxu0
      %v1597 = vpop.f32.mrf.mxu0
      %v1598 = vadd.f32 0.0, %v1597
      %v1599 = vpop.f32.mrf.mxu0
      %1600 = vmatprep.mubr.bf16.mxu0 0
      %1601 = vmatmul.mubr.bf16.gmra.mxu0 %v1549
      %v1602 = vpop.f32.mrf.mxu0
      %v1603 = vadd.f32 0.0, %v1602
      %v1604 = vpop.f32.mrf.mxu0
      %v1605 = vpop.f32.mrf.mxu0
      %v1606 = vadd.f32 0.0, %v1605
      %v1607 = vpop.f32.mrf.mxu0
      %1608 = vmatprep.mubr.bf16.mxu0 0
      %1609 = vmatmul.mubr.bf16.gmra.mxu0 %v1552
      %v1610 = vpop.f32.mrf.mxu0
      %v1611 = vadd.f32 0.0, %v1610
      %v1612 = vpop.f32.mrf.mxu0
      %v1613 = vpop.f32.mrf.mxu0
      %v1614 = vadd.f32 0.0, %v1613
      %v1615 = vpop.f32.mrf.mxu0
      %1616 = vmatprep.mubr.bf16.mxu0 0
      %1617 = vmatmul.mubr.bf16.gmra.mxu0 %v1555
      %v1618 = vpop.f32.mrf.mxu0
      %v1619 = vadd.f32 0.0, %v1618
      %v1620 = vpop.f32.mrf.mxu0
      %v1621 = vpop.f32.mrf.mxu0
      %v1622 = vadd.f32 0.0, %v1621
      %v1623 = vpop.f32.mrf.mxu0
      %1624 = vmatprep.mubr.bf16.mxu0 0
      %1625 = vmatmul.mubr.bf16.gmra.mxu0 %v1558
      %v1626 = vpop.f32.mrf.mxu0
      %v1627 = vadd.f32 0.0, %v1626
      %v1628 = vpop.f32.mrf.mxu0
      %v1629 = vpop.f32.mrf.mxu0
      %v1630 = vadd.f32 0.0, %v1629
      %v1631 = vpop.f32.mrf.mxu0
      %1632 = vdwg.mxu0
      %v1645 = vunpack.c.l.b16 %v1336
      %v1646 = vunpack.c.l.b16 %v1337
      %v1647 = vunpack.c.l.b16 %v1338
      %v1648 = vunpack.c.l.b16 %v1339
      %v1649 = vunpack.c.l.b16 %v1340
      %v1650 = vunpack.c.l.b16 %v1341
      %v1651 = vunpack.c.l.b16 %v1342
      %v1652 = vunpack.c.l.b16 %v1343
      %v1653 = vunpack.c.l.b16 %v1344
      %v1654 = vunpack.c.l.b16 %v1345
      %v1655 = vunpack.c.l.b16 %v1346
      %v1656 = vunpack.c.l.b16 %v1347
      %v1657 = vpack.c.b16 %v1646, %v1645
      %v1658 = vpack.c.b16 %v1648, %v1647
      %v1659 = vpack.c.b16 %v1650, %v1649
      %v1660 = vpack.c.b16 %v1652, %v1651
      %v1661 = vpack.c.b16 %v1654, %v1653
      %v1662 = vpack.c.b16 %v1656, %v1655
      %v1669 = vsel %vm1544, %v1327, 0
      %v1671 = vsel %vm1544, %v1329, 0
      %v1673 = vsel %vm1544, %v1331, 0
      %v1675 = vsel %vm1544, %v1333, 0
      %v1677 = vsel %vm1544, %v1335, 0
      %1679 = vmatprep.subr.bf16.mxu0 0
      %1680 = vmatpush1.bf16.msra.mxu0 0
      %1681 = vmatprep.subr.bf16.mxu0 0
      %1682 = vmatpush1.bf16.msra.mxu0 0
      %1683 = vmatprep.subr.bf16.mxu0 0
      %1684 = vmatpush1.bf16.msra.mxu0 %v1662
      %1685 = vmatprep.subr.bf16.mxu0 0
      %1686 = vmatpush1.bf16.msra.mxu0 %v1661
      %1687 = vmatprep.subr.bf16.mxu0 0
      %1688 = vmatpush1.bf16.msra.mxu0 %v1660
      %1689 = vmatprep.subr.bf16.mxu0 0
      %1690 = vmatpush1.bf16.msra.mxu0 %v1659
      %1691 = vmatprep.subr.bf16.mxu0 0
      %1692 = vmatpush1.bf16.msra.mxu0 %v1658
      %1693 = vmatprep.subr.bf16.mxu0 0
      %1694 = vmatpush1.bf16.msra.mxu0 %v1657
      %1695 = vmatprep.subr.bf16.mxu0 0
      %1696 = vmatpush2.bf16.msra.mxu0 0
      %1697 = vmatprep.subr.bf16.mxu0 0
      %1698 = vmatpush2.bf16.msra.mxu0 0
      %1699 = vmatprep.subr.bf16.mxu0 0
      %1700 = vmatpush2.bf16.msra.mxu0 0
      %1701 = vmatprep.subr.bf16.mxu0 0
      %1702 = vmatpush2.bf16.msra.mxu0 0
      %1703 = vmatprep.subr.bf16.mxu0 0
      %1704 = vmatpush2.bf16.msra.mxu0 0
      %1705 = vmatprep.subr.bf16.mxu0 0
      %1706 = vmatpush2.bf16.msra.mxu0 0
      %1707 = vmatprep.subr.bf16.mxu0 0
      %1708 = vmatpush2.bf16.msra.mxu0 0
      %1709 = vmatprep.subr.bf16.mxu0 0
      %1710 = vmatpush2.bf16.msra.mxu0 0
      %1711 = vmatprep.mubr.bf16.mxu0 0
      %1712 = vmatmul.mubr.bf16.gmra.mxu0 %v1669
      %v1713 = vpop.f32.mrf.mxu0
      %v1714 = vadd.f32 %v1595, %v1713
      %v1715 = vpop.f32.mrf.mxu0
      %v1716 = vpop.f32.mrf.mxu0
      %v1717 = vadd.f32 %v1598, %v1716
      %v1718 = vpop.f32.mrf.mxu0
      %1719 = vmatprep.mubr.bf16.mxu0 0
      %1720 = vmatmul.mubr.bf16.gmra.mxu0 %v1671
      %v1721 = vpop.f32.mrf.mxu0
      %v1722 = vadd.f32 %v1603, %v1721
      %v1723 = vpop.f32.mrf.mxu0
      %v1724 = vpop.f32.mrf.mxu0
      %v1725 = vadd.f32 %v1606, %v1724
      %v1726 = vpop.f32.mrf.mxu0
      %1727 = vmatprep.mubr.bf16.mxu0 0
      %1728 = vmatmul.mubr.bf16.gmra.mxu0 %v1673
      %v1729 = vpop.f32.mrf.mxu0
      %v1730 = vadd.f32 %v1611, %v1729
      %v1731 = vpop.f32.mrf.mxu0
      %v1732 = vpop.f32.mrf.mxu0
      %v1733 = vadd.f32 %v1614, %v1732
      %v1734 = vpop.f32.mrf.mxu0
      %1735 = vmatprep.mubr.bf16.mxu0 0
      %1736 = vmatmul.mubr.bf16.gmra.mxu0 %v1675
      %v1737 = vpop.f32.mrf.mxu0
      %v1738 = vadd.f32 %v1619, %v1737
      %v1739 = vpop.f32.mrf.mxu0
      %v1740 = vpop.f32.mrf.mxu0
      %v1741 = vadd.f32 %v1622, %v1740
      %v1742 = vpop.f32.mrf.mxu0
      %1743 = vmatprep.mubr.bf16.mxu0 0
      %1744 = vmatmul.mubr.bf16.gmra.mxu0 %v1677
      %v1745 = vpop.f32.mrf.mxu0
      %v1746 = vadd.f32 %v1627, %v1745
      %v1747 = vpop.f32.mrf.mxu0
      %v1748 = vpop.f32.mrf.mxu0
      %v1749 = vadd.f32 %v1630, %v1748
      %v1750 = vpop.f32.mrf.mxu0
      %1751 = vdwg.mxu0
      %v1752 = vld [vmem:[#allocation2 + $0x8] sm:$0xc]
      %v1753 = vld [vmem:[#allocation2 + $0xc] sm:$0xf]
      %v1754 = vld [vmem:[#allocation2 + $0x10] sm:$0xf]
      %v1755 = vld [vmem:[#allocation2 + $0x14] sm:$0xf]
      %v1756 = vld [vmem:[#allocation2 + $0x18] sm:$0xf]
      %v1757 = vld [vmem:[#allocation2 + $0x1c] sm:$0xf]
      %v1758 = vld [vmem:[#allocation2 + $0x20] sm:$0xf]
      %v1759 = vld [vmem:[#allocation2 + $0x24] sm:$0xf]
      %v1760 = vld [vmem:[#allocation2 + $0x28] sm:$0xf]
      %v1761 = vld [vmem:[#allocation2 + $0x2c] sm:$0xf]
      %v1762 = vld [vmem:[#allocation2 + $0x30] sm:$0x3]
      %v1763 = vld [vmem:[#allocation2 + $0x30] sm:$0x7]
      %v1764 = vld [vmem:[#allocation2 + $0x8] sm:$0x8]
      %v1776 = vunpack.c.l.b16 %v1752
      %v1777 = vunpack.c.l.b16 %v1753
      %v1778 = vunpack.c.l.b16 %v1754
      %v1779 = vunpack.c.l.b16 %v1755
      %v1780 = vunpack.c.l.b16 %v1756
      %v1781 = vunpack.c.l.b16 %v1757
      %v1782 = vunpack.c.l.b16 %v1758
      %v1783 = vunpack.c.l.b16 %v1759
      %v1784 = vunpack.c.l.b16 %v1760
      %v1785 = vunpack.c.l.b16 %v1761
      %v1786 = vunpack.c.l.b16 %v1762
      %v1787 = vpack.c.b16 %v1777, %v1776
      %v1788 = vpack.c.b16 %v1779, %v1778
      %v1789 = vpack.c.b16 %v1781, %v1780
      %v1790 = vpack.c.b16 %v1783, %v1782
      %v1791 = vpack.c.b16 %v1785, %v1784
      %v1792 = vpack.c.b16 %v1786, %v1786
      %v1794 = vunpack.c.l.b16 %v1763
      %v1795 = vpack.c.b16 %v1794, %v1794
      %v1797 = vshrl.u32 %v1787, 16
      %v1799 = vshll.u32 %v1787, 16
      %v1801 = vrot.slane %v1799, 1
      %v1802 = vor.u32 %v1797, %v1801
      %v1804 = vshll.u32 %v1788, 16
      %v1806 = vrot.slane %v1804, 1
      %v1807 = vsel %vm377, %v1802, %v1806
      %v1808 = vshrl.u32 %v1788, 16
      %v1810 = vor.u32 %v1808, %v1806
      %v1812 = vshll.u32 %v1789, 16
      %v1814 = vrot.slane %v1812, 1
      %v1815 = vsel %vm377, %v1810, %v1814
      %v1816 = vshrl.u32 %v1789, 16
      %v1818 = vor.u32 %v1816, %v1814
      %v1820 = vshll.u32 %v1790, 16
      %v1822 = vrot.slane %v1820, 1
      %v1823 = vsel %vm377, %v1818, %v1822
      %v1824 = vshrl.u32 %v1790, 16
      %v1826 = vor.u32 %v1824, %v1822
      %v1828 = vshll.u32 %v1791, 16
      %v1830 = vrot.slane %v1828, 1
      %v1831 = vsel %vm377, %v1826, %v1830
      %v1832 = vshrl.u32 %v1791, 16
      %v1834 = vor.u32 %v1832, %v1830
      %v1836 = vshll.u32 %v1795, 16
      %v1838 = vrot.slane %v1836, 1
      %v1839 = vsel %vm377, %v1834, %v1838
      %v1840 = vshrl.u32 %v1795, 16
      %v1842 = vor.u32 %v1840, %v1838
      %1843 = vrot.lane.b32.xlu0 %v1807, 32
      %v1844 = vpop.permute.xlu0 %1843
      %1845 = vrot.lane.b32.xlu0 %v1815, 32
      %v1846 = vpop.permute.xlu0 %1845
      %1847 = vrot.lane.b32.xlu0 %v1823, 32
      %v1848 = vpop.permute.xlu0 %1847
      %1849 = vrot.lane.b32.xlu0 %v1831, 32
      %v1850 = vpop.permute.xlu0 %1849
      %1851 = vrot.lane.b32.xlu0 %v1839, 32
      %v1852 = vpop.permute.xlu0 %1851
      %1853 = vrot.lane.b32.xlu0 %v1842, 32
      %v1854 = vpop.permute.xlu0 %1853
      %v1856 = vunpack.c.l.b16 %v1764
      %v1857 = vpack.c.b16 %v1777, %v1856
      %v1858 = vrot.slane %v1857, 1
      %v1859 = vrot.slane %v1788, 1
      %v1860 = vsel %vm547, %v1858, %v1859
      %v1861 = vrot.slane %v1789, 1
      %v1862 = vsel %vm547, %v1859, %v1861
      %v1863 = vrot.slane %v1790, 1
      %v1864 = vsel %vm547, %v1861, %v1863
      %v1865 = vrot.slane %v1791, 1
      %v1866 = vsel %vm547, %v1863, %v1865
      %v1867 = vrot.slane %v1795, 1
      %v1868 = vsel %vm547, %v1865, %v1867
      %1869 = vrot.lane.b32.xlu0 %v1860, 64
      %v1870 = vpop.permute.xlu0 %1869
      %1871 = vrot.lane.b32.xlu0 %v1862, 64
      %v1872 = vpop.permute.xlu0 %1871
      %1873 = vrot.lane.b32.xlu0 %v1864, 64
      %v1874 = vpop.permute.xlu0 %1873
      %1875 = vrot.lane.b32.xlu0 %v1866, 64
      %v1876 = vpop.permute.xlu0 %1875
      %1877 = vrot.lane.b32.xlu0 %v1868, 64
      %v1878 = vpop.permute.xlu0 %1877
      %1879 = vrot.lane.b32.xlu0 %v1867, 64
      %v1880 = vpop.permute.xlu0 %1879
      %v1882 = vsel %vm1314, %v1787, %v1844
      %v1884 = vsel %vm1314, %v1788, %v1846
      %v1886 = vsel %vm1314, %v1789, %v1848
      %v1888 = vsel %vm1314, %v1790, %v1850
      %v1890 = vsel %vm1314, %v1791, %v1852
      %v1893 = vsel %vm1314, %v1792, %v1854
      %v1895 = vsel %vm1325, %v1882, %v1870
      %v1897 = vsel %vm1325, %v1884, %v1872
      %v1899 = vsel %vm1325, %v1886, %v1874
      %v1901 = vsel %vm1325, %v1888, %v1876
      %v1903 = vsel %vm1325, %v1890, %v1878
      %v1905 = vsel %vm1325, %v1893, %v1880
      %s1906 = scalar_lea.vmem %s3, 96
      %v1907 = vld [vmem:[%s1906] sm:$0xf]
      %v1908 = vld [vmem:[%s1906 + $0x4] sm:$0xf]
      %v1909 = vld [vmem:[%s1906 + $0x8] sm:$0xf]
      %v1910 = vld [vmem:[%s1906 + $0xc] sm:$0xf]
      %v1911 = vld [vmem:[%s1906 + $0x10] sm:$0xf]
      %v1912 = vld [vmem:[%s1906 + $0x14] sm:$0xf]
      %v1913 = vld [vmem:[%s1906 + $0x18] sm:$0xf]
      %v1914 = vld [vmem:[%s1906 + $0x1c] sm:$0xf]
      %v1915 = vld [vmem:[%s1906 + $0x20] sm:$0xf]
      %v1916 = vld [vmem:[%s1906 + $0x24] sm:$0xf]
      %v1917 = vld [vmem:[%s1906 + $0x28] sm:$0xf]
      %v1918 = vld [vmem:[%s1906 + $0x2c] sm:$0xf]
      %vm1925 = vcmask 1045504
      %v1926 = vrot.slane %v1895, 2
      %v1927 = vrot.slane %v1897, 2
      %v1928 = vsel %vm1925, %v1926, %v1927
      %v1929 = vrot.slane %v1899, 2
      %v1930 = vsel %vm1925, %v1927, %v1929
      %v1931 = vrot.slane %v1901, 2
      %v1932 = vsel %vm1925, %v1929, %v1931
      %v1933 = vrot.slane %v1903, 2
      %v1934 = vsel %vm1925, %v1931, %v1933
      %v1935 = vrot.slane %v1905, 2
      %v1936 = vsel %vm1925, %v1933, %v1935
      %v1949 = vunpack.c.l.b16 %v1907
      %v1950 = vunpack.c.l.b16 %v1908
      %v1951 = vunpack.c.l.b16 %v1909
      %v1952 = vunpack.c.l.b16 %v1910
      %v1953 = vunpack.c.l.b16 %v1911
      %v1954 = vunpack.c.l.b16 %v1912
      %v1955 = vunpack.c.l.b16 %v1913
      %v1956 = vunpack.c.l.b16 %v1914
      %v1957 = vunpack.c.l.b16 %v1915
      %v1958 = vunpack.c.l.b16 %v1916
      %v1959 = vunpack.c.l.b16 %v1917
      %v1960 = vunpack.c.l.b16 %v1918
      %v1961 = vpack.c.b16 %v1950, %v1949
      %v1962 = vpack.c.b16 %v1952, %v1951
      %v1963 = vpack.c.b16 %v1954, %v1953
      %v1964 = vpack.c.b16 %v1956, %v1955
      %v1965 = vpack.c.b16 %v1958, %v1957
      %v1966 = vpack.c.b16 %v1960, %v1959
      %v1974 = vsel %vm1544, %v1928, 0
      %v1977 = vsel %vm1544, %v1930, 0
      %v1980 = vsel %vm1544, %v1932, 0
      %v1983 = vsel %vm1544, %v1934, 0
      %v1986 = vsel %vm1544, %v1936, 0
      %1988 = vmatprep.subr.bf16.mxu0 0
      %1989 = vmatpush1.bf16.msra.mxu0 0
      %1990 = vmatprep.subr.bf16.mxu0 0
      %1991 = vmatpush1.bf16.msra.mxu0 0
      %1992 = vmatprep.subr.bf16.mxu0 0
      %1993 = vmatpush1.bf16.msra.mxu0 %v1966
      %1994 = vmatprep.subr.bf16.mxu0 0
      %1995 = vmatpush1.bf16.msra.mxu0 %v1965
      %1996 = vmatprep.subr.bf16.mxu0 0
      %1997 = vmatpush1.bf16.msra.mxu0 %v1964
      %1998 = vmatprep.subr.bf16.mxu0 0
      %1999 = vmatpush1.bf16.msra.mxu0 %v1963
      %2000 = vmatprep.subr.bf16.mxu0 0
      %2001 = vmatpush1.bf16.msra.mxu0 %v1962
      %2002 = vmatprep.subr.bf16.mxu0 0
      %2003 = vmatpush1.bf16.msra.mxu0 %v1961
      %2004 = vmatprep.subr.bf16.mxu0 0
      %2005 = vmatpush2.bf16.msra.mxu0 0
      %2006 = vmatprep.subr.bf16.mxu0 0
      %2007 = vmatpush2.bf16.msra.mxu0 0
      %2008 = vmatprep.subr.bf16.mxu0 0
      %2009 = vmatpush2.bf16.msra.mxu0 0
      %2010 = vmatprep.subr.bf16.mxu0 0
      %2011 = vmatpush2.bf16.msra.mxu0 0
      %2012 = vmatprep.subr.bf16.mxu0 0
      %2013 = vmatpush2.bf16.msra.mxu0 0
      %2014 = vmatprep.subr.bf16.mxu0 0
      %2015 = vmatpush2.bf16.msra.mxu0 0
      %2016 = vmatprep.subr.bf16.mxu0 0
      %2017 = vmatpush2.bf16.msra.mxu0 0
      %2018 = vmatprep.subr.bf16.mxu0 0
      %2019 = vmatpush2.bf16.msra.mxu0 0
      %2020 = vmatprep.mubr.bf16.mxu0 0
      %2021 = vmatmul.mubr.bf16.gmra.mxu0 %v1974
      %v2022 = vpop.f32.mrf.mxu0
      %v2023 = vadd.f32 0.0, %v2022
      %v2024 = vpop.f32.mrf.mxu0
      %v2025 = vpop.f32.mrf.mxu0
      %v2026 = vadd.f32 0.0, %v2025
      %v2027 = vpop.f32.mrf.mxu0
      %2028 = vmatprep.mubr.bf16.mxu0 0
      %2029 = vmatmul.mubr.bf16.gmra.mxu0 %v1977
      %v2030 = vpop.f32.mrf.mxu0
      %v2031 = vadd.f32 0.0, %v2030
      %v2032 = vpop.f32.mrf.mxu0
      %v2033 = vpop.f32.mrf.mxu0
      %v2034 = vadd.f32 0.0, %v2033
      %v2035 = vpop.f32.mrf.mxu0
      %2036 = vmatprep.mubr.bf16.mxu0 0
      %2037 = vmatmul.mubr.bf16.gmra.mxu0 %v1980
      %v2038 = vpop.f32.mrf.mxu0
      %v2039 = vadd.f32 0.0, %v2038
      %v2040 = vpop.f32.mrf.mxu0
      %v2041 = vpop.f32.mrf.mxu0
      %v2042 = vadd.f32 0.0, %v2041
      %v2043 = vpop.f32.mrf.mxu0
      %2044 = vmatprep.mubr.bf16.mxu0 0
      %2045 = vmatmul.mubr.bf16.gmra.mxu0 %v1983
      %v2046 = vpop.f32.mrf.mxu0
      %v2047 = vadd.f32 0.0, %v2046
      %v2048 = vpop.f32.mrf.mxu0
      %v2049 = vpop.f32.mrf.mxu0
      %v2050 = vadd.f32 0.0, %v2049
      %v2051 = vpop.f32.mrf.mxu0
      %2052 = vmatprep.mubr.bf16.mxu0 0
      %2053 = vmatmul.mubr.bf16.gmra.mxu0 %v1986
      %v2054 = vpop.f32.mrf.mxu0
      %v2055 = vadd.f32 0.0, %v2054
      %v2056 = vpop.f32.mrf.mxu0
      %v2057 = vpop.f32.mrf.mxu0
      %v2058 = vadd.f32 0.0, %v2057
      %v2059 = vpop.f32.mrf.mxu0
      %2060 = vdwg.mxu0
      %v2061 = vadd.f32 %v1714, %v2023
      %v2062 = vadd.f32 %v1717, %v2026
      %v2063 = vadd.f32 %v1722, %v2031
      %v2064 = vadd.f32 %v1725, %v2034
      %v2065 = vadd.f32 %v1730, %v2039
      %v2066 = vadd.f32 %v1733, %v2042
      %v2067 = vadd.f32 %v1738, %v2047
      %v2068 = vadd.f32 %v1741, %v2050
      %v2069 = vadd.f32 %v1746, %v2055
      %v2070 = vadd.f32 %v1749, %v2058
      %v2071 = vld [vmem:[%s4] sm:$0x1]
      %v2073 = vlaneseq
      %v2074 = vshrl.u32 %v2073, 7
      %v2075 = vsub.s32 0, %v2074
      %v2076 = vrot.slane %v2071, %v2075
      %v2078 = vadd.f32 %v2061, %v2076
      %v2079 = vadd.f32 %v2062, %v2076
      %v2080 = vadd.f32 %v2063, %v2076
      %v2081 = vadd.f32 %v2064, %v2076
      %v2082 = vadd.f32 %v2065, %v2076
      %v2083 = vadd.f32 %v2066, %v2076
      %v2084 = vadd.f32 %v2067, %v2076
      %v2085 = vadd.f32 %v2068, %v2076
      %v2086 = vadd.f32 %v2069, %v2076
      %v2087 = vadd.f32 %v2070, %v2076
      %v2088 = vmul.f32 %v2078, 0.01
      %v2089 = vmul.f32 %v2079, 0.01
      %v2090 = vmul.f32 %v2080, 0.01
      %v2091 = vmul.f32 %v2081, 0.01
      %v2092 = vmul.f32 %v2082, 0.01
      %v2093 = vmul.f32 %v2083, 0.01
      %v2094 = vmul.f32 %v2084, 0.01
      %v2095 = vmul.f32 %v2085, 0.01
      %v2096 = vmul.f32 %v2086, 0.01
      %v2097 = vmul.f32 %v2087, 0.01
      %v2098 = vmax.f32 %v2078, %v2088
      %v2099 = vmax.f32 %v2079, %v2089
      %v2100 = vmax.f32 %v2080, %v2090
      %v2101 = vmax.f32 %v2081, %v2091
      %v2102 = vmax.f32 %v2082, %v2092
      %v2103 = vmax.f32 %v2083, %v2093
      %v2104 = vmax.f32 %v2084, %v2094
      %v2105 = vmax.f32 %v2085, %v2095
      %v2106 = vmax.f32 %v2086, %v2096
      %v2107 = vmax.f32 %v2087, %v2097
      %v2108 = vrot.slane %v2098, 7
      %v2109 = vrot.slane %v2099, 7
      %v2110 = vrot.slane %v2100, 7
      %v2111 = vrot.slane %v2101, 7
      %v2112 = vrot.slane %v2102, 7
      %v2113 = vrot.slane %v2103, 7
      %v2114 = vrot.slane %v2104, 7
      %v2115 = vrot.slane %v2105, 7
      %v2116 = vrot.slane %v2106, 7
      %v2117 = vrot.slane %v2107, 7
      %v2118 = vsel %vm954, %v2116, %v2117
      %v2119 = vsel %vm954, %v2115, %v2116
      %v2120 = vsel %vm954, %v2114, %v2115
      %v2121 = vsel %vm954, %v2113, %v2114
      %v2122 = vsel %vm954, %v2112, %v2113
      %v2123 = vsel %vm954, %v2111, %v2112
      %v2124 = vsel %vm954, %v2110, %v2111
      %v2125 = vsel %vm954, %v2109, %v2110
      %v2126 = vsel %vm954, %v2108, %v2109
      %v2127 = vsel %vm954, %v2117, %v2108
      %v2128 = vrot.slane %v2098, 1
      %v2129 = vrot.slane %v2099, 1
      %v2130 = vrot.slane %v2100, 1
      %v2131 = vrot.slane %v2101, 1
      %v2132 = vrot.slane %v2102, 1
      %v2133 = vrot.slane %v2103, 1
      %v2134 = vrot.slane %v2104, 1
      %v2135 = vrot.slane %v2105, 1
      %v2136 = vrot.slane %v2106, 1
      %v2137 = vrot.slane %v2107, 1
      %v2138 = vsel %vm975, %v2136, %v2137
      %v2139 = vsel %vm975, %v2135, %v2136
      %v2140 = vsel %vm975, %v2134, %v2135
      %v2141 = vsel %vm975, %v2133, %v2134
      %v2142 = vsel %vm975, %v2132, %v2133
      %v2143 = vsel %vm975, %v2131, %v2132
      %v2144 = vsel %vm975, %v2130, %v2131
      %v2145 = vsel %vm975, %v2129, %v2130
      %v2146 = vsel %vm975, %v2128, %v2129
      %v2147 = vsel %vm975, %v2137, %v2128
      %v2148 = vrot.slane %v2098, 5
      %v2149 = vrot.slane %v2099, 5
      %v2150 = vrot.slane %v2100, 5
      %v2151 = vrot.slane %v2101, 5
      %v2152 = vrot.slane %v2102, 5
      %v2153 = vrot.slane %v2103, 5
      %v2154 = vrot.slane %v2104, 5
      %v2155 = vrot.slane %v2105, 5
      %v2156 = vrot.slane %v2106, 5
      %v2157 = vrot.slane %v2107, 5
      %v2158 = vsel %vm996, %v2156, %v2157
      %v2159 = vsel %vm996, %v2155, %v2156
      %v2160 = vsel %vm996, %v2154, %v2155
      %v2161 = vsel %vm996, %v2153, %v2154
      %v2162 = vsel %vm996, %v2152, %v2153
      %v2163 = vsel %vm996, %v2151, %v2152
      %v2164 = vsel %vm996, %v2150, %v2151
      %v2165 = vsel %vm996, %v2149, %v2150
      %v2166 = vsel %vm996, %v2148, %v2149
      %v2167 = vsel %vm996, %v2157, %v2148
      %v2168 = vsel %vm1037, %v2167, %v2127
      %v2169 = vsel %vm1038, %v2166, %v2126
      %v2170 = vsel %vm1039, %v2165, %v2125
      %v2171 = vsel %vm1040, %v2164, %v2124
      %v2172 = vsel %vm1041, %v2163, %v2123
      %v2173 = vsel %vm1042, %v2162, %v2122
      %v2174 = vsel %vm1043, %v2161, %v2121
      %v2175 = vsel %vm1044, %v2160, %v2120
      %v2176 = vsel %vm1045, %v2159, %v2119
      %v2177 = vsel %vm1046, %v2158, %v2118
      %v2178 = vsel %vm1067, %v2146, %v2168
      %v2179 = vsel %vm1068, %v2145, %v2169
      %v2180 = vsel %vm1069, %v2144, %v2170
      %v2181 = vsel %vm1070, %v2143, %v2171
      %v2182 = vsel %vm1071, %v2142, %v2172
      %v2183 = vsel %vm1072, %v2141, %v2173
      %v2184 = vsel %vm1073, %v2140, %v2174
      %v2185 = vsel %vm1074, %v2139, %v2175
      %v2186 = vsel %vm1075, %v2138, %v2176
      %v2187 = vsel %vm1076, %v2147, %v2177
      %v2188 = vpack.c.bf16 %v2179, %v2178
      %v2189 = vpack.c.bf16 %v2181, %v2180
      %v2190 = vpack.c.bf16 %v2183, %v2182
      %v2191 = vpack.c.bf16 %v2185, %v2184
      %v2192 = vpack.c.bf16 %v2187, %v2186
      %v2198 = vunpack.c.l.b16 %v2188
      %v2199 = vunpack.c.h.b16 %v2188
      %v2200 = vunpack.c.l.b16 %v2189
      %v2201 = vunpack.c.h.b16 %v2189
      %v2202 = vunpack.c.l.b16 %v2190
      %v2203 = vunpack.c.h.b16 %v2190
      %v2204 = vunpack.c.l.b16 %v2191
      %v2205 = vunpack.c.h.b16 %v2191
      %v2206 = vunpack.c.l.b16 %v2192
      %v2207 = vunpack.c.h.b16 %v2192
      %v2208 = vpack.c.b16 %v2198, %v2198
      %v2209 = vpack.c.b16 %v2199, %v2199
      %v2210 = vpack.c.b16 %v2200, %v2200
      %v2211 = vpack.c.b16 %v2201, %v2201
      %v2212 = vpack.c.b16 %v2202, %v2202
      %v2213 = vpack.c.b16 %v2203, %v2203
      %v2214 = vpack.c.b16 %v2204, %v2204
      %v2215 = vpack.c.b16 %v2205, %v2205
      %v2216 = vpack.c.b16 %v2206, %v2206
      %v2217 = vpack.c.b16 %v2207, %v2207
      %v2218 = vrot.slane %v2208, 7
      %v2219 = vrot.slane %v2218, 4
      %v2220 = vrot.slane %v2209, 7
      %v2221 = vsel %vm1119, %v2219, %v2220
      %v2222 = vrot.slane %v2220, 4
      %v2223 = vrot.slane %v2210, 7
      %v2224 = vsel %vm1119, %v2222, %v2223
      %v2225 = vrot.slane %v2223, 4
      %v2226 = vrot.slane %v2211, 7
      %v2227 = vsel %vm1119, %v2225, %v2226
      %v2228 = vrot.slane %v2226, 4
      %v2229 = vrot.slane %v2212, 7
      %v2230 = vsel %vm1119, %v2228, %v2229
      %v2231 = vrot.slane %v2229, 4
      %v2232 = vrot.slane %v2213, 7
      %v2233 = vsel %vm1119, %v2231, %v2232
      %v2234 = vrot.slane %v2232, 4
      %v2235 = vrot.slane %v2214, 7
      %v2236 = vsel %vm1119, %v2234, %v2235
      %v2237 = vrot.slane %v2235, 4
      %v2238 = vrot.slane %v2215, 7
      %v2239 = vsel %vm1119, %v2237, %v2238
      %v2240 = vrot.slane %v2238, 4
      %v2241 = vrot.slane %v2216, 7
      %v2242 = vsel %vm1119, %v2240, %v2241
      %v2243 = vrot.slane %v2241, 4
      %v2244 = vrot.slane %v2217, 7
      %v2245 = vsel %vm1119, %v2243, %v2244
      %v2246 = vrot.slane %v2244, 4
      %2258 = vst.msk [vmem:[#allocation3 + $0x4] sm:$0xe] %vm1160, %v2218
      %2259 = vst.msk [vmem:[#allocation3 + $0x8] sm:$0xf] %vm1162, %v2221
      %2260 = vst.msk [vmem:[#allocation3 + $0xc] sm:$0xf] %vm1162, %v2224
      %2261 = vst.msk [vmem:[#allocation3 + $0x10] sm:$0xf] %vm1162, %v2227
      %2262 = vst.msk [vmem:[#allocation3 + $0x14] sm:$0xf] %vm1162, %v2230
      %2263 = vst.msk [vmem:[#allocation3 + $0x18] sm:$0xf] %vm1162, %v2233
      %2264 = vst.msk [vmem:[#allocation3 + $0x1c] sm:$0xf] %vm1162, %v2236
      %2265 = vst.msk [vmem:[#allocation3 + $0x20] sm:$0xf] %vm1162, %v2239
      %2266 = vst.msk [vmem:[#allocation3 + $0x24] sm:$0xf] %vm1162, %v2242
      %2267 = vst.msk [vmem:[#allocation3 + $0x28] sm:$0xf] %vm1162, %v2245
      %2268 = vst.msk [vmem:[#allocation3 + $0x2c] sm:$0x1] %vm1172, %v2246
      %v2269 = vrot.slane %v2209, 5
      %v2270 = vrot.slane %v2269, 4
      %v2271 = vrot.slane %v2210, 5
      %v2272 = vsel %vm1176, %v2270, %v2271
      %v2273 = vrot.slane %v2271, 4
      %2276 = vst.msk [vmem:[#allocation3] sm:$0xf] %vm1162, %v2272
      %2277 = vst.msk [vmem:[#allocation3 + $0x4] sm:$0x1] %vm1172, %v2273
      %v2278 = vrot.slane %v2215, 5
      %v2279 = vrot.slane %v2278, 4
      %v2280 = vrot.slane %v2216, 5
      %v2281 = vsel %vm1176, %v2279, %v2280
      %v2282 = vrot.slane %v2280, 4
      %2285 = vst.msk [vmem:[#allocation3 + $0x2c] sm:$0xe] %vm1160, %v2281
      %2286 = vst.msk [vmem:[#allocation3 + $0x30] sm:$0x3] %vm1194, %v2282
      %v2287 = vld [vmem:[#allocation3] sm:$0xf]
      %v2288 = vld [vmem:[#allocation3 + $0x4] sm:$0xf]
      %v2289 = vld [vmem:[#allocation3 + $0x8] sm:$0xf]
      %v2290 = vld [vmem:[#allocation3 + $0xc] sm:$0xf]
      %v2291 = vld [vmem:[#allocation3 + $0x10] sm:$0xf]
      %v2292 = vld [vmem:[#allocation3 + $0x14] sm:$0xf]
      %v2293 = vld [vmem:[#allocation3 + $0x18] sm:$0xf]
      %v2294 = vld [vmem:[#allocation3 + $0x1c] sm:$0xf]
      %v2295 = vld [vmem:[#allocation3 + $0x20] sm:$0xf]
      %v2296 = vld [vmem:[#allocation3 + $0x24] sm:$0xf]
      %v2297 = vld [vmem:[#allocation3 + $0x28] sm:$0x1]
      %v2298 = vld [vmem:[#allocation3] sm:$0xe]
      %v2309 = vunpack.c.l.b16 %v2287
      %v2310 = vunpack.c.l.b16 %v2288
      %v2311 = vunpack.c.l.b16 %v2289
      %v2312 = vunpack.c.l.b16 %v2290
      %v2313 = vunpack.c.l.b16 %v2291
      %v2314 = vunpack.c.l.b16 %v2292
      %v2315 = vunpack.c.l.b16 %v2293
      %v2316 = vunpack.c.l.b16 %v2294
      %v2317 = vunpack.c.l.b16 %v2295
      %v2318 = vunpack.c.l.b16 %v2296
      %v2319 = vpack.c.b16 %v2310, %v2309
      %v2320 = vpack.c.b16 %v2312, %v2311
      %v2321 = vpack.c.b16 %v2314, %v2313
      %v2322 = vpack.c.b16 %v2316, %v2315
      %v2323 = vpack.c.b16 %v2318, %v2317
      %v2325 = vunpack.c.l.b16 %v2297
      %v2326 = vpack.c.b16 %v2325, %v2325
      %v2328 = vshrl.u32 %v2319, 16
      %v2330 = vshll.u32 %v2319, 16
      %v2332 = vrot.slane %v2330, 1
      %v2333 = vor.u32 %v2328, %v2332
      %v2335 = vshll.u32 %v2320, 16
      %v2337 = vrot.slane %v2335, 1
      %v2338 = vsel %vm377, %v2333, %v2337
      %v2339 = vshrl.u32 %v2320, 16
      %v2341 = vor.u32 %v2339, %v2337
      %v2343 = vshll.u32 %v2321, 16
      %v2345 = vrot.slane %v2343, 1
      %v2346 = vsel %vm377, %v2341, %v2345
      %v2347 = vshrl.u32 %v2321, 16
      %v2349 = vor.u32 %v2347, %v2345
      %v2351 = vshll.u32 %v2322, 16
      %v2353 = vrot.slane %v2351, 1
      %v2354 = vsel %vm377, %v2349, %v2353
      %v2355 = vshrl.u32 %v2322, 16
      %v2357 = vor.u32 %v2355, %v2353
      %v2359 = vshll.u32 %v2323, 16
      %v2361 = vrot.slane %v2359, 1
      %v2362 = vsel %vm377, %v2357, %v2361
      %v2363 = vshrl.u32 %v2323, 16
      %v2365 = vor.u32 %v2363, %v2361
      %v2367 = vshll.u32 %v2326, 16
      %v2369 = vrot.slane %v2367, 1
      %v2370 = vsel %vm377, %v2365, %v2369
      %2371 = vrot.lane.b32.xlu0 %v2338, 32
      %v2372 = vpop.permute.xlu0 %2371
      %2373 = vrot.lane.b32.xlu0 %v2346, 32
      %v2374 = vpop.permute.xlu0 %2373
      %2375 = vrot.lane.b32.xlu0 %v2354, 32
      %v2376 = vpop.permute.xlu0 %2375
      %2377 = vrot.lane.b32.xlu0 %v2362, 32
      %v2378 = vpop.permute.xlu0 %2377
      %2379 = vrot.lane.b32.xlu0 %v2370, 32
      %v2380 = vpop.permute.xlu0 %2379
      %v2382 = vunpack.c.l.b16 %v2298
      %v2383 = vpack.c.b16 %v2310, %v2382
      %v2384 = vrot.slane %v2383, 1
      %v2385 = vrot.slane %v2320, 1
      %v2386 = vsel %vm547, %v2384, %v2385
      %v2387 = vrot.slane %v2321, 1
      %v2388 = vsel %vm547, %v2385, %v2387
      %v2389 = vrot.slane %v2322, 1
      %v2390 = vsel %vm547, %v2387, %v2389
      %v2391 = vrot.slane %v2323, 1
      %v2392 = vsel %vm547, %v2389, %v2391
      %v2393 = vrot.slane %v2326, 1
      %v2394 = vsel %vm547, %v2391, %v2393
      %2395 = vrot.lane.b32.xlu0 %v2386, 64
      %v2396 = vpop.permute.xlu0 %2395
      %2397 = vrot.lane.b32.xlu0 %v2388, 64
      %v2398 = vpop.permute.xlu0 %2397
      %2399 = vrot.lane.b32.xlu0 %v2390, 64
      %v2400 = vpop.permute.xlu0 %2399
      %2401 = vrot.lane.b32.xlu0 %v2392, 64
      %v2402 = vpop.permute.xlu0 %2401
      %2403 = vrot.lane.b32.xlu0 %v2394, 64
      %v2404 = vpop.permute.xlu0 %2403
      %v2406 = vsel %vm1314, %v2319, %v2372
      %v2408 = vsel %vm1314, %v2320, %v2374
      %v2410 = vsel %vm1314, %v2321, %v2376
      %v2412 = vsel %vm1314, %v2322, %v2378
      %v2414 = vsel %vm1314, %v2323, %v2380
      %v2416 = vsel %vm1325, %v2406, %v2396
      %v2418 = vsel %vm1325, %v2408, %v2398
      %v2420 = vsel %vm1325, %v2410, %v2400
      %v2422 = vsel %vm1325, %v2412, %v2402
      %v2424 = vsel %vm1325, %v2414, %v2404
      %v2425 = vld [vmem:[%s5] sm:$0xf]
      %v2426 = vld [vmem:[%s5 + $0x4] sm:$0xf]
      %v2427 = vld [vmem:[%s5 + $0x8] sm:$0xf]
      %v2428 = vld [vmem:[%s5 + $0xc] sm:$0xf]
      %v2429 = vld [vmem:[%s5 + $0x10] sm:$0xf]
      %v2430 = vld [vmem:[%s5 + $0x14] sm:$0xf]
      %v2431 = vld [vmem:[%s5 + $0x18] sm:$0xf]
      %v2432 = vld [vmem:[%s5 + $0x1c] sm:$0xf]
      %v2433 = vld [vmem:[%s5 + $0x20] sm:$0xf]
      %v2434 = vld [vmem:[%s5 + $0x24] sm:$0xf]
      %v2435 = vld [vmem:[%s5 + $0x28] sm:$0xf]
      %v2436 = vld [vmem:[%s5 + $0x2c] sm:$0xf]
      %v2437 = vld [vmem:[#allocation3 + $0x4] sm:$0xe]
      %v2438 = vld [vmem:[#allocation3 + $0x28] sm:$0xf]
      %v2439 = vld [vmem:[#allocation3 + $0x2c] sm:$0x1]
      %v2440 = vld [vmem:[#allocation3 + $0x2c] sm:$0x3]
      %v2441 = vld [vmem:[#allocation3 + $0x4] sm:$0xc]
      %v2445 = vunpack.c.l.b16 %v2437
      %v2446 = vunpack.c.l.b16 %v2438
      %v2447 = vunpack.c.l.b16 %v2439
      %v2448 = vpack.c.b16 %v2311, %v2445
      %v2449 = vpack.c.b16 %v2313, %v2312
      %v2450 = vpack.c.b16 %v2315, %v2314
      %v2451 = vpack.c.b16 %v2317, %v2316
      %v2452 = vpack.c.b16 %v2446, %v2318
      %v2453 = vpack.c.b16 %v2447, %v2447
      %v2455 = vunpack.c.l.b16 %v2440
      %v2456 = vpack.c.b16 %v2455, %v2455
      %v2458 = vshrl.u32 %v2448, 16
      %v2460 = vshll.u32 %v2448, 16
      %v2462 = vrot.slane %v2460, 1
      %v2463 = vor.u32 %v2458, %v2462
      %v2465 = vshll.u32 %v2449, 16
      %v2467 = vrot.slane %v2465, 1
      %v2468 = vsel %vm377, %v2463, %v2467
      %v2469 = vshrl.u32 %v2449, 16
      %v2471 = vor.u32 %v2469, %v2467
      %v2473 = vshll.u32 %v2450, 16
      %v2475 = vrot.slane %v2473, 1
      %v2476 = vsel %vm377, %v2471, %v2475
      %v2477 = vshrl.u32 %v2450, 16
      %v2479 = vor.u32 %v2477, %v2475
      %v2481 = vshll.u32 %v2451, 16
      %v2483 = vrot.slane %v2481, 1
      %v2484 = vsel %vm377, %v2479, %v2483
      %v2485 = vshrl.u32 %v2451, 16
      %v2487 = vor.u32 %v2485, %v2483
      %v2489 = vshll.u32 %v2452, 16
      %v2491 = vrot.slane %v2489, 1
      %v2492 = vsel %vm377, %v2487, %v2491
      %v2493 = vshrl.u32 %v2452, 16
      %v2495 = vor.u32 %v2493, %v2491
      %v2497 = vshll.u32 %v2456, 16
      %v2499 = vrot.slane %v2497, 1
      %v2500 = vsel %vm377, %v2495, %v2499
      %v2501 = vshrl.u32 %v2456, 16
      %v2503 = vor.u32 %v2501, %v2499
      %2504 = vrot.lane.b32.xlu0 %v2468, 32
      %v2505 = vpop.permute.xlu0 %2504
      %2506 = vrot.lane.b32.xlu0 %v2476, 32
      %v2507 = vpop.permute.xlu0 %2506
      %2508 = vrot.lane.b32.xlu0 %v2484, 32
      %v2509 = vpop.permute.xlu0 %2508
      %2510 = vrot.lane.b32.xlu0 %v2492, 32
      %v2511 = vpop.permute.xlu0 %2510
      %2512 = vrot.lane.b32.xlu0 %v2500, 32
      %v2513 = vpop.permute.xlu0 %2512
      %2514 = vrot.lane.b32.xlu0 %v2503, 32
      %v2515 = vpop.permute.xlu0 %2514
      %v2517 = vunpack.c.l.b16 %v2441
      %v2518 = vpack.c.b16 %v2311, %v2517
      %v2519 = vrot.slane %v2518, 1
      %v2520 = vrot.slane %v2449, 1
      %v2521 = vsel %vm547, %v2519, %v2520
      %v2522 = vrot.slane %v2450, 1
      %v2523 = vsel %vm547, %v2520, %v2522
      %v2524 = vrot.slane %v2451, 1
      %v2525 = vsel %vm547, %v2522, %v2524
      %v2526 = vrot.slane %v2452, 1
      %v2527 = vsel %vm547, %v2524, %v2526
      %v2528 = vrot.slane %v2456, 1
      %v2529 = vsel %vm547, %v2526, %v2528
      %2530 = vrot.lane.b32.xlu0 %v2521, 64
      %v2531 = vpop.permute.xlu0 %2530
      %2532 = vrot.lane.b32.xlu0 %v2523, 64
      %v2533 = vpop.permute.xlu0 %2532
      %2534 = vrot.lane.b32.xlu0 %v2525, 64
      %v2535 = vpop.permute.xlu0 %2534
      %2536 = vrot.lane.b32.xlu0 %v2527, 64
      %v2537 = vpop.permute.xlu0 %2536
      %2538 = vrot.lane.b32.xlu0 %v2529, 64
      %v2539 = vpop.permute.xlu0 %2538
      %2540 = vrot.lane.b32.xlu0 %v2528, 64
      %v2541 = vpop.permute.xlu0 %2540
      %v2543 = vsel %vm1314, %v2448, %v2505
      %v2545 = vsel %vm1314, %v2449, %v2507
      %v2547 = vsel %vm1314, %v2450, %v2509
      %v2549 = vsel %vm1314, %v2451, %v2511
      %v2551 = vsel %vm1314, %v2452, %v2513
      %v2554 = vsel %vm1314, %v2453, %v2515
      %v2556 = vsel %vm1325, %v2543, %v2531
      %v2558 = vsel %vm1325, %v2545, %v2533
      %v2560 = vsel %vm1325, %v2547, %v2535
      %v2562 = vsel %vm1325, %v2549, %v2537
      %v2564 = vsel %vm1325, %v2551, %v2539
      %v2566 = vsel %vm1325, %v2554, %v2541
      %s2567 = scalar_lea.vmem %s5, 48
      %v2568 = vld [vmem:[%s2567] sm:$0xf]
      %v2569 = vld [vmem:[%s2567 + $0x4] sm:$0xf]
      %v2570 = vld [vmem:[%s2567 + $0x8] sm:$0xf]
      %v2571 = vld [vmem:[%s2567 + $0xc] sm:$0xf]
      %v2572 = vld [vmem:[%s2567 + $0x10] sm:$0xf]
      %v2573 = vld [vmem:[%s2567 + $0x14] sm:$0xf]
      %v2574 = vld [vmem:[%s2567 + $0x18] sm:$0xf]
      %v2575 = vld [vmem:[%s2567 + $0x1c] sm:$0xf]
      %v2576 = vld [vmem:[%s2567 + $0x20] sm:$0xf]
      %v2577 = vld [vmem:[%s2567 + $0x24] sm:$0xf]
      %v2578 = vld [vmem:[%s2567 + $0x28] sm:$0xf]
      %v2579 = vld [vmem:[%s2567 + $0x2c] sm:$0xf]
      %v2586 = vrot.slane %v2556, 1
      %v2587 = vrot.slane %v2558, 1
      %v2588 = vsel %vm547, %v2586, %v2587
      %v2589 = vrot.slane %v2560, 1
      %v2590 = vsel %vm547, %v2587, %v2589
      %v2591 = vrot.slane %v2562, 1
      %v2592 = vsel %vm547, %v2589, %v2591
      %v2593 = vrot.slane %v2564, 1
      %v2594 = vsel %vm547, %v2591, %v2593
      %v2595 = vrot.slane %v2566, 1
      %v2596 = vsel %vm547, %v2593, %v2595
      %v2609 = vunpack.c.l.b16 %v2568
      %v2610 = vunpack.c.l.b16 %v2569
      %v2611 = vunpack.c.l.b16 %v2570
      %v2612 = vunpack.c.l.b16 %v2571
      %v2613 = vunpack.c.l.b16 %v2572
      %v2614 = vunpack.c.l.b16 %v2573
      %v2615 = vunpack.c.l.b16 %v2574
      %v2616 = vunpack.c.l.b16 %v2575
      %v2617 = vunpack.c.l.b16 %v2576
      %v2618 = vunpack.c.l.b16 %v2577
      %v2619 = vunpack.c.l.b16 %v2578
      %v2620 = vunpack.c.l.b16 %v2579
      %v2621 = vpack.c.b16 %v2610, %v2609
      %v2622 = vpack.c.b16 %v2612, %v2611
      %v2623 = vpack.c.b16 %v2614, %v2613
      %v2624 = vpack.c.b16 %v2616, %v2615
      %v2625 = vpack.c.b16 %v2618, %v2617
      %v2626 = vpack.c.b16 %v2620, %v2619
      %v2634 = vsel %vm1544, %v2588, 0
      %v2637 = vsel %vm1544, %v2590, 0
      %v2640 = vsel %vm1544, %v2592, 0
      %v2643 = vsel %vm1544, %v2594, 0
      %v2646 = vsel %vm1544, %v2596, 0
      %2648 = vmatprep.subr.bf16.mxu0 0
      %2649 = vmatpush1.bf16.msra.mxu0 0
      %2650 = vmatprep.subr.bf16.mxu0 0
      %2651 = vmatpush1.bf16.msra.mxu0 0
      %2652 = vmatprep.subr.bf16.mxu0 0
      %2653 = vmatpush1.bf16.msra.mxu0 %v2626
      %2654 = vmatprep.subr.bf16.mxu0 0
      %2655 = vmatpush1.bf16.msra.mxu0 %v2625
      %2656 = vmatprep.subr.bf16.mxu0 0
      %2657 = vmatpush1.bf16.msra.mxu0 %v2624
      %2658 = vmatprep.subr.bf16.mxu0 0
      %2659 = vmatpush1.bf16.msra.mxu0 %v2623
      %2660 = vmatprep.subr.bf16.mxu0 0
      %2661 = vmatpush1.bf16.msra.mxu0 %v2622
      %2662 = vmatprep.subr.bf16.mxu0 0
      %2663 = vmatpush1.bf16.msra.mxu0 %v2621
      %2664 = vmatprep.subr.bf16.mxu0 0
      %2665 = vmatpush2.bf16.msra.mxu0 0
      %2666 = vmatprep.subr.bf16.mxu0 0
      %2667 = vmatpush2.bf16.msra.mxu0 0
      %2668 = vmatprep.subr.bf16.mxu0 0
      %2669 = vmatpush2.bf16.msra.mxu0 0
      %2670 = vmatprep.subr.bf16.mxu0 0
      %2671 = vmatpush2.bf16.msra.mxu0 0
      %2672 = vmatprep.subr.bf16.mxu0 0
      %2673 = vmatpush2.bf16.msra.mxu0 0
      %2674 = vmatprep.subr.bf16.mxu0 0
      %2675 = vmatpush2.bf16.msra.mxu0 0
      %2676 = vmatprep.subr.bf16.mxu0 0
      %2677 = vmatpush2.bf16.msra.mxu0 0
      %2678 = vmatprep.subr.bf16.mxu0 0
      %2679 = vmatpush2.bf16.msra.mxu0 0
      %2680 = vmatprep.mubr.bf16.mxu0 0
      %2681 = vmatmul.mubr.bf16.gmra.mxu0 %v2634
      %v2682 = vpop.f32.mrf.mxu0
      %v2683 = vadd.f32 0.0, %v2682
      %v2684 = vpop.f32.mrf.mxu0
      %v2685 = vpop.f32.mrf.mxu0
      %v2686 = vadd.f32 0.0, %v2685
      %v2687 = vpop.f32.mrf.mxu0
      %2688 = vmatprep.mubr.bf16.mxu0 0
      %2689 = vmatmul.mubr.bf16.gmra.mxu0 %v2637
      %v2690 = vpop.f32.mrf.mxu0
      %v2691 = vadd.f32 0.0, %v2690
      %v2692 = vpop.f32.mrf.mxu0
      %v2693 = vpop.f32.mrf.mxu0
      %v2694 = vadd.f32 0.0, %v2693
      %v2695 = vpop.f32.mrf.mxu0
      %2696 = vmatprep.mubr.bf16.mxu0 0
      %2697 = vmatmul.mubr.bf16.gmra.mxu0 %v2640
      %v2698 = vpop.f32.mrf.mxu0
      %v2699 = vadd.f32 0.0, %v2698
      %v2700 = vpop.f32.mrf.mxu0
      %v2701 = vpop.f32.mrf.mxu0
      %v2702 = vadd.f32 0.0, %v2701
      %v2703 = vpop.f32.mrf.mxu0
      %2704 = vmatprep.mubr.bf16.mxu0 0
      %2705 = vmatmul.mubr.bf16.gmra.mxu0 %v2643
      %v2706 = vpop.f32.mrf.mxu0
      %v2707 = vadd.f32 0.0, %v2706
      %v2708 = vpop.f32.mrf.mxu0
      %v2709 = vpop.f32.mrf.mxu0
      %v2710 = vadd.f32 0.0, %v2709
      %v2711 = vpop.f32.mrf.mxu0
      %2712 = vmatprep.mubr.bf16.mxu0 0
      %2713 = vmatmul.mubr.bf16.gmra.mxu0 %v2646
      %v2714 = vpop.f32.mrf.mxu0
      %v2715 = vadd.f32 0.0, %v2714
      %v2716 = vpop.f32.mrf.mxu0
      %v2717 = vpop.f32.mrf.mxu0
      %v2718 = vadd.f32 0.0, %v2717
      %v2719 = vpop.f32.mrf.mxu0
      %2720 = vdwg.mxu0
      %v2733 = vunpack.c.l.b16 %v2425
      %v2734 = vunpack.c.l.b16 %v2426
      %v2735 = vunpack.c.l.b16 %v2427
      %v2736 = vunpack.c.l.b16 %v2428
      %v2737 = vunpack.c.l.b16 %v2429
      %v2738 = vunpack.c.l.b16 %v2430
      %v2739 = vunpack.c.l.b16 %v2431
      %v2740 = vunpack.c.l.b16 %v2432
      %v2741 = vunpack.c.l.b16 %v2433
      %v2742 = vunpack.c.l.b16 %v2434
      %v2743 = vunpack.c.l.b16 %v2435
      %v2744 = vunpack.c.l.b16 %v2436
      %v2745 = vpack.c.b16 %v2734, %v2733
      %v2746 = vpack.c.b16 %v2736, %v2735
      %v2747 = vpack.c.b16 %v2738, %v2737
      %v2748 = vpack.c.b16 %v2740, %v2739
      %v2749 = vpack.c.b16 %v2742, %v2741
      %v2750 = vpack.c.b16 %v2744, %v2743
      %v2757 = vsel %vm1544, %v2416, 0
      %v2759 = vsel %vm1544, %v2418, 0
      %v2761 = vsel %vm1544, %v2420, 0
      %v2763 = vsel %vm1544, %v2422, 0
      %v2765 = vsel %vm1544, %v2424, 0
      %2767 = vmatprep.subr.bf16.mxu0 0
      %2768 = vmatpush1.bf16.msra.mxu0 0
      %2769 = vmatprep.subr.bf16.mxu0 0
      %2770 = vmatpush1.bf16.msra.mxu0 0
      %2771 = vmatprep.subr.bf16.mxu0 0
      %2772 = vmatpush1.bf16.msra.mxu0 %v2750
      %2773 = vmatprep.subr.bf16.mxu0 0
      %2774 = vmatpush1.bf16.msra.mxu0 %v2749
      %2775 = vmatprep.subr.bf16.mxu0 0
      %2776 = vmatpush1.bf16.msra.mxu0 %v2748
      %2777 = vmatprep.subr.bf16.mxu0 0
      %2778 = vmatpush1.bf16.msra.mxu0 %v2747
      %2779 = vmatprep.subr.bf16.mxu0 0
      %2780 = vmatpush1.bf16.msra.mxu0 %v2746
      %2781 = vmatprep.subr.bf16.mxu0 0
      %2782 = vmatpush1.bf16.msra.mxu0 %v2745
      %2783 = vmatprep.subr.bf16.mxu0 0
      %2784 = vmatpush2.bf16.msra.mxu0 0
      %2785 = vmatprep.subr.bf16.mxu0 0
      %2786 = vmatpush2.bf16.msra.mxu0 0
      %2787 = vmatprep.subr.bf16.mxu0 0
      %2788 = vmatpush2.bf16.msra.mxu0 0
      %2789 = vmatprep.subr.bf16.mxu0 0
      %2790 = vmatpush2.bf16.msra.mxu0 0
      %2791 = vmatprep.subr.bf16.mxu0 0
      %2792 = vmatpush2.bf16.msra.mxu0 0
      %2793 = vmatprep.subr.bf16.mxu0 0
      %2794 = vmatpush2.bf16.msra.mxu0 0
      %2795 = vmatprep.subr.bf16.mxu0 0
      %2796 = vmatpush2.bf16.msra.mxu0 0
      %2797 = vmatprep.subr.bf16.mxu0 0
      %2798 = vmatpush2.bf16.msra.mxu0 0
      %2799 = vmatprep.mubr.bf16.mxu0 0
      %2800 = vmatmul.mubr.bf16.gmra.mxu0 %v2757
      %v2801 = vpop.f32.mrf.mxu0
      %v2802 = vadd.f32 %v2683, %v2801
      %v2803 = vpop.f32.mrf.mxu0
      %v2804 = vpop.f32.mrf.mxu0
      %v2805 = vadd.f32 %v2686, %v2804
      %v2806 = vpop.f32.mrf.mxu0
      %2807 = vmatprep.mubr.bf16.mxu0 0
      %2808 = vmatmul.mubr.bf16.gmra.mxu0 %v2759
      %v2809 = vpop.f32.mrf.mxu0
      %v2810 = vadd.f32 %v2691, %v2809
      %v2811 = vpop.f32.mrf.mxu0
      %v2812 = vpop.f32.mrf.mxu0
      %v2813 = vadd.f32 %v2694, %v2812
      %v2814 = vpop.f32.mrf.mxu0
      %2815 = vmatprep.mubr.bf16.mxu0 0
      %2816 = vmatmul.mubr.bf16.gmra.mxu0 %v2761
      %v2817 = vpop.f32.mrf.mxu0
      %v2818 = vadd.f32 %v2699, %v2817
      %v2819 = vpop.f32.mrf.mxu0
      %v2820 = vpop.f32.mrf.mxu0
      %v2821 = vadd.f32 %v2702, %v2820
      %v2822 = vpop.f32.mrf.mxu0
      %2823 = vmatprep.mubr.bf16.mxu0 0
      %2824 = vmatmul.mubr.bf16.gmra.mxu0 %v2763
      %v2825 = vpop.f32.mrf.mxu0
      %v2826 = vadd.f32 %v2707, %v2825
      %v2827 = vpop.f32.mrf.mxu0
      %v2828 = vpop.f32.mrf.mxu0
      %v2829 = vadd.f32 %v2710, %v2828
      %v2830 = vpop.f32.mrf.mxu0
      %2831 = vmatprep.mubr.bf16.mxu0 0
      %2832 = vmatmul.mubr.bf16.gmra.mxu0 %v2765
      %v2833 = vpop.f32.mrf.mxu0
      %v2834 = vadd.f32 %v2715, %v2833
      %v2835 = vpop.f32.mrf.mxu0
      %v2836 = vpop.f32.mrf.mxu0
      %v2837 = vadd.f32 %v2718, %v2836
      %v2838 = vpop.f32.mrf.mxu0
      %2839 = vdwg.mxu0
      %v2840 = vld [vmem:[#allocation3 + $0x8] sm:$0xc]
      %v2841 = vld [vmem:[#allocation3 + $0xc] sm:$0xf]
      %v2842 = vld [vmem:[#allocation3 + $0x10] sm:$0xf]
      %v2843 = vld [vmem:[#allocation3 + $0x14] sm:$0xf]
      %v2844 = vld [vmem:[#allocation3 + $0x18] sm:$0xf]
      %v2845 = vld [vmem:[#allocation3 + $0x1c] sm:$0xf]
      %v2846 = vld [vmem:[#allocation3 + $0x20] sm:$0xf]
      %v2847 = vld [vmem:[#allocation3 + $0x24] sm:$0xf]
      %v2848 = vld [vmem:[#allocation3 + $0x28] sm:$0xf]
      %v2849 = vld [vmem:[#allocation3 + $0x2c] sm:$0xf]
      %v2850 = vld [vmem:[#allocation3 + $0x30] sm:$0x3]
      %v2851 = vld [vmem:[#allocation3 + $0x30] sm:$0x7]
      %v2852 = vld [vmem:[#allocation3 + $0x8] sm:$0x8]
      %v2864 = vunpack.c.l.b16 %v2840
      %v2865 = vunpack.c.l.b16 %v2841
      %v2866 = vunpack.c.l.b16 %v2842
      %v2867 = vunpack.c.l.b16 %v2843
      %v2868 = vunpack.c.l.b16 %v2844
      %v2869 = vunpack.c.l.b16 %v2845
      %v2870 = vunpack.c.l.b16 %v2846
      %v2871 = vunpack.c.l.b16 %v2847
      %v2872 = vunpack.c.l.b16 %v2848
      %v2873 = vunpack.c.l.b16 %v2849
      %v2874 = vunpack.c.l.b16 %v2850
      %v2875 = vpack.c.b16 %v2865, %v2864
      %v2876 = vpack.c.b16 %v2867, %v2866
      %v2877 = vpack.c.b16 %v2869, %v2868
      %v2878 = vpack.c.b16 %v2871, %v2870
      %v2879 = vpack.c.b16 %v2873, %v2872
      %v2880 = vpack.c.b16 %v2874, %v2874
      %v2882 = vunpack.c.l.b16 %v2851
      %v2883 = vpack.c.b16 %v2882, %v2882
      %v2885 = vshrl.u32 %v2875, 16
      %v2887 = vshll.u32 %v2875, 16
      %v2889 = vrot.slane %v2887, 1
      %v2890 = vor.u32 %v2885, %v2889
      %v2892 = vshll.u32 %v2876, 16
      %v2894 = vrot.slane %v2892, 1
      %v2895 = vsel %vm377, %v2890, %v2894
      %v2896 = vshrl.u32 %v2876, 16
      %v2898 = vor.u32 %v2896, %v2894
      %v2900 = vshll.u32 %v2877, 16
      %v2902 = vrot.slane %v2900, 1
      %v2903 = vsel %vm377, %v2898, %v2902
      %v2904 = vshrl.u32 %v2877, 16
      %v2906 = vor.u32 %v2904, %v2902
      %v2908 = vshll.u32 %v2878, 16
      %v2910 = vrot.slane %v2908, 1
      %v2911 = vsel %vm377, %v2906, %v2910
      %v2912 = vshrl.u32 %v2878, 16
      %v2914 = vor.u32 %v2912, %v2910
      %v2916 = vshll.u32 %v2879, 16
      %v2918 = vrot.slane %v2916, 1
      %v2919 = vsel %vm377, %v2914, %v2918
      %v2920 = vshrl.u32 %v2879, 16
      %v2922 = vor.u32 %v2920, %v2918
      %v2924 = vshll.u32 %v2883, 16
      %v2926 = vrot.slane %v2924, 1
      %v2927 = vsel %vm377, %v2922, %v2926
      %v2928 = vshrl.u32 %v2883, 16
      %v2930 = vor.u32 %v2928, %v2926
      %2931 = vrot.lane.b32.xlu0 %v2895, 32
      %v2932 = vpop.permute.xlu0 %2931
      %2933 = vrot.lane.b32.xlu0 %v2903, 32
      %v2934 = vpop.permute.xlu0 %2933
      %2935 = vrot.lane.b32.xlu0 %v2911, 32
      %v2936 = vpop.permute.xlu0 %2935
      %2937 = vrot.lane.b32.xlu0 %v2919, 32
      %v2938 = vpop.permute.xlu0 %2937
      %2939 = vrot.lane.b32.xlu0 %v2927, 32
      %v2940 = vpop.permute.xlu0 %2939
      %2941 = vrot.lane.b32.xlu0 %v2930, 32
      %v2942 = vpop.permute.xlu0 %2941
      %v2944 = vunpack.c.l.b16 %v2852
      %v2945 = vpack.c.b16 %v2865, %v2944
      %v2946 = vrot.slane %v2945, 1
      %v2947 = vrot.slane %v2876, 1
      %v2948 = vsel %vm547, %v2946, %v2947
      %v2949 = vrot.slane %v2877, 1
      %v2950 = vsel %vm547, %v2947, %v2949
      %v2951 = vrot.slane %v2878, 1
      %v2952 = vsel %vm547, %v2949, %v2951
      %v2953 = vrot.slane %v2879, 1
      %v2954 = vsel %vm547, %v2951, %v2953
      %v2955 = vrot.slane %v2883, 1
      %v2956 = vsel %vm547, %v2953, %v2955
      %2957 = vrot.lane.b32.xlu0 %v2948, 64
      %v2958 = vpop.permute.xlu0 %2957
      %2959 = vrot.lane.b32.xlu0 %v2950, 64
      %v2960 = vpop.permute.xlu0 %2959
      %2961 = vrot.lane.b32.xlu0 %v2952, 64
      %v2962 = vpop.permute.xlu0 %2961
      %2963 = vrot.lane.b32.xlu0 %v2954, 64
      %v2964 = vpop.permute.xlu0 %2963
      %2965 = vrot.lane.b32.xlu0 %v2956, 64
      %v2966 = vpop.permute.xlu0 %2965
      %2967 = vrot.lane.b32.xlu0 %v2955, 64
      %v2968 = vpop.permute.xlu0 %2967
      %v2970 = vsel %vm1314, %v2875, %v2932
      %v2972 = vsel %vm1314, %v2876, %v2934
      %v2974 = vsel %vm1314, %v2877, %v2936
      %v2976 = vsel %vm1314, %v2878, %v2938
      %v2978 = vsel %vm1314, %v2879, %v2940
      %v2981 = vsel %vm1314, %v2880, %v2942
      %v2983 = vsel %vm1325, %v2970, %v2958
      %v2985 = vsel %vm1325, %v2972, %v2960
      %v2987 = vsel %vm1325, %v2974, %v2962
      %v2989 = vsel %vm1325, %v2976, %v2964
      %v2991 = vsel %vm1325, %v2978, %v2966
      %v2993 = vsel %vm1325, %v2981, %v2968
      %s2994 = scalar_lea.vmem %s5, 96
      %v2995 = vld [vmem:[%s2994] sm:$0xf]
      %v2996 = vld [vmem:[%s2994 + $0x4] sm:$0xf]
      %v2997 = vld [vmem:[%s2994 + $0x8] sm:$0xf]
      %v2998 = vld [vmem:[%s2994 + $0xc] sm:$0xf]
      %v2999 = vld [vmem:[%s2994 + $0x10] sm:$0xf]
      %v3000 = vld [vmem:[%s2994 + $0x14] sm:$0xf]
      %v3001 = vld [vmem:[%s2994 + $0x18] sm:$0xf]
      %v3002 = vld [vmem:[%s2994 + $0x1c] sm:$0xf]
      %v3003 = vld [vmem:[%s2994 + $0x20] sm:$0xf]
      %v3004 = vld [vmem:[%s2994 + $0x24] sm:$0xf]
      %v3005 = vld [vmem:[%s2994 + $0x28] sm:$0xf]
      %v3006 = vld [vmem:[%s2994 + $0x2c] sm:$0xf]
      %v3013 = vrot.slane %v2983, 2
      %v3014 = vrot.slane %v2985, 2
      %v3015 = vsel %vm1925, %v3013, %v3014
      %v3016 = vrot.slane %v2987, 2
      %v3017 = vsel %vm1925, %v3014, %v3016
      %v3018 = vrot.slane %v2989, 2
      %v3019 = vsel %vm1925, %v3016, %v3018
      %v3020 = vrot.slane %v2991, 2
      %v3021 = vsel %vm1925, %v3018, %v3020
      %v3022 = vrot.slane %v2993, 2
      %v3023 = vsel %vm1925, %v3020, %v3022
      %v3036 = vunpack.c.l.b16 %v2995
      %v3037 = vunpack.c.l.b16 %v2996
      %v3038 = vunpack.c.l.b16 %v2997
      %v3039 = vunpack.c.l.b16 %v2998
      %v3040 = vunpack.c.l.b16 %v2999
      %v3041 = vunpack.c.l.b16 %v3000
      %v3042 = vunpack.c.l.b16 %v3001
      %v3043 = vunpack.c.l.b16 %v3002
      %v3044 = vunpack.c.l.b16 %v3003
      %v3045 = vunpack.c.l.b16 %v3004
      %v3046 = vunpack.c.l.b16 %v3005
      %v3047 = vunpack.c.l.b16 %v3006
      %v3048 = vpack.c.b16 %v3037, %v3036
      %v3049 = vpack.c.b16 %v3039, %v3038
      %v3050 = vpack.c.b16 %v3041, %v3040
      %v3051 = vpack.c.b16 %v3043, %v3042
      %v3052 = vpack.c.b16 %v3045, %v3044
      %v3053 = vpack.c.b16 %v3047, %v3046
      %v3061 = vsel %vm1544, %v3015, 0
      %v3064 = vsel %vm1544, %v3017, 0
      %v3067 = vsel %vm1544, %v3019, 0
      %v3070 = vsel %vm1544, %v3021, 0
      %v3073 = vsel %vm1544, %v3023, 0
      %3075 = vmatprep.subr.bf16.mxu0 0
      %3076 = vmatpush1.bf16.msra.mxu0 0
      %3077 = vmatprep.subr.bf16.mxu0 0
      %3078 = vmatpush1.bf16.msra.mxu0 0
      %3079 = vmatprep.subr.bf16.mxu0 0
      %3080 = vmatpush1.bf16.msra.mxu0 %v3053
      %3081 = vmatprep.subr.bf16.mxu0 0
      %3082 = vmatpush1.bf16.msra.mxu0 %v3052
      %3083 = vmatprep.subr.bf16.mxu0 0
      %3084 = vmatpush1.bf16.msra.mxu0 %v3051
      %3085 = vmatprep.subr.bf16.mxu0 0
      %3086 = vmatpush1.bf16.msra.mxu0 %v3050
      %3087 = vmatprep.subr.bf16.mxu0 0
      %3088 = vmatpush1.bf16.msra.mxu0 %v3049
      %3089 = vmatprep.subr.bf16.mxu0 0
      %3090 = vmatpush1.bf16.msra.mxu0 %v3048
      %3091 = vmatprep.subr.bf16.mxu0 0
      %3092 = vmatpush2.bf16.msra.mxu0 0
      %3093 = vmatprep.subr.bf16.mxu0 0
      %3094 = vmatpush2.bf16.msra.mxu0 0
      %3095 = vmatprep.subr.bf16.mxu0 0
      %3096 = vmatpush2.bf16.msra.mxu0 0
      %3097 = vmatprep.subr.bf16.mxu0 0
      %3098 = vmatpush2.bf16.msra.mxu0 0
      %3099 = vmatprep.subr.bf16.mxu0 0
      %3100 = vmatpush2.bf16.msra.mxu0 0
      %3101 = vmatprep.subr.bf16.mxu0 0
      %3102 = vmatpush2.bf16.msra.mxu0 0
      %3103 = vmatprep.subr.bf16.mxu0 0
      %3104 = vmatpush2.bf16.msra.mxu0 0
      %3105 = vmatprep.subr.bf16.mxu0 0
      %3106 = vmatpush2.bf16.msra.mxu0 0
      %3107 = vmatprep.mubr.bf16.mxu0 0
      %3108 = vmatmul.mubr.bf16.gmra.mxu0 %v3061
      %v3109 = vpop.f32.mrf.mxu0
      %v3110 = vadd.f32 0.0, %v3109
      %v3111 = vpop.f32.mrf.mxu0
      %v3112 = vpop.f32.mrf.mxu0
      %v3113 = vadd.f32 0.0, %v3112
      %v3114 = vpop.f32.mrf.mxu0
      %3115 = vmatprep.mubr.bf16.mxu0 0
      %3116 = vmatmul.mubr.bf16.gmra.mxu0 %v3064
      %v3117 = vpop.f32.mrf.mxu0
      %v3118 = vadd.f32 0.0, %v3117
      %v3119 = vpop.f32.mrf.mxu0
      %v3120 = vpop.f32.mrf.mxu0
      %v3121 = vadd.f32 0.0, %v3120
      %v3122 = vpop.f32.mrf.mxu0
      %3123 = vmatprep.mubr.bf16.mxu0 0
      %3124 = vmatmul.mubr.bf16.gmra.mxu0 %v3067
      %v3125 = vpop.f32.mrf.mxu0
      %v3126 = vadd.f32 0.0, %v3125
      %v3127 = vpop.f32.mrf.mxu0
      %v3128 = vpop.f32.mrf.mxu0
      %v3129 = vadd.f32 0.0, %v3128
      %v3130 = vpop.f32.mrf.mxu0
      %3131 = vmatprep.mubr.bf16.mxu0 0
      %3132 = vmatmul.mubr.bf16.gmra.mxu0 %v3070
      %v3133 = vpop.f32.mrf.mxu0
      %v3134 = vadd.f32 0.0, %v3133
      %v3135 = vpop.f32.mrf.mxu0
      %v3136 = vpop.f32.mrf.mxu0
      %v3137 = vadd.f32 0.0, %v3136
      %v3138 = vpop.f32.mrf.mxu0
      %3139 = vmatprep.mubr.bf16.mxu0 0
      %3140 = vmatmul.mubr.bf16.gmra.mxu0 %v3073
      %v3141 = vpop.f32.mrf.mxu0
      %v3142 = vadd.f32 0.0, %v3141
      %v3143 = vpop.f32.mrf.mxu0
      %v3144 = vpop.f32.mrf.mxu0
      %v3145 = vadd.f32 0.0, %v3144
      %v3146 = vpop.f32.mrf.mxu0
      %3147 = vdwg.mxu0
      %v3148 = vadd.f32 %v2802, %v3110
      %v3149 = vadd.f32 %v2805, %v3113
      %v3150 = vadd.f32 %v2810, %v3118
      %v3151 = vadd.f32 %v2813, %v3121
      %v3152 = vadd.f32 %v2818, %v3126
      %v3153 = vadd.f32 %v2821, %v3129
      %v3154 = vadd.f32 %v2826, %v3134
      %v3155 = vadd.f32 %v2829, %v3137
      %v3156 = vadd.f32 %v2834, %v3142
      %v3157 = vadd.f32 %v2837, %v3145
      %v3158 = vld [vmem:[%s6] sm:$0x1]
      %v3160 = vlaneseq
      %v3161 = vshrl.u32 %v3160, 7
      %v3162 = vsub.s32 0, %v3161
      %v3163 = vrot.slane %v3158, %v3162
      %v3165 = vadd.f32 %v3148, %v3163
      %v3166 = vadd.f32 %v3149, %v3163
      %v3167 = vadd.f32 %v3150, %v3163
      %v3168 = vadd.f32 %v3151, %v3163
      %v3169 = vadd.f32 %v3152, %v3163
      %v3170 = vadd.f32 %v3153, %v3163
      %v3171 = vadd.f32 %v3154, %v3163
      %v3172 = vadd.f32 %v3155, %v3163
      %v3173 = vadd.f32 %v3156, %v3163
      %v3174 = vadd.f32 %v3157, %v3163
      %v3175 = vmul.f32 %v3165, 0.01
      %v3176 = vmul.f32 %v3166, 0.01
      %v3177 = vmul.f32 %v3167, 0.01
      %v3178 = vmul.f32 %v3168, 0.01
      %v3179 = vmul.f32 %v3169, 0.01
      %v3180 = vmul.f32 %v3170, 0.01
      %v3181 = vmul.f32 %v3171, 0.01
      %v3182 = vmul.f32 %v3172, 0.01
      %v3183 = vmul.f32 %v3173, 0.01
      %v3184 = vmul.f32 %v3174, 0.01
      %v3185 = vmax.f32 %v3165, %v3175
      %v3186 = vmax.f32 %v3166, %v3176
      %v3187 = vmax.f32 %v3167, %v3177
      %v3188 = vmax.f32 %v3168, %v3178
      %v3189 = vmax.f32 %v3169, %v3179
      %v3190 = vmax.f32 %v3170, %v3180
      %v3191 = vmax.f32 %v3171, %v3181
      %v3192 = vmax.f32 %v3172, %v3182
      %v3193 = vmax.f32 %v3173, %v3183
      %v3194 = vmax.f32 %v3174, %v3184
      %v3195 = vmul.f32 %v763, 2.0
      %v3196 = vmul.f32 %v764, 2.0
      %v3197 = vmul.f32 %v765, 2.0
      %v3198 = vmul.f32 %v766, 2.0
      %v3199 = vmul.f32 %v767, 2.0
      %v3200 = vmul.f32 %v768, 2.0
      %v3201 = vmul.f32 %v769, 2.0
      %v3202 = vmul.f32 %v770, 2.0
      %v3203 = vmul.f32 %v771, 2.0
      %v3204 = vmul.f32 %v772, 2.0
      %v3205 = vadd.f32 %v3185, %v3195
      %v3206 = vadd.f32 %v3186, %v3196
      %v3207 = vadd.f32 %v3187, %v3197
      %v3208 = vadd.f32 %v3188, %v3198
      %v3209 = vadd.f32 %v3189, %v3199
      %v3210 = vadd.f32 %v3190, %v3200
      %v3211 = vadd.f32 %v3191, %v3201
      %v3212 = vadd.f32 %v3192, %v3202
      %v3213 = vadd.f32 %v3193, %v3203
      %v3214 = vadd.f32 %v3194, %v3204
      %v3215 = vrot.slane %v3205, 7
      %v3216 = vrot.slane %v3206, 7
      %v3217 = vrot.slane %v3207, 7
      %v3218 = vrot.slane %v3208, 7
      %v3219 = vrot.slane %v3209, 7
      %v3220 = vrot.slane %v3210, 7
      %v3221 = vrot.slane %v3211, 7
      %v3222 = vrot.slane %v3212, 7
      %v3223 = vrot.slane %v3213, 7
      %v3224 = vrot.slane %v3214, 7
      %v3225 = vsel %vm954, %v3223, %v3224
      %v3226 = vsel %vm954, %v3222, %v3223
      %v3227 = vsel %vm954, %v3221, %v3222
      %v3228 = vsel %vm954, %v3220, %v3221
      %v3229 = vsel %vm954, %v3219, %v3220
      %v3230 = vsel %vm954, %v3218, %v3219
      %v3231 = vsel %vm954, %v3217, %v3218
      %v3232 = vsel %vm954, %v3216, %v3217
      %v3233 = vsel %vm954, %v3215, %v3216
      %v3234 = vsel %vm954, %v3224, %v3215
      %v3235 = vrot.slane %v3205, 1
      %v3236 = vrot.slane %v3206, 1
      %v3237 = vrot.slane %v3207, 1
      %v3238 = vrot.slane %v3208, 1
      %v3239 = vrot.slane %v3209, 1
      %v3240 = vrot.slane %v3210, 1
      %v3241 = vrot.slane %v3211, 1
      %v3242 = vrot.slane %v3212, 1
      %v3243 = vrot.slane %v3213, 1
      %v3244 = vrot.slane %v3214, 1
      %v3245 = vsel %vm975, %v3243, %v3244
      %v3246 = vsel %vm975, %v3242, %v3243
      %v3247 = vsel %vm975, %v3241, %v3242
      %v3248 = vsel %vm975, %v3240, %v3241
      %v3249 = vsel %vm975, %v3239, %v3240
      %v3250 = vsel %vm975, %v3238, %v3239
      %v3251 = vsel %vm975, %v3237, %v3238
      %v3252 = vsel %vm975, %v3236, %v3237
      %v3253 = vsel %vm975, %v3235, %v3236
      %v3254 = vsel %vm975, %v3244, %v3235
      %v3255 = vrot.slane %v3205, 5
      %v3256 = vrot.slane %v3206, 5
      %v3257 = vrot.slane %v3207, 5
      %v3258 = vrot.slane %v3208, 5
      %v3259 = vrot.slane %v3209, 5
      %v3260 = vrot.slane %v3210, 5
      %v3261 = vrot.slane %v3211, 5
      %v3262 = vrot.slane %v3212, 5
      %v3263 = vrot.slane %v3213, 5
      %v3264 = vrot.slane %v3214, 5
      %v3265 = vsel %vm996, %v3263, %v3264
      %v3266 = vsel %vm996, %v3262, %v3263
      %v3267 = vsel %vm996, %v3261, %v3262
      %v3268 = vsel %vm996, %v3260, %v3261
      %v3269 = vsel %vm996, %v3259, %v3260
      %v3270 = vsel %vm996, %v3258, %v3259
      %v3271 = vsel %vm996, %v3257, %v3258
      %v3272 = vsel %vm996, %v3256, %v3257
      %v3273 = vsel %vm996, %v3255, %v3256
      %v3274 = vsel %vm996, %v3264, %v3255
      %v3275 = vsel %vm1037, %v3274, %v3234
      %v3276 = vsel %vm1038, %v3273, %v3233
      %v3277 = vsel %vm1039, %v3272, %v3232
      %v3278 = vsel %vm1040, %v3271, %v3231
      %v3279 = vsel %vm1041, %v3270, %v3230
      %v3280 = vsel %vm1042, %v3269, %v3229
      %v3281 = vsel %vm1043, %v3268, %v3228
      %v3282 = vsel %vm1044, %v3267, %v3227
      %v3283 = vsel %vm1045, %v3266, %v3226
      %v3284 = vsel %vm1046, %v3265, %v3225
      %v3285 = vsel %vm1067, %v3253, %v3275
      %v3286 = vsel %vm1068, %v3252, %v3276
      %v3287 = vsel %vm1069, %v3251, %v3277
      %v3288 = vsel %vm1070, %v3250, %v3278
      %v3289 = vsel %vm1071, %v3249, %v3279
      %v3290 = vsel %vm1072, %v3248, %v3280
      %v3291 = vsel %vm1073, %v3247, %v3281
      %v3292 = vsel %vm1074, %v3246, %v3282
      %v3293 = vsel %vm1075, %v3245, %v3283
      %v3294 = vsel %vm1076, %v3254, %v3284
      %v3295 = vpack.c.bf16 %v3286, %v3285
      %v3296 = vpack.c.bf16 %v3288, %v3287
      %v3297 = vpack.c.bf16 %v3290, %v3289
      %v3298 = vpack.c.bf16 %v3292, %v3291
      %v3299 = vpack.c.bf16 %v3294, %v3293
      %v3305 = vunpack.c.l.b16 %v3295
      %v3306 = vunpack.c.h.b16 %v3295
      %v3307 = vunpack.c.l.b16 %v3296
      %v3308 = vunpack.c.h.b16 %v3296
      %v3309 = vunpack.c.l.b16 %v3297
      %v3310 = vunpack.c.h.b16 %v3297
      %v3311 = vunpack.c.l.b16 %v3298
      %v3312 = vunpack.c.h.b16 %v3298
      %v3313 = vunpack.c.l.b16 %v3299
      %v3314 = vunpack.c.h.b16 %v3299
      %v3315 = vpack.c.b16 %v3305, %v3305
      %v3316 = vpack.c.b16 %v3306, %v3306
      %v3317 = vpack.c.b16 %v3307, %v3307
      %v3318 = vpack.c.b16 %v3308, %v3308
      %v3319 = vpack.c.b16 %v3309, %v3309
      %v3320 = vpack.c.b16 %v3310, %v3310
      %v3321 = vpack.c.b16 %v3311, %v3311
      %v3322 = vpack.c.b16 %v3312, %v3312
      %v3323 = vpack.c.b16 %v3313, %v3313
      %v3324 = vpack.c.b16 %v3314, %v3314
      %v3325 = vrot.slane %v3315, 7
      %v3326 = vrot.slane %v3325, 4
      %v3327 = vrot.slane %v3316, 7
      %v3328 = vsel %vm1119, %v3326, %v3327
      %v3329 = vrot.slane %v3327, 4
      %v3330 = vrot.slane %v3317, 7
      %v3331 = vsel %vm1119, %v3329, %v3330
      %v3332 = vrot.slane %v3330, 4
      %v3333 = vrot.slane %v3318, 7
      %v3334 = vsel %vm1119, %v3332, %v3333
      %v3335 = vrot.slane %v3333, 4
      %v3336 = vrot.slane %v3319, 7
      %v3337 = vsel %vm1119, %v3335, %v3336
      %v3338 = vrot.slane %v3336, 4
      %v3339 = vrot.slane %v3320, 7
      %v3340 = vsel %vm1119, %v3338, %v3339
      %v3341 = vrot.slane %v3339, 4
      %v3342 = vrot.slane %v3321, 7
      %v3343 = vsel %vm1119, %v3341, %v3342
      %v3344 = vrot.slane %v3342, 4
      %v3345 = vrot.slane %v3322, 7
      %v3346 = vsel %vm1119, %v3344, %v3345
      %v3347 = vrot.slane %v3345, 4
      %v3348 = vrot.slane %v3323, 7
      %v3349 = vsel %vm1119, %v3347, %v3348
      %v3350 = vrot.slane %v3348, 4
      %v3351 = vrot.slane %v3324, 7
      %v3352 = vsel %vm1119, %v3350, %v3351
      %v3353 = vrot.slane %v3351, 4
      %3365 = vst.msk [vmem:[#allocation4 + $0x4] sm:$0xe] %vm1160, %v3325
      %3366 = vst.msk [vmem:[#allocation4 + $0x8] sm:$0xf] %vm1162, %v3328
      %3367 = vst.msk [vmem:[#allocation4 + $0xc] sm:$0xf] %vm1162, %v3331
      %3368 = vst.msk [vmem:[#allocation4 + $0x10] sm:$0xf] %vm1162, %v3334
      %3369 = vst.msk [vmem:[#allocation4 + $0x14] sm:$0xf] %vm1162, %v3337
      %3370 = vst.msk [vmem:[#allocation4 + $0x18] sm:$0xf] %vm1162, %v3340
      %3371 = vst.msk [vmem:[#allocation4 + $0x1c] sm:$0xf] %vm1162, %v3343
      %3372 = vst.msk [vmem:[#allocation4 + $0x20] sm:$0xf] %vm1162, %v3346
      %3373 = vst.msk [vmem:[#allocation4 + $0x24] sm:$0xf] %vm1162, %v3349
      %3374 = vst.msk [vmem:[#allocation4 + $0x28] sm:$0xf] %vm1162, %v3352
      %3375 = vst.msk [vmem:[#allocation4 + $0x2c] sm:$0x1] %vm1172, %v3353
      %v3376 = vrot.slane %v3316, 5
      %v3377 = vrot.slane %v3376, 4
      %v3378 = vrot.slane %v3317, 5
      %v3379 = vsel %vm1176, %v3377, %v3378
      %v3380 = vrot.slane %v3378, 4
      %3383 = vst.msk [vmem:[#allocation4] sm:$0xf] %vm1162, %v3379
      %3384 = vst.msk [vmem:[#allocation4 + $0x4] sm:$0x1] %vm1172, %v3380
      %v3385 = vrot.slane %v3322, 5
      %v3386 = vrot.slane %v3385, 4
      %v3387 = vrot.slane %v3323, 5
      %v3388 = vsel %vm1176, %v3386, %v3387
      %v3389 = vrot.slane %v3387, 4
      %3392 = vst.msk [vmem:[#allocation4 + $0x2c] sm:$0xe] %vm1160, %v3388
      %3393 = vst.msk [vmem:[#allocation4 + $0x30] sm:$0x3] %vm1194, %v3389
      %v3394 = vld [vmem:[#allocation4] sm:$0xf]
      %v3395 = vld [vmem:[#allocation4 + $0x4] sm:$0xf]
      %v3396 = vld [vmem:[#allocation4 + $0x8] sm:$0xf]
      %v3397 = vld [vmem:[#allocation4 + $0xc] sm:$0xf]
      %v3398 = vld [vmem:[#allocation4 + $0x10] sm:$0xf]
      %v3399 = vld [vmem:[#allocation4 + $0x14] sm:$0xf]
      %v3400 = vld [vmem:[#allocation4 + $0x18] sm:$0xf]
      %v3401 = vld [vmem:[#allocation4 + $0x1c] sm:$0xf]
      %v3402 = vld [vmem:[#allocation4 + $0x20] sm:$0xf]
      %v3403 = vld [vmem:[#allocation4 + $0x24] sm:$0xf]
      %v3404 = vld [vmem:[#allocation4 + $0x28] sm:$0x1]
      %v3405 = vld [vmem:[#allocation4] sm:$0xe]
      %v3416 = vunpack.c.l.b16 %v3394
      %v3417 = vunpack.c.l.b16 %v3395
      %v3418 = vunpack.c.l.b16 %v3396
      %v3419 = vunpack.c.l.b16 %v3397
      %v3420 = vunpack.c.l.b16 %v3398
      %v3421 = vunpack.c.l.b16 %v3399
      %v3422 = vunpack.c.l.b16 %v3400
      %v3423 = vunpack.c.l.b16 %v3401
      %v3424 = vunpack.c.l.b16 %v3402
      %v3425 = vunpack.c.l.b16 %v3403
      %v3426 = vpack.c.b16 %v3417, %v3416
      %v3427 = vpack.c.b16 %v3419, %v3418
      %v3428 = vpack.c.b16 %v3421, %v3420
      %v3429 = vpack.c.b16 %v3423, %v3422
      %v3430 = vpack.c.b16 %v3425, %v3424
      %v3432 = vunpack.c.l.b16 %v3404
      %v3433 = vpack.c.b16 %v3432, %v3432
      %v3435 = vshrl.u32 %v3426, 16
      %v3437 = vshll.u32 %v3426, 16
      %v3439 = vrot.slane %v3437, 1
      %v3440 = vor.u32 %v3435, %v3439
      %v3442 = vshll.u32 %v3427, 16
      %v3444 = vrot.slane %v3442, 1
      %v3445 = vsel %vm377, %v3440, %v3444
      %v3446 = vshrl.u32 %v3427, 16
      %v3448 = vor.u32 %v3446, %v3444
      %v3450 = vshll.u32 %v3428, 16
      %v3452 = vrot.slane %v3450, 1
      %v3453 = vsel %vm377, %v3448, %v3452
      %v3454 = vshrl.u32 %v3428, 16
      %v3456 = vor.u32 %v3454, %v3452
      %v3458 = vshll.u32 %v3429, 16
      %v3460 = vrot.slane %v3458, 1
      %v3461 = vsel %vm377, %v3456, %v3460
      %v3462 = vshrl.u32 %v3429, 16
      %v3464 = vor.u32 %v3462, %v3460
      %v3466 = vshll.u32 %v3430, 16
      %v3468 = vrot.slane %v3466, 1
      %v3469 = vsel %vm377, %v3464, %v3468
      %v3470 = vshrl.u32 %v3430, 16
      %v3472 = vor.u32 %v3470, %v3468
      %v3474 = vshll.u32 %v3433, 16
      %v3476 = vrot.slane %v3474, 1
      %v3477 = vsel %vm377, %v3472, %v3476
      %3478 = vrot.lane.b32.xlu0 %v3445, 32
      %v3479 = vpop.permute.xlu0 %3478
      %3480 = vrot.lane.b32.xlu0 %v3453, 32
      %v3481 = vpop.permute.xlu0 %3480
      %3482 = vrot.lane.b32.xlu0 %v3461, 32
      %v3483 = vpop.permute.xlu0 %3482
      %3484 = vrot.lane.b32.xlu0 %v3469, 32
      %v3485 = vpop.permute.xlu0 %3484
      %3486 = vrot.lane.b32.xlu0 %v3477, 32
      %v3487 = vpop.permute.xlu0 %3486
      %v3489 = vunpack.c.l.b16 %v3405
      %v3490 = vpack.c.b16 %v3417, %v3489
      %v3491 = vrot.slane %v3490, 1
      %v3492 = vrot.slane %v3427, 1
      %v3493 = vsel %vm547, %v3491, %v3492
      %v3494 = vrot.slane %v3428, 1
      %v3495 = vsel %vm547, %v3492, %v3494
      %v3496 = vrot.slane %v3429, 1
      %v3497 = vsel %vm547, %v3494, %v3496
      %v3498 = vrot.slane %v3430, 1
      %v3499 = vsel %vm547, %v3496, %v3498
      %v3500 = vrot.slane %v3433, 1
      %v3501 = vsel %vm547, %v3498, %v3500
      %3502 = vrot.lane.b32.xlu0 %v3493, 64
      %v3503 = vpop.permute.xlu0 %3502
      %3504 = vrot.lane.b32.xlu0 %v3495, 64
      %v3505 = vpop.permute.xlu0 %3504
      %3506 = vrot.lane.b32.xlu0 %v3497, 64
      %v3507 = vpop.permute.xlu0 %3506
      %3508 = vrot.lane.b32.xlu0 %v3499, 64
      %v3509 = vpop.permute.xlu0 %3508
      %3510 = vrot.lane.b32.xlu0 %v3501, 64
      %v3511 = vpop.permute.xlu0 %3510
      %v3513 = vsel %vm1314, %v3426, %v3479
      %v3515 = vsel %vm1314, %v3427, %v3481
      %v3517 = vsel %vm1314, %v3428, %v3483
      %v3519 = vsel %vm1314, %v3429, %v3485
      %v3521 = vsel %vm1314, %v3430, %v3487
      %v3523 = vsel %vm1325, %v3513, %v3503
      %v3525 = vsel %vm1325, %v3515, %v3505
      %v3527 = vsel %vm1325, %v3517, %v3507
      %v3529 = vsel %vm1325, %v3519, %v3509
      %v3531 = vsel %vm1325, %v3521, %v3511
      %v3532 = vld [vmem:[%s7] sm:$0xf]
      %v3533 = vld [vmem:[%s7 + $0x4] sm:$0xf]
      %v3534 = vld [vmem:[%s7 + $0x8] sm:$0xf]
      %v3535 = vld [vmem:[%s7 + $0xc] sm:$0xf]
      %v3536 = vld [vmem:[%s7 + $0x10] sm:$0xf]
      %v3537 = vld [vmem:[%s7 + $0x14] sm:$0xf]
      %v3538 = vld [vmem:[%s7 + $0x18] sm:$0xf]
      %v3539 = vld [vmem:[%s7 + $0x1c] sm:$0xf]
      %v3540 = vld [vmem:[%s7 + $0x20] sm:$0xf]
      %v3541 = vld [vmem:[%s7 + $0x24] sm:$0xf]
      %v3542 = vld [vmem:[%s7 + $0x28] sm:$0xf]
      %v3543 = vld [vmem:[%s7 + $0x2c] sm:$0xf]
      %v3544 = vld [vmem:[#allocation4 + $0x4] sm:$0xe]
      %v3545 = vld [vmem:[#allocation4 + $0x28] sm:$0xf]
      %v3546 = vld [vmem:[#allocation4 + $0x2c] sm:$0x1]
      %v3547 = vld [vmem:[#allocation4 + $0x2c] sm:$0x3]
      %v3548 = vld [vmem:[#allocation4 + $0x4] sm:$0xc]
      %v3552 = vunpack.c.l.b16 %v3544
      %v3553 = vunpack.c.l.b16 %v3545
      %v3554 = vunpack.c.l.b16 %v3546
      %v3555 = vpack.c.b16 %v3418, %v3552
      %v3556 = vpack.c.b16 %v3420, %v3419
      %v3557 = vpack.c.b16 %v3422, %v3421
      %v3558 = vpack.c.b16 %v3424, %v3423
      %v3559 = vpack.c.b16 %v3553, %v3425
      %v3560 = vpack.c.b16 %v3554, %v3554
      %v3562 = vunpack.c.l.b16 %v3547
      %v3563 = vpack.c.b16 %v3562, %v3562
      %v3565 = vshrl.u32 %v3555, 16
      %v3567 = vshll.u32 %v3555, 16
      %v3569 = vrot.slane %v3567, 1
      %v3570 = vor.u32 %v3565, %v3569
      %v3572 = vshll.u32 %v3556, 16
      %v3574 = vrot.slane %v3572, 1
      %v3575 = vsel %vm377, %v3570, %v3574
      %v3576 = vshrl.u32 %v3556, 16
      %v3578 = vor.u32 %v3576, %v3574
      %v3580 = vshll.u32 %v3557, 16
      %v3582 = vrot.slane %v3580, 1
      %v3583 = vsel %vm377, %v3578, %v3582
      %v3584 = vshrl.u32 %v3557, 16
      %v3586 = vor.u32 %v3584, %v3582
      %v3588 = vshll.u32 %v3558, 16
      %v3590 = vrot.slane %v3588, 1
      %v3591 = vsel %vm377, %v3586, %v3590
      %v3592 = vshrl.u32 %v3558, 16
      %v3594 = vor.u32 %v3592, %v3590
      %v3596 = vshll.u32 %v3559, 16
      %v3598 = vrot.slane %v3596, 1
      %v3599 = vsel %vm377, %v3594, %v3598
      %v3600 = vshrl.u32 %v3559, 16
      %v3602 = vor.u32 %v3600, %v3598
      %v3604 = vshll.u32 %v3563, 16
      %v3606 = vrot.slane %v3604, 1
      %v3607 = vsel %vm377, %v3602, %v3606
      %v3608 = vshrl.u32 %v3563, 16
      %v3610 = vor.u32 %v3608, %v3606
      %3611 = vrot.lane.b32.xlu0 %v3575, 32
      %v3612 = vpop.permute.xlu0 %3611
      %3613 = vrot.lane.b32.xlu0 %v3583, 32
      %v3614 = vpop.permute.xlu0 %3613
      %3615 = vrot.lane.b32.xlu0 %v3591, 32
      %v3616 = vpop.permute.xlu0 %3615
      %3617 = vrot.lane.b32.xlu0 %v3599, 32
      %v3618 = vpop.permute.xlu0 %3617
      %3619 = vrot.lane.b32.xlu0 %v3607, 32
      %v3620 = vpop.permute.xlu0 %3619
      %3621 = vrot.lane.b32.xlu0 %v3610, 32
      %v3622 = vpop.permute.xlu0 %3621
      %v3624 = vunpack.c.l.b16 %v3548
      %v3625 = vpack.c.b16 %v3418, %v3624
      %v3626 = vrot.slane %v3625, 1
      %v3627 = vrot.slane %v3556, 1
      %v3628 = vsel %vm547, %v3626, %v3627
      %v3629 = vrot.slane %v3557, 1
      %v3630 = vsel %vm547, %v3627, %v3629
      %v3631 = vrot.slane %v3558, 1
      %v3632 = vsel %vm547, %v3629, %v3631
      %v3633 = vrot.slane %v3559, 1
      %v3634 = vsel %vm547, %v3631, %v3633
      %v3635 = vrot.slane %v3563, 1
      %v3636 = vsel %vm547, %v3633, %v3635
      %3637 = vrot.lane.b32.xlu0 %v3628, 64
      %v3638 = vpop.permute.xlu0 %3637
      %3639 = vrot.lane.b32.xlu0 %v3630, 64
      %v3640 = vpop.permute.xlu0 %3639
      %3641 = vrot.lane.b32.xlu0 %v3632, 64
      %v3642 = vpop.permute.xlu0 %3641
      %3643 = vrot.lane.b32.xlu0 %v3634, 64
      %v3644 = vpop.permute.xlu0 %3643
      %3645 = vrot.lane.b32.xlu0 %v3636, 64
      %v3646 = vpop.permute.xlu0 %3645
      %3647 = vrot.lane.b32.xlu0 %v3635, 64
      %v3648 = vpop.permute.xlu0 %3647
      %v3650 = vsel %vm1314, %v3555, %v3612
      %v3652 = vsel %vm1314, %v3556, %v3614
      %v3654 = vsel %vm1314, %v3557, %v3616
      %v3656 = vsel %vm1314, %v3558, %v3618
      %v3658 = vsel %vm1314, %v3559, %v3620
      %v3661 = vsel %vm1314, %v3560, %v3622
      %v3663 = vsel %vm1325, %v3650, %v3638
      %v3665 = vsel %vm1325, %v3652, %v3640
      %v3667 = vsel %vm1325, %v3654, %v3642
      %v3669 = vsel %vm1325, %v3656, %v3644
      %v3671 = vsel %vm1325, %v3658, %v3646
      %v3673 = vsel %vm1325, %v3661, %v3648
      %s3674 = scalar_lea.vmem %s7, 48
      %v3675 = vld [vmem:[%s3674] sm:$0xf]
      %v3676 = vld [vmem:[%s3674 + $0x4] sm:$0xf]
      %v3677 = vld [vmem:[%s3674 + $0x8] sm:$0xf]
      %v3678 = vld [vmem:[%s3674 + $0xc] sm:$0xf]
      %v3679 = vld [vmem:[%s3674 + $0x10] sm:$0xf]
      %v3680 = vld [vmem:[%s3674 + $0x14] sm:$0xf]
      %v3681 = vld [vmem:[%s3674 + $0x18] sm:$0xf]
      %v3682 = vld [vmem:[%s3674 + $0x1c] sm:$0xf]
      %v3683 = vld [vmem:[%s3674 + $0x20] sm:$0xf]
      %v3684 = vld [vmem:[%s3674 + $0x24] sm:$0xf]
      %v3685 = vld [vmem:[%s3674 + $0x28] sm:$0xf]
      %v3686 = vld [vmem:[%s3674 + $0x2c] sm:$0xf]
      %v3693 = vrot.slane %v3663, 1
      %v3694 = vrot.slane %v3665, 1
      %v3695 = vsel %vm547, %v3693, %v3694
      %v3696 = vrot.slane %v3667, 1
      %v3697 = vsel %vm547, %v3694, %v3696
      %v3698 = vrot.slane %v3669, 1
      %v3699 = vsel %vm547, %v3696, %v3698
      %v3700 = vrot.slane %v3671, 1
      %v3701 = vsel %vm547, %v3698, %v3700
      %v3702 = vrot.slane %v3673, 1
      %v3703 = vsel %vm547, %v3700, %v3702
      %v3716 = vunpack.c.l.b16 %v3675
      %v3717 = vunpack.c.l.b16 %v3676
      %v3718 = vunpack.c.l.b16 %v3677
      %v3719 = vunpack.c.l.b16 %v3678
      %v3720 = vunpack.c.l.b16 %v3679
      %v3721 = vunpack.c.l.b16 %v3680
      %v3722 = vunpack.c.l.b16 %v3681
      %v3723 = vunpack.c.l.b16 %v3682
      %v3724 = vunpack.c.l.b16 %v3683
      %v3725 = vunpack.c.l.b16 %v3684
      %v3726 = vunpack.c.l.b16 %v3685
      %v3727 = vunpack.c.l.b16 %v3686
      %v3728 = vpack.c.b16 %v3717, %v3716
      %v3729 = vpack.c.b16 %v3719, %v3718
      %v3730 = vpack.c.b16 %v3721, %v3720
      %v3731 = vpack.c.b16 %v3723, %v3722
      %v3732 = vpack.c.b16 %v3725, %v3724
      %v3733 = vpack.c.b16 %v3727, %v3726
      %v3741 = vsel %vm1544, %v3695, 0
      %v3744 = vsel %vm1544, %v3697, 0
      %v3747 = vsel %vm1544, %v3699, 0
      %v3750 = vsel %vm1544, %v3701, 0
      %v3753 = vsel %vm1544, %v3703, 0
      %3755 = vmatprep.subr.bf16.mxu0 0
      %3756 = vmatpush1.bf16.msra.mxu0 0
      %3757 = vmatprep.subr.bf16.mxu0 0
      %3758 = vmatpush1.bf16.msra.mxu0 0
      %3759 = vmatprep.subr.bf16.mxu0 0
      %3760 = vmatpush1.bf16.msra.mxu0 %v3733
      %3761 = vmatprep.subr.bf16.mxu0 0
      %3762 = vmatpush1.bf16.msra.mxu0 %v3732
      %3763 = vmatprep.subr.bf16.mxu0 0
      %3764 = vmatpush1.bf16.msra.mxu0 %v3731
      %3765 = vmatprep.subr.bf16.mxu0 0
      %3766 = vmatpush1.bf16.msra.mxu0 %v3730
      %3767 = vmatprep.subr.bf16.mxu0 0
      %3768 = vmatpush1.bf16.msra.mxu0 %v3729
      %3769 = vmatprep.subr.bf16.mxu0 0
      %3770 = vmatpush1.bf16.msra.mxu0 %v3728
      %3771 = vmatprep.subr.bf16.mxu0 0
      %3772 = vmatpush2.bf16.msra.mxu0 0
      %3773 = vmatprep.subr.bf16.mxu0 0
      %3774 = vmatpush2.bf16.msra.mxu0 0
      %3775 = vmatprep.subr.bf16.mxu0 0
      %3776 = vmatpush2.bf16.msra.mxu0 0
      %3777 = vmatprep.subr.bf16.mxu0 0
      %3778 = vmatpush2.bf16.msra.mxu0 0
      %3779 = vmatprep.subr.bf16.mxu0 0
      %3780 = vmatpush2.bf16.msra.mxu0 0
      %3781 = vmatprep.subr.bf16.mxu0 0
      %3782 = vmatpush2.bf16.msra.mxu0 0
      %3783 = vmatprep.subr.bf16.mxu0 0
      %3784 = vmatpush2.bf16.msra.mxu0 0
      %3785 = vmatprep.subr.bf16.mxu0 0
      %3786 = vmatpush2.bf16.msra.mxu0 0
      %3787 = vmatprep.mubr.bf16.mxu0 0
      %3788 = vmatmul.mubr.bf16.gmra.mxu0 %v3741
      %v3789 = vpop.f32.mrf.mxu0
      %v3790 = vadd.f32 0.0, %v3789
      %v3791 = vpop.f32.mrf.mxu0
      %v3792 = vpop.f32.mrf.mxu0
      %v3793 = vadd.f32 0.0, %v3792
      %v3794 = vpop.f32.mrf.mxu0
      %3795 = vmatprep.mubr.bf16.mxu0 0
      %3796 = vmatmul.mubr.bf16.gmra.mxu0 %v3744
      %v3797 = vpop.f32.mrf.mxu0
      %v3798 = vadd.f32 0.0, %v3797
      %v3799 = vpop.f32.mrf.mxu0
      %v3800 = vpop.f32.mrf.mxu0
      %v3801 = vadd.f32 0.0, %v3800
      %v3802 = vpop.f32.mrf.mxu0
      %3803 = vmatprep.mubr.bf16.mxu0 0
      %3804 = vmatmul.mubr.bf16.gmra.mxu0 %v3747
      %v3805 = vpop.f32.mrf.mxu0
      %v3806 = vadd.f32 0.0, %v3805
      %v3807 = vpop.f32.mrf.mxu0
      %v3808 = vpop.f32.mrf.mxu0
      %v3809 = vadd.f32 0.0, %v3808
      %v3810 = vpop.f32.mrf.mxu0
      %3811 = vmatprep.mubr.bf16.mxu0 0
      %3812 = vmatmul.mubr.bf16.gmra.mxu0 %v3750
      %v3813 = vpop.f32.mrf.mxu0
      %v3814 = vadd.f32 0.0, %v3813
      %v3815 = vpop.f32.mrf.mxu0
      %v3816 = vpop.f32.mrf.mxu0
      %v3817 = vadd.f32 0.0, %v3816
      %v3818 = vpop.f32.mrf.mxu0
      %3819 = vmatprep.mubr.bf16.mxu0 0
      %3820 = vmatmul.mubr.bf16.gmra.mxu0 %v3753
      %v3821 = vpop.f32.mrf.mxu0
      %v3822 = vadd.f32 0.0, %v3821
      %v3823 = vpop.f32.mrf.mxu0
      %v3824 = vpop.f32.mrf.mxu0
      %v3825 = vadd.f32 0.0, %v3824
      %v3826 = vpop.f32.mrf.mxu0
      %3827 = vdwg.mxu0
      %v3840 = vunpack.c.l.b16 %v3532
      %v3841 = vunpack.c.l.b16 %v3533
      %v3842 = vunpack.c.l.b16 %v3534
      %v3843 = vunpack.c.l.b16 %v3535
      %v3844 = vunpack.c.l.b16 %v3536
      %v3845 = vunpack.c.l.b16 %v3537
      %v3846 = vunpack.c.l.b16 %v3538
      %v3847 = vunpack.c.l.b16 %v3539
      %v3848 = vunpack.c.l.b16 %v3540
      %v3849 = vunpack.c.l.b16 %v3541
      %v3850 = vunpack.c.l.b16 %v3542
      %v3851 = vunpack.c.l.b16 %v3543
      %v3852 = vpack.c.b16 %v3841, %v3840
      %v3853 = vpack.c.b16 %v3843, %v3842
      %v3854 = vpack.c.b16 %v3845, %v3844
      %v3855 = vpack.c.b16 %v3847, %v3846
      %v3856 = vpack.c.b16 %v3849, %v3848
      %v3857 = vpack.c.b16 %v3851, %v3850
      %v3864 = vsel %vm1544, %v3523, 0
      %v3866 = vsel %vm1544, %v3525, 0
      %v3868 = vsel %vm1544, %v3527, 0
      %v3870 = vsel %vm1544, %v3529, 0
      %v3872 = vsel %vm1544, %v3531, 0
      %3874 = vmatprep.subr.bf16.mxu0 0
      %3875 = vmatpush1.bf16.msra.mxu0 0
      %3876 = vmatprep.subr.bf16.mxu0 0
      %3877 = vmatpush1.bf16.msra.mxu0 0
      %3878 = vmatprep.subr.bf16.mxu0 0
      %3879 = vmatpush1.bf16.msra.mxu0 %v3857
      %3880 = vmatprep.subr.bf16.mxu0 0
      %3881 = vmatpush1.bf16.msra.mxu0 %v3856
      %3882 = vmatprep.subr.bf16.mxu0 0
      %3883 = vmatpush1.bf16.msra.mxu0 %v3855
      %3884 = vmatprep.subr.bf16.mxu0 0
      %3885 = vmatpush1.bf16.msra.mxu0 %v3854
      %3886 = vmatprep.subr.bf16.mxu0 0
      %3887 = vmatpush1.bf16.msra.mxu0 %v3853
      %3888 = vmatprep.subr.bf16.mxu0 0
      %3889 = vmatpush1.bf16.msra.mxu0 %v3852
      %3890 = vmatprep.subr.bf16.mxu0 0
      %3891 = vmatpush2.bf16.msra.mxu0 0
      %3892 = vmatprep.subr.bf16.mxu0 0
      %3893 = vmatpush2.bf16.msra.mxu0 0
      %3894 = vmatprep.subr.bf16.mxu0 0
      %3895 = vmatpush2.bf16.msra.mxu0 0
      %3896 = vmatprep.subr.bf16.mxu0 0
      %3897 = vmatpush2.bf16.msra.mxu0 0
      %3898 = vmatprep.subr.bf16.mxu0 0
      %3899 = vmatpush2.bf16.msra.mxu0 0
      %3900 = vmatprep.subr.bf16.mxu0 0
      %3901 = vmatpush2.bf16.msra.mxu0 0
      %3902 = vmatprep.subr.bf16.mxu0 0
      %3903 = vmatpush2.bf16.msra.mxu0 0
      %3904 = vmatprep.subr.bf16.mxu0 0
      %3905 = vmatpush2.bf16.msra.mxu0 0
      %3906 = vmatprep.mubr.bf16.mxu0 0
      %3907 = vmatmul.mubr.bf16.gmra.mxu0 %v3864
      %v3908 = vpop.f32.mrf.mxu0
      %v3909 = vadd.f32 %v3790, %v3908
      %v3910 = vpop.f32.mrf.mxu0
      %v3911 = vpop.f32.mrf.mxu0
      %v3912 = vadd.f32 %v3793, %v3911
      %v3913 = vpop.f32.mrf.mxu0
      %3914 = vmatprep.mubr.bf16.mxu0 0
      %3915 = vmatmul.mubr.bf16.gmra.mxu0 %v3866
      %v3916 = vpop.f32.mrf.mxu0
      %v3917 = vadd.f32 %v3798, %v3916
      %v3918 = vpop.f32.mrf.mxu0
      %v3919 = vpop.f32.mrf.mxu0
      %v3920 = vadd.f32 %v3801, %v3919
      %v3921 = vpop.f32.mrf.mxu0
      %3922 = vmatprep.mubr.bf16.mxu0 0
      %3923 = vmatmul.mubr.bf16.gmra.mxu0 %v3868
      %v3924 = vpop.f32.mrf.mxu0
      %v3925 = vadd.f32 %v3806, %v3924
      %v3926 = vpop.f32.mrf.mxu0
      %v3927 = vpop.f32.mrf.mxu0
      %v3928 = vadd.f32 %v3809, %v3927
      %v3929 = vpop.f32.mrf.mxu0
      %3930 = vmatprep.mubr.bf16.mxu0 0
      %3931 = vmatmul.mubr.bf16.gmra.mxu0 %v3870
      %v3932 = vpop.f32.mrf.mxu0
      %v3933 = vadd.f32 %v3814, %v3932
      %v3934 = vpop.f32.mrf.mxu0
      %v3935 = vpop.f32.mrf.mxu0
      %v3936 = vadd.f32 %v3817, %v3935
      %v3937 = vpop.f32.mrf.mxu0
      %3938 = vmatprep.mubr.bf16.mxu0 0
      %3939 = vmatmul.mubr.bf16.gmra.mxu0 %v3872
      %v3940 = vpop.f32.mrf.mxu0
      %v3941 = vadd.f32 %v3822, %v3940
      %v3942 = vpop.f32.mrf.mxu0
      %v3943 = vpop.f32.mrf.mxu0
      %v3944 = vadd.f32 %v3825, %v3943
      %v3945 = vpop.f32.mrf.mxu0
      %3946 = vdwg.mxu0
      %v3947 = vld [vmem:[#allocation4 + $0x8] sm:$0xc]
      %v3948 = vld [vmem:[#allocation4 + $0xc] sm:$0xf]
      %v3949 = vld [vmem:[#allocation4 + $0x10] sm:$0xf]
      %v3950 = vld [vmem:[#allocation4 + $0x14] sm:$0xf]
      %v3951 = vld [vmem:[#allocation4 + $0x18] sm:$0xf]
      %v3952 = vld [vmem:[#allocation4 + $0x1c] sm:$0xf]
      %v3953 = vld [vmem:[#allocation4 + $0x20] sm:$0xf]
      %v3954 = vld [vmem:[#allocation4 + $0x24] sm:$0xf]
      %v3955 = vld [vmem:[#allocation4 + $0x28] sm:$0xf]
      %v3956 = vld [vmem:[#allocation4 + $0x2c] sm:$0xf]
      %v3957 = vld [vmem:[#allocation4 + $0x30] sm:$0x3]
      %v3958 = vld [vmem:[#allocation4 + $0x30] sm:$0x7]
      %v3959 = vld [vmem:[#allocation4 + $0x8] sm:$0x8]
      %v3971 = vunpack.c.l.b16 %v3947
      %v3972 = vunpack.c.l.b16 %v3948
      %v3973 = vunpack.c.l.b16 %v3949
      %v3974 = vunpack.c.l.b16 %v3950
      %v3975 = vunpack.c.l.b16 %v3951
      %v3976 = vunpack.c.l.b16 %v3952
      %v3977 = vunpack.c.l.b16 %v3953
      %v3978 = vunpack.c.l.b16 %v3954
      %v3979 = vunpack.c.l.b16 %v3955
      %v3980 = vunpack.c.l.b16 %v3956
      %v3981 = vunpack.c.l.b16 %v3957
      %v3982 = vpack.c.b16 %v3972, %v3971
      %v3983 = vpack.c.b16 %v3974, %v3973
      %v3984 = vpack.c.b16 %v3976, %v3975
      %v3985 = vpack.c.b16 %v3978, %v3977
      %v3986 = vpack.c.b16 %v3980, %v3979
      %v3987 = vpack.c.b16 %v3981, %v3981
      %v3989 = vunpack.c.l.b16 %v3958
      %v3990 = vpack.c.b16 %v3989, %v3989
      %v3992 = vshrl.u32 %v3982, 16
      %v3994 = vshll.u32 %v3982, 16
      %v3996 = vrot.slane %v3994, 1
      %v3997 = vor.u32 %v3992, %v3996
      %v3999 = vshll.u32 %v3983, 16
      %v4001 = vrot.slane %v3999, 1
      %v4002 = vsel %vm377, %v3997, %v4001
      %v4003 = vshrl.u32 %v3983, 16
      %v4005 = vor.u32 %v4003, %v4001
      %v4007 = vshll.u32 %v3984, 16
      %v4009 = vrot.slane %v4007, 1
      %v4010 = vsel %vm377, %v4005, %v4009
      %v4011 = vshrl.u32 %v3984, 16
      %v4013 = vor.u32 %v4011, %v4009
      %v4015 = vshll.u32 %v3985, 16
      %v4017 = vrot.slane %v4015, 1
      %v4018 = vsel %vm377, %v4013, %v4017
      %v4019 = vshrl.u32 %v3985, 16
      %v4021 = vor.u32 %v4019, %v4017
      %v4023 = vshll.u32 %v3986, 16
      %v4025 = vrot.slane %v4023, 1
      %v4026 = vsel %vm377, %v4021, %v4025
      %v4027 = vshrl.u32 %v3986, 16
      %v4029 = vor.u32 %v4027, %v4025
      %v4031 = vshll.u32 %v3990, 16
      %v4033 = vrot.slane %v4031, 1
      %v4034 = vsel %vm377, %v4029, %v4033
      %v4035 = vshrl.u32 %v3990, 16
      %v4037 = vor.u32 %v4035, %v4033
      %4038 = vrot.lane.b32.xlu0 %v4002, 32
      %v4039 = vpop.permute.xlu0 %4038
      %4040 = vrot.lane.b32.xlu0 %v4010, 32
      %v4041 = vpop.permute.xlu0 %4040
      %4042 = vrot.lane.b32.xlu0 %v4018, 32
      %v4043 = vpop.permute.xlu0 %4042
      %4044 = vrot.lane.b32.xlu0 %v4026, 32
      %v4045 = vpop.permute.xlu0 %4044
      %4046 = vrot.lane.b32.xlu0 %v4034, 32
      %v4047 = vpop.permute.xlu0 %4046
      %4048 = vrot.lane.b32.xlu0 %v4037, 32
      %v4049 = vpop.permute.xlu0 %4048
      %v4051 = vunpack.c.l.b16 %v3959
      %v4052 = vpack.c.b16 %v3972, %v4051
      %v4053 = vrot.slane %v4052, 1
      %v4054 = vrot.slane %v3983, 1
      %v4055 = vsel %vm547, %v4053, %v4054
      %v4056 = vrot.slane %v3984, 1
      %v4057 = vsel %vm547, %v4054, %v4056
      %v4058 = vrot.slane %v3985, 1
      %v4059 = vsel %vm547, %v4056, %v4058
      %v4060 = vrot.slane %v3986, 1
      %v4061 = vsel %vm547, %v4058, %v4060
      %v4062 = vrot.slane %v3990, 1
      %v4063 = vsel %vm547, %v4060, %v4062
      %4064 = vrot.lane.b32.xlu0 %v4055, 64
      %v4065 = vpop.permute.xlu0 %4064
      %4066 = vrot.lane.b32.xlu0 %v4057, 64
      %v4067 = vpop.permute.xlu0 %4066
      %4068 = vrot.lane.b32.xlu0 %v4059, 64
      %v4069 = vpop.permute.xlu0 %4068
      %4070 = vrot.lane.b32.xlu0 %v4061, 64
      %v4071 = vpop.permute.xlu0 %4070
      %4072 = vrot.lane.b32.xlu0 %v4063, 64
      %v4073 = vpop.permute.xlu0 %4072
      %4074 = vrot.lane.b32.xlu0 %v4062, 64
      %v4075 = vpop.permute.xlu0 %4074
      %v4077 = vsel %vm1314, %v3982, %v4039
      %v4079 = vsel %vm1314, %v3983, %v4041
      %v4081 = vsel %vm1314, %v3984, %v4043
      %v4083 = vsel %vm1314, %v3985, %v4045
      %v4085 = vsel %vm1314, %v3986, %v4047
      %v4088 = vsel %vm1314, %v3987, %v4049
      %v4090 = vsel %vm1325, %v4077, %v4065
      %v4092 = vsel %vm1325, %v4079, %v4067
      %v4094 = vsel %vm1325, %v4081, %v4069
      %v4096 = vsel %vm1325, %v4083, %v4071
      %v4098 = vsel %vm1325, %v4085, %v4073
      %v4100 = vsel %vm1325, %v4088, %v4075
      %s4101 = scalar_lea.vmem %s7, 96
      %v4102 = vld [vmem:[%s4101] sm:$0xf]
      %v4103 = vld [vmem:[%s4101 + $0x4] sm:$0xf]
      %v4104 = vld [vmem:[%s4101 + $0x8] sm:$0xf]
      %v4105 = vld [vmem:[%s4101 + $0xc] sm:$0xf]
      %v4106 = vld [vmem:[%s4101 + $0x10] sm:$0xf]
      %v4107 = vld [vmem:[%s4101 + $0x14] sm:$0xf]
      %v4108 = vld [vmem:[%s4101 + $0x18] sm:$0xf]
      %v4109 = vld [vmem:[%s4101 + $0x1c] sm:$0xf]
      %v4110 = vld [vmem:[%s4101 + $0x20] sm:$0xf]
      %v4111 = vld [vmem:[%s4101 + $0x24] sm:$0xf]
      %v4112 = vld [vmem:[%s4101 + $0x28] sm:$0xf]
      %v4113 = vld [vmem:[%s4101 + $0x2c] sm:$0xf]
      %v4120 = vrot.slane %v4090, 2
      %v4121 = vrot.slane %v4092, 2
      %v4122 = vsel %vm1925, %v4120, %v4121
      %v4123 = vrot.slane %v4094, 2
      %v4124 = vsel %vm1925, %v4121, %v4123
      %v4125 = vrot.slane %v4096, 2
      %v4126 = vsel %vm1925, %v4123, %v4125
      %v4127 = vrot.slane %v4098, 2
      %v4128 = vsel %vm1925, %v4125, %v4127
      %v4129 = vrot.slane %v4100, 2
      %v4130 = vsel %vm1925, %v4127, %v4129
      %v4143 = vunpack.c.l.b16 %v4102
      %v4144 = vunpack.c.l.b16 %v4103
      %v4145 = vunpack.c.l.b16 %v4104
      %v4146 = vunpack.c.l.b16 %v4105
      %v4147 = vunpack.c.l.b16 %v4106
      %v4148 = vunpack.c.l.b16 %v4107
      %v4149 = vunpack.c.l.b16 %v4108
      %v4150 = vunpack.c.l.b16 %v4109
      %v4151 = vunpack.c.l.b16 %v4110
      %v4152 = vunpack.c.l.b16 %v4111
      %v4153 = vunpack.c.l.b16 %v4112
      %v4154 = vunpack.c.l.b16 %v4113
      %v4155 = vpack.c.b16 %v4144, %v4143
      %v4156 = vpack.c.b16 %v4146, %v4145
      %v4157 = vpack.c.b16 %v4148, %v4147
      %v4158 = vpack.c.b16 %v4150, %v4149
      %v4159 = vpack.c.b16 %v4152, %v4151
      %v4160 = vpack.c.b16 %v4154, %v4153
      %v4168 = vsel %vm1544, %v4122, 0
      %v4171 = vsel %vm1544, %v4124, 0
      %v4174 = vsel %vm1544, %v4126, 0
      %v4177 = vsel %vm1544, %v4128, 0
      %v4180 = vsel %vm1544, %v4130, 0
      %4182 = vmatprep.subr.bf16.mxu0 0
      %4183 = vmatpush1.bf16.msra.mxu0 0
      %4184 = vmatprep.subr.bf16.mxu0 0
      %4185 = vmatpush1.bf16.msra.mxu0 0
      %4186 = vmatprep.subr.bf16.mxu0 0
      %4187 = vmatpush1.bf16.msra.mxu0 %v4160
      %4188 = vmatprep.subr.bf16.mxu0 0
      %4189 = vmatpush1.bf16.msra.mxu0 %v4159
      %4190 = vmatprep.subr.bf16.mxu0 0
      %4191 = vmatpush1.bf16.msra.mxu0 %v4158
      %4192 = vmatprep.subr.bf16.mxu0 0
      %4193 = vmatpush1.bf16.msra.mxu0 %v4157
      %4194 = vmatprep.subr.bf16.mxu0 0
      %4195 = vmatpush1.bf16.msra.mxu0 %v4156
      %4196 = vmatprep.subr.bf16.mxu0 0
      %4197 = vmatpush1.bf16.msra.mxu0 %v4155
      %4198 = vmatprep.subr.bf16.mxu0 0
      %4199 = vmatpush2.bf16.msra.mxu0 0
      %4200 = vmatprep.subr.bf16.mxu0 0
      %4201 = vmatpush2.bf16.msra.mxu0 0
      %4202 = vmatprep.subr.bf16.mxu0 0
      %4203 = vmatpush2.bf16.msra.mxu0 0
      %4204 = vmatprep.subr.bf16.mxu0 0
      %4205 = vmatpush2.bf16.msra.mxu0 0
      %4206 = vmatprep.subr.bf16.mxu0 0
      %4207 = vmatpush2.bf16.msra.mxu0 0
      %4208 = vmatprep.subr.bf16.mxu0 0
      %4209 = vmatpush2.bf16.msra.mxu0 0
      %4210 = vmatprep.subr.bf16.mxu0 0
      %4211 = vmatpush2.bf16.msra.mxu0 0
      %4212 = vmatprep.subr.bf16.mxu0 0
      %4213 = vmatpush2.bf16.msra.mxu0 0
      %4214 = vmatprep.mubr.bf16.mxu0 0
      %4215 = vmatmul.mubr.bf16.gmra.mxu0 %v4168
      %v4216 = vpop.f32.mrf.mxu0
      %v4217 = vadd.f32 0.0, %v4216
      %v4218 = vpop.f32.mrf.mxu0
      %v4219 = vpop.f32.mrf.mxu0
      %v4220 = vadd.f32 0.0, %v4219
      %v4221 = vpop.f32.mrf.mxu0
      %4222 = vmatprep.mubr.bf16.mxu0 0
      %4223 = vmatmul.mubr.bf16.gmra.mxu0 %v4171
      %v4224 = vpop.f32.mrf.mxu0
      %v4225 = vadd.f32 0.0, %v4224
      %v4226 = vpop.f32.mrf.mxu0
      %v4227 = vpop.f32.mrf.mxu0
      %v4228 = vadd.f32 0.0, %v4227
      %v4229 = vpop.f32.mrf.mxu0
      %4230 = vmatprep.mubr.bf16.mxu0 0
      %4231 = vmatmul.mubr.bf16.gmra.mxu0 %v4174
      %v4232 = vpop.f32.mrf.mxu0
      %v4233 = vadd.f32 0.0, %v4232
      %v4234 = vpop.f32.mrf.mxu0
      %v4235 = vpop.f32.mrf.mxu0
      %v4236 = vadd.f32 0.0, %v4235
      %v4237 = vpop.f32.mrf.mxu0
      %4238 = vmatprep.mubr.bf16.mxu0 0
      %4239 = vmatmul.mubr.bf16.gmra.mxu0 %v4177
      %v4240 = vpop.f32.mrf.mxu0
      %v4241 = vadd.f32 0.0, %v4240
      %v4242 = vpop.f32.mrf.mxu0
      %v4243 = vpop.f32.mrf.mxu0
      %v4244 = vadd.f32 0.0, %v4243
      %v4245 = vpop.f32.mrf.mxu0
      %4246 = vmatprep.mubr.bf16.mxu0 0
      %4247 = vmatmul.mubr.bf16.gmra.mxu0 %v4180
      %v4248 = vpop.f32.mrf.mxu0
      %v4249 = vadd.f32 0.0, %v4248
      %v4250 = vpop.f32.mrf.mxu0
      %v4251 = vpop.f32.mrf.mxu0
      %v4252 = vadd.f32 0.0, %v4251
      %v4253 = vpop.f32.mrf.mxu0
      %4254 = vdwg.mxu0
      %v4255 = vadd.f32 %v3909, %v4217
      %v4256 = vadd.f32 %v3912, %v4220
      %v4257 = vadd.f32 %v3917, %v4225
      %v4258 = vadd.f32 %v3920, %v4228
      %v4259 = vadd.f32 %v3925, %v4233
      %v4260 = vadd.f32 %v3928, %v4236
      %v4261 = vadd.f32 %v3933, %v4241
      %v4262 = vadd.f32 %v3936, %v4244
      %v4263 = vadd.f32 %v3941, %v4249
      %v4264 = vadd.f32 %v3944, %v4252
      %v4265 = vld [vmem:[%s8] sm:$0x1]
      %v4267 = vlaneseq
      %v4268 = vshrl.u32 %v4267, 7
      %v4269 = vsub.s32 0, %v4268
      %v4270 = vrot.slane %v4265, %v4269
      %v4272 = vadd.f32 %v4255, %v4270
      %v4273 = vadd.f32 %v4256, %v4270
      %v4274 = vadd.f32 %v4257, %v4270
      %v4275 = vadd.f32 %v4258, %v4270
      %v4276 = vadd.f32 %v4259, %v4270
      %v4277 = vadd.f32 %v4260, %v4270
      %v4278 = vadd.f32 %v4261, %v4270
      %v4279 = vadd.f32 %v4262, %v4270
      %v4280 = vadd.f32 %v4263, %v4270
      %v4281 = vadd.f32 %v4264, %v4270
      %4282 = vst [vmem:[%s332] sm:$0xff] %v4272
      %4283 = vst [vmem:[%s332 + $0x8] sm:$0xff] %v4273
      %4284 = vst [vmem:[%s332 + $0x10] sm:$0xff] %v4274
      %4285 = vst [vmem:[%s332 + $0x18] sm:$0xff] %v4275
      %4286 = vst [vmem:[%s332 + $0x20] sm:$0xff] %v4276
      %4287 = vst [vmem:[%s332 + $0x28] sm:$0xff] %v4277
      %4288 = vst [vmem:[%s332 + $0x30] sm:$0xff] %v4278
      %4289 = vst [vmem:[%s332 + $0x38] sm:$0xff] %v4279
      %4290 = vst [vmem:[%s332 + $0x40] sm:$0xff] %v4280
      %4291 = vst [vmem:[%s332 + $0x48] sm:$0xff] %v4281
      %p4292 = scmp.lt.s32.totalorder %s20, 1
      %s4293 = scalar_select %p4292, %s20, 1
      %s4294 = smul.addr %s4293, 10
      %s4295 = smul.addr %s4294, 8
      %s4296 = scalar_lea.vmem %s9, %s4295
      // Predicated region
      $region57: #{bicubic_pp_forward.1} parent=55 // pred_check
        %p4297 = pneg %p232
      $region58: #{bicubic_pp_forward.1} parent=55 // pred_check_branch
        %4299 = sbr.rel (%p4297) target = $region60
      $region59: #{bicubic_pp_forward.1} parent=55 // pred_region
        _
      $region60: #{bicubic_pp_forward.1} parent=55 // pred_fallthru
        _
    $region56: #{bicubic_pp_forward.1} parent=5 // pred_fallthru
      _
    %p4300 = scmp.le.s32.totalorder 2, %s15
    // Predicated region
    $region61: #{bicubic_pp_forward.1} parent=5 // pred_check
      %p4301 = pneg %p4300
    $region62: #{bicubic_pp_forward.1} parent=5 // pred_check_branch
      %4303 = sbr.rel (%p4301) target = $region64
    $region63: #{bicubic_pp_forward.1} parent=5 // pred_region
      %s4304 = ssub.s32 %s15, 2
      // Predicated region
      $region65: #{bicubic_pp_forward.1} parent=63 // pred_check
        %p4305 = pneg %p238
      $region66: #{bicubic_pp_forward.1} parent=63 // pred_check_branch
        %4307 = sbr.rel (%p4305) target = $region68
      $region67: #{bicubic_pp_forward.1} parent=63 // pred_region
        %p4308 = scmp.lt.s32.totalorder %s21, 1
        %s4309 = scalar_select %p4308, %s21, 1
        %s4310 = smul.addr %s4309, 10
        %s4311 = smul.addr %s4310, 8
        %s4312 = scalar_lea.vmem %s9, %s4311
      $region68: #{bicubic_pp_forward.1} parent=63 // pred_fallthru
        _
    $region64: #{bicubic_pp_forward.1} parent=5 // pred_fallthru
      _
  $region6: #{bicubic_pp_forward.1} parent=0 // loop_footer
    %s19 = sadd.s32 1, %s15
  $region7: #{bicubic_pp_forward.1} parent=0 // loop_footer_branch
    %14 = sbr.rel target = $region3
  $region8: #{bicubic_pp_forward.1} parent=0 // loop_exit
    _

</llo_original>
